<compile_context>
chip_gen: v7x
topology: tpu7x:2x2x1
jax: 0.10.0
libtpu: 0.0.40
codegen_flags: <defaults>
</compile_context>

<pallas_src>
from typing import NamedTuple

import jax
import jax.numpy as jnp
from jax.experimental import pallas as pl
from jax.experimental.pallas import tpu as pltpu


def dqn_kernel(x_ref, w1_ref, b1_ref, w2_ref, b2_ref, o_ref):
    """One batch tile of relu(x @ W1 + b1) @ W2 + b2.

    x_ref : (TB, S)      compute dtype (f32 or bf16), streamed over batch
    w1_ref: (S, H)       compute dtype, VMEM-resident across all grid steps
    b1_ref: (1, H)       f32
    w2_ref: (H, A_out)   compute dtype, VMEM-resident
    b2_ref: (1, A_out)   f32
    o_ref : (TB, A_out)  output dtype
    """
    # f32 inputs: force true f32 matmul passes (default is bf16 multi-pass).
    # bf16 inputs: default precision already feeds the MXU at native rate.
    prec = (jax.lax.Precision.HIGHEST
            if x_ref.dtype == jnp.float32 else jax.lax.Precision.DEFAULT)

    # fc1 on the MXU with f32 accumulation.
    h = jnp.dot(x_ref[...], w1_ref[...],
                preferred_element_type=jnp.float32, precision=prec)
    # Bias + ReLU on the VPU in f32 (v5e has no bf16 VALU, so keep this f32).
    h = jnp.maximum(h + b1_ref[...], 0.0)
    # Single explicit cast point to the MXU input dtype (no-op in the f32 path).
    h = h.astype(w2_ref.dtype)
    # fc2 on the MXU.
    y = jnp.dot(h, w2_ref[...],
                preferred_element_type=jnp.float32, precision=prec)
    o_ref[...] = (y + b2_ref[...]).astype(o_ref.dtype)


def _round_up(n, m):
    return ((n + m - 1) // m) * m


class DQNParams(NamedTuple):
    w1: jax.Array        # (S, H)      compute dtype
    b1: jax.Array        # (1, H)      f32
    w2: jax.Array        # (H, A_out)  compute dtype
    b2: jax.Array        # (1, A_out)  f32
    action_dim: int      # real A (A_out may be lane-padded)


def prepare_dqn_params(w1, b1, w2, b2, *, compute_dtype=jnp.float32,
                       lane_dense_out=False):
    """One-time pad / cast of the weights (do NOT call per forward step).

    w1: (S, H); b1: (H,); w2: (H, A); b2: (A,).
    lane_dense_out=True pads the action dim to 128 (unmasked vst per tile);
    only worth it for small batches — at replay-buffer B it is a 64x HBM
    write amplification for A=2, so the default is the un-padded output.
    """
    S, H = w1.shape
    H2, A = w2.shape
    assert H == H2 and b1.shape == (H,) and b2.shape == (A,)

    w1_p = w1.astype(compute_dtype)
    b1_p = b1.reshape(1, H).astype(jnp.float32)

    if lane_dense_out:
        A_out = max(128, _round_up(A, 128))
        w2_p = jnp.zeros((H, A_out), compute_dtype).at[:, :A].set(
            w2.astype(compute_dtype))
        b2_p = jnp.zeros((1, A_out), jnp.float32).at[:, :A].set(
            b2.astype(jnp.float32))
    else:
        w2_p = w2.astype(compute_dtype)
        b2_p = b2.reshape(1, A).astype(jnp.float32)

    return DQNParams(w1_p, b1_p, w2_p, b2_p, A)


def _choose_tb(B, block_b):
    # Tiny batch: single grid step, per-step overhead dominates.
    if B <= 16:
        return max(8, _round_up(B, 8))
    # Otherwise guarantee >= 2 grid steps so the "parallel" batch axis can be
    # sharded across both TensorCores on v7x, capped at block_b (512-1024 is
    # ~85% of HBM roofline for streamed tiles; 256 is only ~63%).
    half = _round_up(-(-B // 2), 8)
    return min(block_b, half)


def dqn_forward(x, params: DQNParams, *, block_b=1024):
    """x: (B, S) -> (B, A). Weights come pre-prepared from prepare_dqn_params."""
    B, S = x.shape
    S_w, H = params.w1.shape
    H2, A_out = params.w2.shape
    A = params.action_dim
    assert S == S_w and H == H2

    compute_dtype = params.w1.dtype
    out_dtype = x.dtype
    x_c = x if x.dtype == compute_dtype else x.astype(compute_dtype)

    # ---- batch tiling --------------------------------------------------------
    tb = _choose_tb(B, block_b)
    b_pad = _round_up(B, tb)
    if b_pad != B:
        # Padded rows compute relu(b1) @ w2 + b2; they are sliced away below.
        x_c = jnp.zeros((b_pad, S), compute_dtype).at[:B, :].set(x_c)
    num_blocks = b_pad // tb

    el = jnp.dtype(compute_dtype).itemsize
    cost = pl.CostEstimate(
        flops=2 * b_pad * (S * H + H * A_out),
        transcendentals=0,
        bytes_accessed=(b_pad * S * el                 # x
                        + S * H * el + H * A_out * el  # weights
                        + (H + A_out) * 4              # biases
                        + b_pad * A_out * jnp.dtype(out_dtype).itemsize),  # out
    )

    out = pl.pallas_call(
        dqn_kernel,
        out_shape=jax.ShapeDtypeStruct((b_pad, A_out), out_dtype),
        grid=(num_blocks,),
        in_specs=[
            pl.BlockSpec((tb, S), lambda i: (i, 0)),      # x: streamed over batch
            pl.BlockSpec((S, H), lambda i: (0, 0)),       # w1: resident
            pl.BlockSpec((1, H), lambda i: (0, 0)),       # b1: resident
            pl.BlockSpec((H, A_out), lambda i: (0, 0)),   # w2: resident
            pl.BlockSpec((1, A_out), lambda i: (0, 0)),   # b2: resident
        ],
        out_specs=pl.BlockSpec((tb, A_out), lambda i: (i, 0)),
        compiler_params=pltpu.CompilerParams(
            dimension_semantics=("parallel",),  # batch axis -> both TCs on v7x
        ),
        cost_estimate=cost,
    )(x_c, params.w1, params.b1, params.w2, params.b2)

    if b_pad != B or A_out != A:
        out = out[:B, :A]
    return out
    # TODO(synk): for the DQN training loss, fuse the Q(s,a) gather / argmax
    # over actions into the kernel epilogue to drop the (B, A) output write.


def dqn_ref(x, w1, b1, w2, b2):
    h = jnp.maximum(x @ w1 + b1, 0.0)
    return h @ w2 + b2


if __name__ == "__main__":
    # DQN Flappy Bird style dims, with a replay-buffer-sized batch so the
    # kernel is not purely launch-overhead bound.
    batch = 512
    state_dim = 12
    hidden_dim = 256
    action_dim = 2

    key = jax.random.PRNGKey(0)
    kx, kw1, kb1, kw2, kb2 = jax.random.split(key, 5)

    x = jax.random.normal(kx, (batch, state_dim), dtype=jnp.float32)
    # nn.Linear-like uniform init scales.
    s1 = 1.0 / (state_dim ** 0.5)
    s2 = 1.0 / (hidden_dim ** 0.5)
    w1 = jax.random.uniform(kw1, (state_dim, hidden_dim), jnp.float32, -s1, s1)
    b1 = jax.random.uniform(kb1, (hidden_dim,), jnp.float32, -s1, s1)
    w2 = jax.random.uniform(kw2, (hidden_dim, action_dim), jnp.float32, -s2, s2)
    b2 = jax.random.uniform(kb2, (action_dim,), jnp.float32, -s2, s2)

    ref = dqn_ref(x, w1, b1, w2, b2)

    # f32 path (semantics of the PyTorch module; true f32 matmul accumulation).
    params_f32 = prepare_dqn_params(w1, b1, w2, b2)          # one-time prep
    out = jax.block_until_ready(dqn_forward(x, params_f32))
    assert out.shape == (batch, action_dim)
    assert jnp.allclose(out, ref, atol=1e-4, rtol=1e-4)

    # bf16 MXU path (f32 accumulation, f32 bias/ReLU); halves streamed x and
    # resident weight bytes — preferred default on v5e/v6e.
    params_bf16 = prepare_dqn_params(w1, b1, w2, b2, compute_dtype=jnp.bfloat16)
    out_bf16 = jax.block_until_ready(dqn_forward(x, params_bf16))
    assert out_bf16.shape == (batch, action_dim)
    assert jnp.allclose(out_bf16.astype(jnp.float32), ref, atol=1e-1, rtol=1e-1)

    # Lane-dense output slab variant (small-B option; unmasked vst per tile).
    params_ld = prepare_dqn_params(w1, b1, w2, b2, lane_dense_out=True)
    out_ld = jax.block_until_ready(dqn_forward(x, params_ld))
    assert out_ld.shape == (batch, action_dim)
    assert jnp.allclose(out_ld, ref, atol=1e-4, rtol=1e-4)

    print("KERNEL_OK")
</pallas_src>

<mosaic_0001>
module attributes {stable_mosaic.version = 11 : i64} {
  func.func @dqn_kernel(%arg0: i32, %arg1: memref<256x12xf32, #tpu.memory_space<vmem>>, %arg2: memref<12x256xf32, #tpu.memory_space<vmem>>, %arg3: memref<1x256xf32, #tpu.memory_space<vmem>>, %arg4: memref<256x2xf32, #tpu.memory_space<vmem>>, %arg5: memref<1x2xf32, #tpu.memory_space<vmem>>, %arg6: memref<256x2xf32, #tpu.memory_space<vmem>>) attributes {dimension_semantics = [#tpu.dimension_semantics<parallel>], iteration_bounds = array<i64: 2>, scalar_prefetch = 0 : i64, scratch_operands = 0 : i64, tpu.core_type = #tpu.core_type<tc>, window_params = [{transform_indices = @transform_0, window_bounds = array<i64: 256, 12>}, {pipeline_mode = #tpu.pipeline_mode<synchronous>, transform_indices = @transform_1, window_bounds = array<i64: 12, 256>}, {pipeline_mode = #tpu.pipeline_mode<synchronous>, transform_indices = @transform_2, window_bounds = array<i64: 1, 256>}, {pipeline_mode = #tpu.pipeline_mode<synchronous>, transform_indices = @transform_3, window_bounds = array<i64: 256, 2>}, {pipeline_mode = #tpu.pipeline_mode<synchronous>, transform_indices = @transform_4, window_bounds = array<i64: 1, 2>}, {transform_indices = @transform_5, window_bounds = array<i64: 256, 2>}]} {
    %c0 = arith.constant 0 : index
    %c0_0 = arith.constant 0 : index
    %0 = vector.load %arg1[%c0, %c0_0] : memref<256x12xf32, #tpu.memory_space<vmem>>, vector<256x12xf32>
    %c0_1 = arith.constant 0 : index
    %c0_2 = arith.constant 0 : index
    %1 = vector.load %arg2[%c0_1, %c0_2] : memref<12x256xf32, #tpu.memory_space<vmem>>, vector<12x256xf32>
    %cst = arith.constant dense<0.000000e+00> : vector<256x256xf32>
    %2 = tpu.matmul %0, %1, %cst {dimension_numbers = #tpu.dot_dimension_numbers<[1], [0], [0], [1], [0, 0, 1, 1], [], []>, precision = #tpu.contract_precision<fp32>} : vector<256x12xf32>, vector<12x256xf32>, vector<256x256xf32> -> vector<256x256xf32>
    %c0_3 = arith.constant 0 : index
    %c0_4 = arith.constant 0 : index
    %3 = vector.load %arg3[%c0_3, %c0_4] : memref<1x256xf32, #tpu.memory_space<vmem>>, vector<1x256xf32>
    %4 = vector.broadcast %3 : vector<1x256xf32> to vector<256x256xf32>
    %5 = arith.addf %2, %4 : vector<256x256xf32>
    %cst_5 = arith.constant 0.000000e+00 : f32
    %6 = vector.broadcast %cst_5 : f32 to vector<256x256xf32>
    %7 = arith.maximumf %5, %6 : vector<256x256xf32>
    %c0_6 = arith.constant 0 : index
    %c0_7 = arith.constant 0 : index
    %8 = vector.load %arg4[%c0_6, %c0_7] : memref<256x2xf32, #tpu.memory_space<vmem>>, vector<256x2xf32>
    %cst_8 = arith.constant dense<0.000000e+00> : vector<256x2xf32>
    %9 = tpu.matmul %7, %8, %cst_8 {dimension_numbers = #tpu.dot_dimension_numbers<[1], [0], [0], [1], [0, 0, 1, 1], [], []>, precision = #tpu.contract_precision<fp32>} : vector<256x256xf32>, vector<256x2xf32>, vector<256x2xf32> -> vector<256x2xf32>
    %c0_9 = arith.constant 0 : index
    %c0_10 = arith.constant 0 : index
    %10 = vector.load %arg5[%c0_9, %c0_10] : memref<1x2xf32, #tpu.memory_space<vmem>>, vector<1x2xf32>
    %11 = vector.broadcast %10 : vector<1x2xf32> to vector<256x2xf32>
    %12 = arith.addf %9, %11 : vector<256x2xf32>
    %c0_11 = arith.constant 0 : index
    %c0_12 = arith.constant 0 : index
    %13 = vector.load %arg6[%c0_11, %c0_12] : memref<256x2xf32, #tpu.memory_space<vmem>>, vector<256x2xf32>
    tpu.vector_store %arg6[%c0_11, %c0_12], %12 {strides = array<i32>} : memref<256x2xf32, #tpu.memory_space<vmem>>, vector<256x2xf32>,
    return
  }
  func.func @transform_0(%arg0: i32) -> (i32, i32) {
    %c0_i32 = arith.constant 0 : i32
    %c0_i32_0 = arith.constant 0 : i32
    return %arg0, %c0_i32 : i32, i32
  }
  func.func @transform_1(%arg0: i32) -> (i32, i32) {
    %c0_i32 = arith.constant 0 : i32
    %c0_i32_0 = arith.constant 0 : i32
    %c0_i32_1 = arith.constant 0 : i32
    return %c0_i32, %c0_i32_0 : i32, i32
  }
  func.func @transform_2(%arg0: i32) -> (i32, i32) {
    %c0_i32 = arith.constant 0 : i32
    %c0_i32_0 = arith.constant 0 : i32
    %c0_i32_1 = arith.constant 0 : i32
    return %c0_i32, %c0_i32_0 : i32, i32
  }
  func.func @transform_3(%arg0: i32) -> (i32, i32) {
    %c0_i32 = arith.constant 0 : i32
    %c0_i32_0 = arith.constant 0 : i32
    %c0_i32_1 = arith.constant 0 : i32
    return %c0_i32, %c0_i32_0 : i32, i32
  }
  func.func @transform_4(%arg0: i32) -> (i32, i32) {
    %c0_i32 = arith.constant 0 : i32
    %c0_i32_0 = arith.constant 0 : i32
    %c0_i32_1 = arith.constant 0 : i32
    return %c0_i32, %c0_i32_0 : i32, i32
  }
  func.func @transform_5(%arg0: i32) -> (i32, i32) {
    %c0_i32 = arith.constant 0 : i32
    %c0_i32_0 = arith.constant 0 : i32
    return %arg0, %c0_i32 : i32, i32
  }
}

</mosaic_0001>

<llo_original>
// kernel: tpu_custom_call.1
$region0: #{tpu_custom_call.1}
  #allocation0 [shape = 'u32[]', space=smem, size = 0x4, offset = 0x4, fixed_abs, tag = 'smem constant byte address 0x4 - core index']
  #allocation1 [shape = 'u32[144,128]{1,0:T(1,128)}', space=vmem, size = 0x12000, scoped, tag = 'internal scratch']
  %s0 = inlined_call_operand.vmem [shape: f32[512,12], index: 0, kind: input, shape index: {}]
  %s1 = inlined_call_operand.vmem [shape: f32[12,256], index: 1, kind: input, shape index: {}]
  %s2 = inlined_call_operand.vmem [shape: f32[1,256], index: 2, kind: input, shape index: {}]
  %s3 = inlined_call_operand.vmem [shape: f32[256,2], index: 3, kind: input, shape index: {}]
  %s4 = inlined_call_operand.vmem [shape: f32[1,2], index: 4, kind: input, shape index: {}]
  %s5 = inlined_call_operand.vmem [shape: f32[512,2], index: 5, kind: output, shape index: {}]
  %s6 = sld [smem:[#allocation0]]
  $region53: #{tpu_custom_call.1} parent=0
    _
  %s8 = ssub.s32 1, %s6
  %s9 = scalar_select 0, %s8, %s6
  loop: start=0, step=1, limit=4
  $region2: #{tpu_custom_call.1} parent=0 // loop_pre_header
    _
  $region3: #{tpu_custom_call.1} parent=0 // loop_header
    %s11 = sphi 0, %s15
    %p12 = scmp.ge.s32.totalorder %s11, 4
    %s21 = sphi 0, %s23
    %s24 = sphi 0, %s21
    %s25 = sphi 0, %s24
    %s41 = sphi 0, %s25
    %s45 = sphi 0, %s45
    %s47 = sphi 0, %s45
    %s48 = sphi 0, %s47
    %s62 = sphi 0, %s48
    %s66 = sphi 0, %s66
    %s68 = sphi 0, %s66
    %s69 = sphi 0, %s68
    %s83 = sphi 0, %s69
    %s87 = sphi 0, %s87
    %s89 = sphi 0, %s87
    %s90 = sphi 0, %s89
    %s104 = sphi 0, %s90
    %s108 = sphi 0, %s108
    %s110 = sphi 0, %s108
    %s111 = sphi 0, %s110
    %s125 = sphi 0, %s111
    %s131 = sphi 0, %s133
    %s134 = sphi 0, %s131
    %s135 = sphi 0, %s134
    %s151 = sphi 0, %s135
  $region4: #{tpu_custom_call.1} parent=0 // loop_header_branch
    %14 = sbr.rel (%p12) target = $region8
  $region5: #{tpu_custom_call.1} parent=0 // loop_body
    %s16 = ssub.s32 %s11, 1
    %s17 = ssub.s32 %s11, 2
    %s18 = sadd.s32 %s11, 1
    %s19 = ssub.s32 %s11, %s18
    %p20 = scmp.eq.s32.totalorder %s19, 0
    %s22 = sadd.s32 %s21, 1
    %s23 = scalar_select %p20, %s21, %s22
    %p26 = pneg %p20
    %p27 = scmp.eq.s32.totalorder %s11, 1
    %p28 = por %p26, %p27
    %p29 = scmp.ne.s32.totalorder %s21, %s24
    %p30 = scmp.eq.s32.totalorder %s11, 0
    %p31 = por %p29, %p30
    %p32 = scmp.ne.s32.totalorder %s21, %s24
    %p33 = scmp.eq.s32.totalorder %s16, 1
    %p34 = por %p32, %p33
    %p35 = scmp.ne.s32.totalorder %s24, %s25
    %p36 = scmp.eq.s32.totalorder %s16, 0
    %p37 = por %p35, %p36
    %p38 = scmp.ne.s32.totalorder %s24, %s25
    %p39 = scmp.eq.s32.totalorder %s17, 1
    %p40 = por %p38, %p39
    %p42 = scmp.ne.s32.totalorder %s25, %s41
    %p43 = scmp.eq.s32.totalorder %s17, 0
    %p44 = por %p42, %p43
    %s46 = sadd.s32 %s45, 1
    %p49 = scmp.eq.s32.totalorder %s11, 1
    %p50 = scmp.ne.s32.totalorder %s45, %s47
    %p51 = scmp.eq.s32.totalorder %s11, 0
    %p52 = por %p50, %p51
    %p53 = scmp.ne.s32.totalorder %s45, %s47
    %p54 = scmp.eq.s32.totalorder %s16, 1
    %p55 = por %p53, %p54
    %p56 = scmp.ne.s32.totalorder %s47, %s48
    %p57 = scmp.eq.s32.totalorder %s16, 0
    %p58 = por %p56, %p57
    %p59 = scmp.ne.s32.totalorder %s47, %s48
    %p60 = scmp.eq.s32.totalorder %s17, 1
    %p61 = por %p59, %p60
    %p63 = scmp.ne.s32.totalorder %s48, %s62
    %p64 = scmp.eq.s32.totalorder %s17, 0
    %p65 = por %p63, %p64
    %s67 = sadd.s32 %s66, 1
    %p70 = scmp.eq.s32.totalorder %s11, 1
    %p71 = scmp.ne.s32.totalorder %s66, %s68
    %p72 = scmp.eq.s32.totalorder %s11, 0
    %p73 = por %p71, %p72
    %p74 = scmp.ne.s32.totalorder %s66, %s68
    %p75 = scmp.eq.s32.totalorder %s16, 1
    %p76 = por %p74, %p75
    %p77 = scmp.ne.s32.totalorder %s68, %s69
    %p78 = scmp.eq.s32.totalorder %s16, 0
    %p79 = por %p77, %p78
    %p80 = scmp.ne.s32.totalorder %s68, %s69
    %p81 = scmp.eq.s32.totalorder %s17, 1
    %p82 = por %p80, %p81
    %p84 = scmp.ne.s32.totalorder %s69, %s83
    %p85 = scmp.eq.s32.totalorder %s17, 0
    %p86 = por %p84, %p85
    %s88 = sadd.s32 %s87, 1
    %p91 = scmp.eq.s32.totalorder %s11, 1
    %p92 = scmp.ne.s32.totalorder %s87, %s89
    %p93 = scmp.eq.s32.totalorder %s11, 0
    %p94 = por %p92, %p93
    %p95 = scmp.ne.s32.totalorder %s87, %s89
    %p96 = scmp.eq.s32.totalorder %s16, 1
    %p97 = por %p95, %p96
    %p98 = scmp.ne.s32.totalorder %s89, %s90
    %p99 = scmp.eq.s32.totalorder %s16, 0
    %p100 = por %p98, %p99
    %p101 = scmp.ne.s32.totalorder %s89, %s90
    %p102 = scmp.eq.s32.totalorder %s17, 1
    %p103 = por %p101, %p102
    %p105 = scmp.ne.s32.totalorder %s90, %s104
    %p106 = scmp.eq.s32.totalorder %s17, 0
    %p107 = por %p105, %p106
    %s109 = sadd.s32 %s108, 1
    %p112 = scmp.eq.s32.totalorder %s11, 1
    %p113 = scmp.ne.s32.totalorder %s108, %s110
    %p114 = scmp.eq.s32.totalorder %s11, 0
    %p115 = por %p113, %p114
    %p116 = scmp.ne.s32.totalorder %s108, %s110
    %p117 = scmp.eq.s32.totalorder %s16, 1
    %p118 = por %p116, %p117
    %p119 = scmp.ne.s32.totalorder %s110, %s111
    %p120 = scmp.eq.s32.totalorder %s16, 0
    %p121 = por %p119, %p120
    %p122 = scmp.ne.s32.totalorder %s110, %s111
    %p123 = scmp.eq.s32.totalorder %s17, 1
    %p124 = por %p122, %p123
    %p126 = scmp.ne.s32.totalorder %s111, %s125
    %p127 = scmp.eq.s32.totalorder %s17, 0
    %p128 = por %p126, %p127
    %s129 = ssub.s32 %s11, %s18
    %p130 = scmp.eq.s32.totalorder %s129, 0
    %s132 = sadd.s32 %s131, 1
    %s133 = scalar_select %p130, %s131, %s132
    %p136 = pneg %p130
    %p137 = scmp.eq.s32.totalorder %s11, 1
    %p138 = por %p136, %p137
    %p139 = scmp.ne.s32.totalorder %s131, %s134
    %p140 = scmp.eq.s32.totalorder %s11, 0
    %p141 = por %p139, %p140
    %p142 = scmp.ne.s32.totalorder %s131, %s134
    %p143 = scmp.eq.s32.totalorder %s16, 1
    %p144 = por %p142, %p143
    %p145 = scmp.ne.s32.totalorder %s134, %s135
    %p146 = scmp.eq.s32.totalorder %s16, 0
    %p147 = por %p145, %p146
    %p148 = scmp.ne.s32.totalorder %s134, %s135
    %p149 = scmp.eq.s32.totalorder %s17, 1
    %p150 = por %p148, %p149
    %p152 = scmp.ne.s32.totalorder %s135, %s151
    %p153 = scmp.eq.s32.totalorder %s17, 0
    %p154 = por %p152, %p153
    %p155 = scmp.le.s32.totalorder 1, %s11
    %p156 = scmp.lt.s32.totalorder %s11, 3
    %p157 = pnand %p155, %p156
    %p158 = pneg %p157
    // Predicated region
    $region9: #{tpu_custom_call.1} parent=5 // pred_check
      _
    $region10: #{tpu_custom_call.1} parent=5 // pred_check_branch
      %160 = sbr.rel (%p157) target = $region12
    $region11: #{tpu_custom_call.1} parent=5 // pred_region
      %s161 = ssub.s32 %s11, 1
      // Predicated region
      $region13: #{tpu_custom_call.1} parent=11 // pred_check
        %p162 = pneg %p58
      $region14: #{tpu_custom_call.1} parent=11 // pred_check_branch
        %164 = sbr.rel (%p162) target = $region16
      $region15: #{tpu_custom_call.1} parent=11 // pred_region
        _
      $region16: #{tpu_custom_call.1} parent=11 // pred_fallthru
        _
      // Predicated region
      $region17: #{tpu_custom_call.1} parent=11 // pred_check
        %p165 = pneg %p79
      $region18: #{tpu_custom_call.1} parent=11 // pred_check_branch
        %167 = sbr.rel (%p165) target = $region20
      $region19: #{tpu_custom_call.1} parent=11 // pred_region
        _
      $region20: #{tpu_custom_call.1} parent=11 // pred_fallthru
        _
      // Predicated region
      $region21: #{tpu_custom_call.1} parent=11 // pred_check
        %p168 = pneg %p100
      $region22: #{tpu_custom_call.1} parent=11 // pred_check_branch
        %170 = sbr.rel (%p168) target = $region24
      $region23: #{tpu_custom_call.1} parent=11 // pred_region
        _
      $region24: #{tpu_custom_call.1} parent=11 // pred_fallthru
        _
      // Predicated region
      $region25: #{tpu_custom_call.1} parent=11 // pred_check
        %p171 = pneg %p121
      $region26: #{tpu_custom_call.1} parent=11 // pred_check_branch
        %173 = sbr.rel (%p171) target = $region28
      $region27: #{tpu_custom_call.1} parent=11 // pred_region
        _
      $region28: #{tpu_custom_call.1} parent=11 // pred_fallthru
        _
    $region12: #{tpu_custom_call.1} parent=5 // pred_fallthru
      _
    %p174 = scmp.lt.s32.totalorder %s11, 2
    // Predicated region
    $region29: #{tpu_custom_call.1} parent=5 // pred_check
      %p175 = pneg %p174
    $region30: #{tpu_custom_call.1} parent=5 // pred_check_branch
      %177 = sbr.rel (%p175) target = $region32
    $region31: #{tpu_custom_call.1} parent=5 // pred_region
      // Predicated region
      $region33: #{tpu_custom_call.1} parent=31 // pred_check
        %p178 = pneg %p31
      $region34: #{tpu_custom_call.1} parent=31 // pred_check_branch
        %180 = sbr.rel (%p178) target = $region36
      $region35: #{tpu_custom_call.1} parent=31 // pred_region
        %s181 = smul.u32 32, %s11
        %p182 = scmp.lt.s32.totalorder %s181, 63
        %s183 = scalar_select %p182, %s181, 63
        %s184 = smul.addr %s183, 8
        %s185 = scalar_lea.vmem %s0, %s184
        %s186 = smul.u32 32, %s11
      $region36: #{tpu_custom_call.1} parent=31 // pred_fallthru
        _
    $region32: #{tpu_custom_call.1} parent=5 // pred_fallthru
      _
    %p187 = scmp.le.s32.totalorder 1, %s11
    %p188 = scmp.lt.s32.totalorder %s11, 3
    %p189 = pnand %p187, %p188
    %p190 = pneg %p189
    // Predicated region
    $region37: #{tpu_custom_call.1} parent=5 // pred_check
      _
    $region38: #{tpu_custom_call.1} parent=5 // pred_check_branch
      %192 = sbr.rel (%p189) target = $region40
    $region39: #{tpu_custom_call.1} parent=5 // pred_region
      %s193 = ssub.s32 %s11, 1
      %s194 = smul.u32 32, %s16
      %p195 = scmp.lt.s32.totalorder %s194, 63
      %s196 = scalar_select %p195, %s194, 63
      %s197 = smul.addr %s196, 8
      %s198 = scalar_lea.vmem %s0, %s197
      %p199 = pneg %p37
      %p200 = pneg %p34
      %p201 = pneg %p58
      %p202 = pneg %p55
      %p203 = pneg %p79
      %p204 = pneg %p76
      %p205 = pneg %p100
      %p206 = pneg %p97
      %p207 = pneg %p121
      %p208 = pneg %p118
      %p209 = pneg %p147
      %p210 = pneg %p144
      %s211 = smul.u32 32, %s16
      %p212 = scmp.lt.s32.totalorder %s211, 63
      %s213 = scalar_select %p212, %s211, 63
      %s214 = smul.addr %s213, 8
      %s215 = scalar_lea.vmem %s5, %s214
      %s216 = smul.u32 32, %s16
      %p217 = scmp.lt.s32.totalorder %s216, 63
      %s218 = scalar_select %p217, %s216, 63
      %s219 = smul.addr %s218, 8
      %s220 = scalar_lea.vmem %s0, %s219
      %s221 = smul.u32 32, %s16
      %s222 = smul.u32 32, %s16
      %p223 = scmp.lt.s32.totalorder %s222, 63
      %s224 = scalar_select %p223, %s222, 63
      %s225 = smul.addr %s224, 8
      %s226 = scalar_lea.vmem %s5, %s225
      %s227 = smul.u32 32, %s16
      %v228 = vld [vmem:[%s220] sm:$0xff]
      %v229 = vld [vmem:[%s220 + $0x8] sm:$0xff]
      %v230 = vld [vmem:[%s220 + $0x10] sm:$0xff]
      %v231 = vld [vmem:[%s220 + $0x18] sm:$0xff]
      %v232 = vld [vmem:[%s220 + $0x20] sm:$0xff]
      %v233 = vld [vmem:[%s220 + $0x28] sm:$0xff]
      %v234 = vld [vmem:[%s220 + $0x30] sm:$0xff]
      %v235 = vld [vmem:[%s220 + $0x38] sm:$0xff]
      %v236 = vld [vmem:[%s220 + $0x40] sm:$0xff]
      %v237 = vld [vmem:[%s220 + $0x48] sm:$0xff]
      %v238 = vld [vmem:[%s220 + $0x50] sm:$0xff]
      %v239 = vld [vmem:[%s220 + $0x58] sm:$0xff]
      %v240 = vld [vmem:[%s220 + $0x60] sm:$0xff]
      %v241 = vld [vmem:[%s220 + $0x68] sm:$0xff]
      %v242 = vld [vmem:[%s220 + $0x70] sm:$0xff]
      %v243 = vld [vmem:[%s220 + $0x78] sm:$0xff]
      %v244 = vld [vmem:[%s220 + $0x80] sm:$0xff]
      %v245 = vld [vmem:[%s220 + $0x88] sm:$0xff]
      %v246 = vld [vmem:[%s220 + $0x90] sm:$0xff]
      %v247 = vld [vmem:[%s220 + $0x98] sm:$0xff]
      %v248 = vld [vmem:[%s220 + $0xa0] sm:$0xff]
      %v249 = vld [vmem:[%s220 + $0xa8] sm:$0xff]
      %v250 = vld [vmem:[%s220 + $0xb0] sm:$0xff]
      %v251 = vld [vmem:[%s220 + $0xb8] sm:$0xff]
      %v252 = vld [vmem:[%s220 + $0xc0] sm:$0xff]
      %v253 = vld [vmem:[%s220 + $0xc8] sm:$0xff]
      %v254 = vld [vmem:[%s220 + $0xd0] sm:$0xff]
      %v255 = vld [vmem:[%s220 + $0xd8] sm:$0xff]
      %v256 = vld [vmem:[%s220 + $0xe0] sm:$0xff]
      %v257 = vld [vmem:[%s220 + $0xe8] sm:$0xff]
      %v258 = vld [vmem:[%s220 + $0xf0] sm:$0xff]
      %v259 = vld [vmem:[%s220 + $0xf8] sm:$0xff]
      %v260 = vld [vmem:[%s1] sm:$0xff]
      %v261 = vld [vmem:[%s1 + $0x8] sm:$0xff]
      %v262 = vld [vmem:[%s1 + $0x10] sm:$0xf]
      %v263 = vld [vmem:[%s1 + $0x18] sm:$0xf]
      %v264 = vld [vmem:[%s2] sm:$0x3]
      %v266 = vlaneseq
      %v267 = vshrl.u32 %v266, 7
      %v268 = vsub.s32 0, %v267
      %v269 = vrot.slane %v264, %v268
      %v270 = vlaneseq
      %v271 = vshrl.u32 %v270, 7
      %v272 = vsub.s32 1, %v271
      %v273 = vrot.slane %v264, %v272
      %vm276 = vcmask 97280
      %v278 = vsel %vm276, %v228, 0
      %v281 = vsel %vm276, %v229, 0
      %v284 = vsel %vm276, %v230, 0
      %v287 = vsel %vm276, %v231, 0
      %v290 = vsel %vm276, %v232, 0
      %v293 = vsel %vm276, %v233, 0
      %v296 = vsel %vm276, %v234, 0
      %v299 = vsel %vm276, %v235, 0
      %v302 = vsel %vm276, %v236, 0
      %v305 = vsel %vm276, %v237, 0
      %v308 = vsel %vm276, %v238, 0
      %v311 = vsel %vm276, %v239, 0
      %v314 = vsel %vm276, %v240, 0
      %v317 = vsel %vm276, %v241, 0
      %v320 = vsel %vm276, %v242, 0
      %v323 = vsel %vm276, %v243, 0
      %v326 = vsel %vm276, %v244, 0
      %v329 = vsel %vm276, %v245, 0
      %v332 = vsel %vm276, %v246, 0
      %v335 = vsel %vm276, %v247, 0
      %v338 = vsel %vm276, %v248, 0
      %v341 = vsel %vm276, %v249, 0
      %v344 = vsel %vm276, %v250, 0
      %v347 = vsel %vm276, %v251, 0
      %v350 = vsel %vm276, %v252, 0
      %v353 = vsel %vm276, %v253, 0
      %v356 = vsel %vm276, %v254, 0
      %v359 = vsel %vm276, %v255, 0
      %v362 = vsel %vm276, %v256, 0
      %v365 = vsel %vm276, %v257, 0
      %v368 = vsel %vm276, %v258, 0
      %v371 = vsel %vm276, %v259, 0
      %vm373 = vcmask 1043456
      %v375 = vsel %vm373, %v262, 0
      %v378 = vsel %vm373, %v263, 0
      %v380 = vand.u32 %v261, 4294901760
      %381 = vmatprep.subr.mxu0 %v380
      %v382 = vand.u32 %v260, 4294901760
      %383 = vmatpush1.msra.mxu0 %v382
      %v384 = vand.u32 %v378, 4294901760
      %385 = vmatprep.subr.mxu0 %v384
      %v386 = vand.u32 %v375, 4294901760
      %387 = vmatpush1.msra.mxu0 %v386
      %388 = vmatprep.subr.mxu0 0.0
      %389 = vmatpush1.msra.mxu0 0.0
      %390 = vmatprep.subr.mxu0 0.0
      %391 = vmatpush1.msra.mxu0 0.0
      %392 = vmatprep.subr.mxu0 0.0
      %393 = vmatpush1.msra.mxu0 0.0
      %394 = vmatprep.subr.mxu0 0.0
      %395 = vmatpush1.msra.mxu0 0.0
      %396 = vmatprep.subr.mxu0 0.0
      %397 = vmatpush1.msra.mxu0 0.0
      %398 = vmatprep.subr.mxu0 0.0
      %399 = vmatpush1.msra.mxu0 0.0
      %400 = vmatprep.subr.mxu0 0.0
      %401 = vmatpush1.msra.mxu0 0.0
      %402 = vmatprep.subr.mxu0 0.0
      %403 = vmatpush1.msra.mxu0 0.0
      %404 = vmatprep.subr.mxu0 0.0
      %405 = vmatpush1.msra.mxu0 0.0
      %406 = vmatprep.subr.mxu0 0.0
      %407 = vmatpush1.msra.mxu0 0.0
      %408 = vmatprep.subr.mxu0 0.0
      %409 = vmatpush1.msra.mxu0 0.0
      %410 = vmatprep.subr.mxu0 0.0
      %411 = vmatpush1.msra.mxu0 0.0
      %412 = vmatprep.subr.mxu0 0.0
      %413 = vmatpush1.msra.mxu0 0.0
      %414 = vmatprep.subr.mxu0 0.0
      %415 = vmatpush1.msra.mxu0 0.0
      %416 = vmatprep.subr.mxu0 0.0
      %417 = vmatpush1.msra.mxu0 0.0
      %418 = vmatprep.subr.mxu0 0.0
      %419 = vmatpush1.msra.mxu0 0.0
      %420 = vmatprep.subr.mxu0 0.0
      %421 = vmatpush1.msra.mxu0 0.0
      %422 = vmatprep.subr.mxu0 0.0
      %423 = vmatpush1.msra.mxu0 0.0
      %424 = vmatprep.subr.mxu0 0.0
      %425 = vmatpush1.msra.mxu0 0.0
      %426 = vmatprep.subr.mxu0 0.0
      %427 = vmatpush1.msra.mxu0 0.0
      %428 = vmatprep.subr.mxu0 0.0
      %429 = vmatpush1.msra.mxu0 0.0
      %430 = vmatprep.subr.mxu0 0.0
      %431 = vmatpush1.msra.mxu0 0.0
      %432 = vmatprep.subr.mxu0 0.0
      %433 = vmatpush1.msra.mxu0 0.0
      %434 = vmatprep.subr.mxu0 0.0
      %435 = vmatpush1.msra.mxu0 0.0
      %436 = vmatprep.subr.mxu0 0.0
      %437 = vmatpush1.msra.mxu0 0.0
      %438 = vmatprep.subr.mxu0 0.0
      %439 = vmatpush1.msra.mxu0 0.0
      %440 = vmatprep.subr.mxu0 0.0
      %441 = vmatpush1.msra.mxu0 0.0
      %442 = vmatprep.subr.mxu0 0.0
      %443 = vmatpush1.msra.mxu0 0.0
      %444 = vmatprep.subr.mxu0 0.0
      %445 = vmatpush1.msra.mxu0 0.0
      %446 = vmatprep.subr.mxu0 0.0
      %447 = vmatpush1.msra.mxu0 0.0
      %448 = vmatprep.mubr.f32.mxu0 0.0
      %v449 = vand.u32 %v278, 4294901760
      %v450 = vsub.f32 %v278, %v449
      %v451 = vand.u32 %v450, 4294901760
      %v452 = vsub.f32 %v450, %v451
      %v453 = vand.u32 %v452, 4294901760
      %454 = vmatmul.mubr.f32.gmra.mrb[0].mxu0 %v453
      %v455 = vpop.f32.mrb[0].mxu0
      %v456 = vadd.f32 %v269, %v455
      %v457 = vpop.f32.mrb[0].mxu0
      %v458 = vadd.f32 %v273, %v457
      %459 = vmatprep.mubr.f32.mxu0 0.0
      %v460 = vand.u32 %v281, 4294901760
      %v461 = vsub.f32 %v281, %v460
      %v462 = vand.u32 %v461, 4294901760
      %v463 = vsub.f32 %v461, %v462
      %v464 = vand.u32 %v463, 4294901760
      %465 = vmatmul.mubr.f32.gmra.mrb[0].mxu0 %v464
      %v466 = vpop.f32.mrb[0].mxu0
      %v467 = vadd.f32 %v269, %v466
      %v468 = vpop.f32.mrb[0].mxu0
      %v469 = vadd.f32 %v273, %v468
      %470 = vmatprep.mubr.f32.mxu0 0.0
      %v471 = vand.u32 %v284, 4294901760
      %v472 = vsub.f32 %v284, %v471
      %v473 = vand.u32 %v472, 4294901760
      %v474 = vsub.f32 %v472, %v473
      %v475 = vand.u32 %v474, 4294901760
      %476 = vmatmul.mubr.f32.gmra.mrb[0].mxu0 %v475
      %v477 = vpop.f32.mrb[0].mxu0
      %v478 = vadd.f32 %v269, %v477
      %v479 = vpop.f32.mrb[0].mxu0
      %v480 = vadd.f32 %v273, %v479
      %481 = vmatprep.mubr.f32.mxu0 0.0
      %v482 = vand.u32 %v287, 4294901760
      %v483 = vsub.f32 %v287, %v482
      %v484 = vand.u32 %v483, 4294901760
      %v485 = vsub.f32 %v483, %v484
      %v486 = vand.u32 %v485, 4294901760
      %487 = vmatmul.mubr.f32.gmra.mrb[0].mxu0 %v486
      %v488 = vpop.f32.mrb[0].mxu0
      %v489 = vadd.f32 %v269, %v488
      %v490 = vpop.f32.mrb[0].mxu0
      %v491 = vadd.f32 %v273, %v490
      %492 = vmatprep.mubr.f32.mxu0 0.0
      %v493 = vand.u32 %v290, 4294901760
      %v494 = vsub.f32 %v290, %v493
      %v495 = vand.u32 %v494, 4294901760
      %v496 = vsub.f32 %v494, %v495
      %v497 = vand.u32 %v496, 4294901760
      %498 = vmatmul.mubr.f32.gmra.mrb[0].mxu0 %v497
      %v499 = vpop.f32.mrb[0].mxu0
      %v500 = vadd.f32 %v269, %v499
      %v501 = vpop.f32.mrb[0].mxu0
      %v502 = vadd.f32 %v273, %v501
      %503 = vmatprep.mubr.f32.mxu0 0.0
      %v504 = vand.u32 %v293, 4294901760
      %v505 = vsub.f32 %v293, %v504
      %v506 = vand.u32 %v505, 4294901760
      %v507 = vsub.f32 %v505, %v506
      %v508 = vand.u32 %v507, 4294901760
      %509 = vmatmul.mubr.f32.gmra.mrb[0].mxu0 %v508
      %v510 = vpop.f32.mrb[0].mxu0
      %v511 = vadd.f32 %v269, %v510
      %v512 = vpop.f32.mrb[0].mxu0
      %v513 = vadd.f32 %v273, %v512
      %514 = vmatprep.mubr.f32.mxu0 0.0
      %v515 = vand.u32 %v296, 4294901760
      %v516 = vsub.f32 %v296, %v515
      %v517 = vand.u32 %v516, 4294901760
      %v518 = vsub.f32 %v516, %v517
      %v519 = vand.u32 %v518, 4294901760
      %520 = vmatmul.mubr.f32.gmra.mrb[0].mxu0 %v519
      %v521 = vpop.f32.mrb[0].mxu0
      %v522 = vadd.f32 %v269, %v521
      %v523 = vpop.f32.mrb[0].mxu0
      %v524 = vadd.f32 %v273, %v523
      %525 = vmatprep.mubr.f32.mxu0 0.0
      %v526 = vand.u32 %v299, 4294901760
      %v527 = vsub.f32 %v299, %v526
      %v528 = vand.u32 %v527, 4294901760
      %v529 = vsub.f32 %v527, %v528
      %v530 = vand.u32 %v529, 4294901760
      %531 = vmatmul.mubr.f32.gmra.mrb[0].mxu0 %v530
      %v532 = vpop.f32.mrb[0].mxu0
      %v533 = vadd.f32 %v269, %v532
      %v534 = vpop.f32.mrb[0].mxu0
      %v535 = vadd.f32 %v273, %v534
      %536 = vmatprep.mubr.f32.mxu0 0.0
      %v537 = vand.u32 %v302, 4294901760
      %v538 = vsub.f32 %v302, %v537
      %v539 = vand.u32 %v538, 4294901760
      %v540 = vsub.f32 %v538, %v539
      %v541 = vand.u32 %v540, 4294901760
      %542 = vmatmul.mubr.f32.gmra.mrb[0].mxu0 %v541
      %v543 = vpop.f32.mrb[0].mxu0
      %v544 = vadd.f32 %v269, %v543
      %v545 = vpop.f32.mrb[0].mxu0
      %v546 = vadd.f32 %v273, %v545
      %547 = vmatprep.mubr.f32.mxu0 0.0
      %v548 = vand.u32 %v305, 4294901760
      %v549 = vsub.f32 %v305, %v548
      %v550 = vand.u32 %v549, 4294901760
      %v551 = vsub.f32 %v549, %v550
      %v552 = vand.u32 %v551, 4294901760
      %553 = vmatmul.mubr.f32.gmra.mrb[0].mxu0 %v552
      %v554 = vpop.f32.mrb[0].mxu0
      %v555 = vadd.f32 %v269, %v554
      %v556 = vpop.f32.mrb[0].mxu0
      %v557 = vadd.f32 %v273, %v556
      %558 = vmatprep.mubr.f32.mxu0 0.0
      %v559 = vand.u32 %v308, 4294901760
      %v560 = vsub.f32 %v308, %v559
      %v561 = vand.u32 %v560, 4294901760
      %v562 = vsub.f32 %v560, %v561
      %v563 = vand.u32 %v562, 4294901760
      %564 = vmatmul.mubr.f32.gmra.mrb[0].mxu0 %v563
      %v565 = vpop.f32.mrb[0].mxu0
      %v566 = vadd.f32 %v269, %v565
      %v567 = vpop.f32.mrb[0].mxu0
      %v568 = vadd.f32 %v273, %v567
      %569 = vmatprep.mubr.f32.mxu0 0.0
      %v570 = vand.u32 %v311, 4294901760
      %v571 = vsub.f32 %v311, %v570
      %v572 = vand.u32 %v571, 4294901760
      %v573 = vsub.f32 %v571, %v572
      %v574 = vand.u32 %v573, 4294901760
      %575 = vmatmul.mubr.f32.gmra.mrb[0].mxu0 %v574
      %v576 = vpop.f32.mrb[0].mxu0
      %v577 = vadd.f32 %v269, %v576
      %v578 = vpop.f32.mrb[0].mxu0
      %v579 = vadd.f32 %v273, %v578
      %580 = vmatprep.mubr.f32.mxu0 0.0
      %v581 = vand.u32 %v314, 4294901760
      %v582 = vsub.f32 %v314, %v581
      %v583 = vand.u32 %v582, 4294901760
      %v584 = vsub.f32 %v582, %v583
      %v585 = vand.u32 %v584, 4294901760
      %586 = vmatmul.mubr.f32.gmra.mrb[0].mxu0 %v585
      %v587 = vpop.f32.mrb[0].mxu0
      %v588 = vadd.f32 %v269, %v587
      %v589 = vpop.f32.mrb[0].mxu0
      %v590 = vadd.f32 %v273, %v589
      %591 = vmatprep.mubr.f32.mxu0 0.0
      %v592 = vand.u32 %v317, 4294901760
      %v593 = vsub.f32 %v317, %v592
      %v594 = vand.u32 %v593, 4294901760
      %v595 = vsub.f32 %v593, %v594
      %v596 = vand.u32 %v595, 4294901760
      %597 = vmatmul.mubr.f32.gmra.mrb[0].mxu0 %v596
      %v598 = vpop.f32.mrb[0].mxu0
      %v599 = vadd.f32 %v269, %v598
      %v600 = vpop.f32.mrb[0].mxu0
      %v601 = vadd.f32 %v273, %v600
      %602 = vmatprep.mubr.f32.mxu0 0.0
      %v603 = vand.u32 %v320, 4294901760
      %v604 = vsub.f32 %v320, %v603
      %v605 = vand.u32 %v604, 4294901760
      %v606 = vsub.f32 %v604, %v605
      %v607 = vand.u32 %v606, 4294901760
      %608 = vmatmul.mubr.f32.gmra.mrb[0].mxu0 %v607
      %v609 = vpop.f32.mrb[0].mxu0
      %v610 = vadd.f32 %v269, %v609
      %v611 = vpop.f32.mrb[0].mxu0
      %v612 = vadd.f32 %v273, %v611
      %613 = vmatprep.mubr.f32.mxu0 0.0
      %v614 = vand.u32 %v323, 4294901760
      %v615 = vsub.f32 %v323, %v614
      %v616 = vand.u32 %v615, 4294901760
      %v617 = vsub.f32 %v615, %v616
      %v618 = vand.u32 %v617, 4294901760
      %619 = vmatmul.mubr.f32.gmra.mrb[0].mxu0 %v618
      %v620 = vpop.f32.mrb[0].mxu0
      %v621 = vadd.f32 %v269, %v620
      %v622 = vpop.f32.mrb[0].mxu0
      %v623 = vadd.f32 %v273, %v622
      %624 = vmatprep.mubr.f32.mxu0 0.0
      %v625 = vand.u32 %v326, 4294901760
      %v626 = vsub.f32 %v326, %v625
      %v627 = vand.u32 %v626, 4294901760
      %v628 = vsub.f32 %v626, %v627
      %v629 = vand.u32 %v628, 4294901760
      %630 = vmatmul.mubr.f32.gmra.mrb[0].mxu0 %v629
      %v631 = vpop.f32.mrb[0].mxu0
      %v632 = vadd.f32 %v269, %v631
      %v633 = vpop.f32.mrb[0].mxu0
      %v634 = vadd.f32 %v273, %v633
      %635 = vmatprep.mubr.f32.mxu0 0.0
      %v636 = vand.u32 %v329, 4294901760
      %v637 = vsub.f32 %v329, %v636
      %v638 = vand.u32 %v637, 4294901760
      %v639 = vsub.f32 %v637, %v638
      %v640 = vand.u32 %v639, 4294901760
      %641 = vmatmul.mubr.f32.gmra.mrb[0].mxu0 %v640
      %v642 = vpop.f32.mrb[0].mxu0
      %v643 = vadd.f32 %v269, %v642
      %v644 = vpop.f32.mrb[0].mxu0
      %v645 = vadd.f32 %v273, %v644
      %646 = vmatprep.mubr.f32.mxu0 0.0
      %v647 = vand.u32 %v332, 4294901760
      %v648 = vsub.f32 %v332, %v647
      %v649 = vand.u32 %v648, 4294901760
      %v650 = vsub.f32 %v648, %v649
      %v651 = vand.u32 %v650, 4294901760
      %652 = vmatmul.mubr.f32.gmra.mrb[0].mxu0 %v651
      %v653 = vpop.f32.mrb[0].mxu0
      %v654 = vadd.f32 %v269, %v653
      %v655 = vpop.f32.mrb[0].mxu0
      %v656 = vadd.f32 %v273, %v655
      %657 = vmatprep.mubr.f32.mxu0 0.0
      %v658 = vand.u32 %v335, 4294901760
      %v659 = vsub.f32 %v335, %v658
      %v660 = vand.u32 %v659, 4294901760
      %v661 = vsub.f32 %v659, %v660
      %v662 = vand.u32 %v661, 4294901760
      %663 = vmatmul.mubr.f32.gmra.mrb[0].mxu0 %v662
      %v664 = vpop.f32.mrb[0].mxu0
      %v665 = vadd.f32 %v269, %v664
      %v666 = vpop.f32.mrb[0].mxu0
      %v667 = vadd.f32 %v273, %v666
      %668 = vmatprep.mubr.f32.mxu0 0.0
      %v669 = vand.u32 %v338, 4294901760
      %v670 = vsub.f32 %v338, %v669
      %v671 = vand.u32 %v670, 4294901760
      %v672 = vsub.f32 %v670, %v671
      %v673 = vand.u32 %v672, 4294901760
      %674 = vmatmul.mubr.f32.gmra.mrb[0].mxu0 %v673
      %v675 = vpop.f32.mrb[0].mxu0
      %v676 = vadd.f32 %v269, %v675
      %v677 = vpop.f32.mrb[0].mxu0
      %v678 = vadd.f32 %v273, %v677
      %679 = vmatprep.mubr.f32.mxu0 0.0
      %v680 = vand.u32 %v341, 4294901760
      %v681 = vsub.f32 %v341, %v680
      %v682 = vand.u32 %v681, 4294901760
      %v683 = vsub.f32 %v681, %v682
      %v684 = vand.u32 %v683, 4294901760
      %685 = vmatmul.mubr.f32.gmra.mrb[0].mxu0 %v684
      %v686 = vpop.f32.mrb[0].mxu0
      %v687 = vadd.f32 %v269, %v686
      %v688 = vpop.f32.mrb[0].mxu0
      %v689 = vadd.f32 %v273, %v688
      %690 = vmatprep.mubr.f32.mxu0 0.0
      %v691 = vand.u32 %v344, 4294901760
      %v692 = vsub.f32 %v344, %v691
      %v693 = vand.u32 %v692, 4294901760
      %v694 = vsub.f32 %v692, %v693
      %v695 = vand.u32 %v694, 4294901760
      %696 = vmatmul.mubr.f32.gmra.mrb[0].mxu0 %v695
      %v697 = vpop.f32.mrb[0].mxu0
      %v698 = vadd.f32 %v269, %v697
      %v699 = vpop.f32.mrb[0].mxu0
      %v700 = vadd.f32 %v273, %v699
      %701 = vmatprep.mubr.f32.mxu0 0.0
      %v702 = vand.u32 %v347, 4294901760
      %v703 = vsub.f32 %v347, %v702
      %v704 = vand.u32 %v703, 4294901760
      %v705 = vsub.f32 %v703, %v704
      %v706 = vand.u32 %v705, 4294901760
      %707 = vmatmul.mubr.f32.gmra.mrb[0].mxu0 %v706
      %v708 = vpop.f32.mrb[0].mxu0
      %v709 = vadd.f32 %v269, %v708
      %v710 = vpop.f32.mrb[0].mxu0
      %v711 = vadd.f32 %v273, %v710
      %712 = vmatprep.mubr.f32.mxu0 0.0
      %v713 = vand.u32 %v350, 4294901760
      %v714 = vsub.f32 %v350, %v713
      %v715 = vand.u32 %v714, 4294901760
      %v716 = vsub.f32 %v714, %v715
      %v717 = vand.u32 %v716, 4294901760
      %718 = vmatmul.mubr.f32.gmra.mrb[0].mxu0 %v717
      %v719 = vpop.f32.mrb[0].mxu0
      %v720 = vadd.f32 %v269, %v719
      %v721 = vpop.f32.mrb[0].mxu0
      %v722 = vadd.f32 %v273, %v721
      %723 = vmatprep.mubr.f32.mxu0 0.0
      %v724 = vand.u32 %v353, 4294901760
      %v725 = vsub.f32 %v353, %v724
      %v726 = vand.u32 %v725, 4294901760
      %v727 = vsub.f32 %v725, %v726
      %v728 = vand.u32 %v727, 4294901760
      %729 = vmatmul.mubr.f32.gmra.mrb[0].mxu0 %v728
      %v730 = vpop.f32.mrb[0].mxu0
      %v731 = vadd.f32 %v269, %v730
      %v732 = vpop.f32.mrb[0].mxu0
      %v733 = vadd.f32 %v273, %v732
      %734 = vmatprep.mubr.f32.mxu0 0.0
      %v735 = vand.u32 %v356, 4294901760
      %v736 = vsub.f32 %v356, %v735
      %v737 = vand.u32 %v736, 4294901760
      %v738 = vsub.f32 %v736, %v737
      %v739 = vand.u32 %v738, 4294901760
      %740 = vmatmul.mubr.f32.gmra.mrb[0].mxu0 %v739
      %v741 = vpop.f32.mrb[0].mxu0
      %v742 = vadd.f32 %v269, %v741
      %v743 = vpop.f32.mrb[0].mxu0
      %v744 = vadd.f32 %v273, %v743
      %745 = vmatprep.mubr.f32.mxu0 0.0
      %v746 = vand.u32 %v359, 4294901760
      %v747 = vsub.f32 %v359, %v746
      %v748 = vand.u32 %v747, 4294901760
      %v749 = vsub.f32 %v747, %v748
      %v750 = vand.u32 %v749, 4294901760
      %751 = vmatmul.mubr.f32.gmra.mrb[0].mxu0 %v750
      %v752 = vpop.f32.mrb[0].mxu0
      %v753 = vadd.f32 %v269, %v752
      %v754 = vpop.f32.mrb[0].mxu0
      %v755 = vadd.f32 %v273, %v754
      %756 = vmatprep.mubr.f32.mxu0 0.0
      %v757 = vand.u32 %v362, 4294901760
      %v758 = vsub.f32 %v362, %v757
      %v759 = vand.u32 %v758, 4294901760
      %v760 = vsub.f32 %v758, %v759
      %v761 = vand.u32 %v760, 4294901760
      %762 = vmatmul.mubr.f32.gmra.mrb[0].mxu0 %v761
      %v763 = vpop.f32.mrb[0].mxu0
      %v764 = vadd.f32 %v269, %v763
      %v765 = vpop.f32.mrb[0].mxu0
      %v766 = vadd.f32 %v273, %v765
      %767 = vmatprep.mubr.f32.mxu0 0.0
      %v768 = vand.u32 %v365, 4294901760
      %v769 = vsub.f32 %v365, %v768
      %v770 = vand.u32 %v769, 4294901760
      %v771 = vsub.f32 %v769, %v770
      %v772 = vand.u32 %v771, 4294901760
      %773 = vmatmul.mubr.f32.gmra.mrb[0].mxu0 %v772
      %v774 = vpop.f32.mrb[0].mxu0
      %v775 = vadd.f32 %v269, %v774
      %v776 = vpop.f32.mrb[0].mxu0
      %v777 = vadd.f32 %v273, %v776
      %778 = vmatprep.mubr.f32.mxu0 0.0
      %v779 = vand.u32 %v368, 4294901760
      %v780 = vsub.f32 %v368, %v779
      %v781 = vand.u32 %v780, 4294901760
      %v782 = vsub.f32 %v780, %v781
      %v783 = vand.u32 %v782, 4294901760
      %784 = vmatmul.mubr.f32.gmra.mrb[0].mxu0 %v783
      %v785 = vpop.f32.mrb[0].mxu0
      %v786 = vadd.f32 %v269, %v785
      %v787 = vpop.f32.mrb[0].mxu0
      %v788 = vadd.f32 %v273, %v787
      %789 = vmatprep.mubr.f32.mxu0 0.0
      %v790 = vand.u32 %v371, 4294901760
      %v791 = vsub.f32 %v371, %v790
      %v792 = vand.u32 %v791, 4294901760
      %v793 = vsub.f32 %v791, %v792
      %v794 = vand.u32 %v793, 4294901760
      %795 = vmatmul.mubr.f32.gmra.mrb[0].mxu0 %v794
      %v796 = vpop.f32.mrb[0].mxu0
      %v797 = vadd.f32 %v269, %v796
      %v798 = vpop.f32.mrb[0].mxu0
      %v799 = vadd.f32 %v273, %v798
      %800 = vdwg.mxu0
      %v801 = vand.u32 %v261, 4294901760
      %v802 = vsub.f32 %v261, %v801
      %v803 = vand.u32 %v802, 4294901760
      %v804 = vsub.f32 %v802, %v803
      %v805 = vand.u32 %v804, 4294901760
      %806 = vmatprep.subr.mxu0 %v805
      %v807 = vand.u32 %v260, 4294901760
      %v808 = vsub.f32 %v260, %v807
      %v809 = vand.u32 %v808, 4294901760
      %v810 = vsub.f32 %v808, %v809
      %v811 = vand.u32 %v810, 4294901760
      %812 = vmatpush1.msra.mxu0 %v811
      %v813 = vand.u32 %v378, 4294901760
      %v814 = vsub.f32 %v378, %v813
      %v815 = vand.u32 %v814, 4294901760
      %v816 = vsub.f32 %v814, %v815
      %v817 = vand.u32 %v816, 4294901760
      %818 = vmatprep.subr.mxu0 %v817
      %v819 = vand.u32 %v375, 4294901760
      %v820 = vsub.f32 %v375, %v819
      %v821 = vand.u32 %v820, 4294901760
      %v822 = vsub.f32 %v820, %v821
      %v823 = vand.u32 %v822, 4294901760
      %824 = vmatpush1.msra.mxu0 %v823
      %825 = vmatprep.subr.mxu0 0.0
      %826 = vmatpush1.msra.mxu0 0.0
      %827 = vmatprep.subr.mxu0 0.0
      %828 = vmatpush1.msra.mxu0 0.0
      %829 = vmatprep.subr.mxu0 0.0
      %830 = vmatpush1.msra.mxu0 0.0
      %831 = vmatprep.subr.mxu0 0.0
      %832 = vmatpush1.msra.mxu0 0.0
      %833 = vmatprep.subr.mxu0 0.0
      %834 = vmatpush1.msra.mxu0 0.0
      %835 = vmatprep.subr.mxu0 0.0
      %836 = vmatpush1.msra.mxu0 0.0
      %837 = vmatprep.subr.mxu0 0.0
      %838 = vmatpush1.msra.mxu0 0.0
      %839 = vmatprep.subr.mxu0 0.0
      %840 = vmatpush1.msra.mxu0 0.0
      %841 = vmatprep.subr.mxu0 0.0
      %842 = vmatpush1.msra.mxu0 0.0
      %843 = vmatprep.subr.mxu0 0.0
      %844 = vmatpush1.msra.mxu0 0.0
      %845 = vmatprep.subr.mxu0 0.0
      %846 = vmatpush1.msra.mxu0 0.0
      %847 = vmatprep.subr.mxu0 0.0
      %848 = vmatpush1.msra.mxu0 0.0
      %849 = vmatprep.subr.mxu0 0.0
      %850 = vmatpush1.msra.mxu0 0.0
      %851 = vmatprep.subr.mxu0 0.0
      %852 = vmatpush1.msra.mxu0 0.0
      %853 = vmatprep.subr.mxu0 0.0
      %854 = vmatpush1.msra.mxu0 0.0
      %855 = vmatprep.subr.mxu0 0.0
      %856 = vmatpush1.msra.mxu0 0.0
      %857 = vmatprep.subr.mxu0 0.0
      %858 = vmatpush1.msra.mxu0 0.0
      %859 = vmatprep.subr.mxu0 0.0
      %860 = vmatpush1.msra.mxu0 0.0
      %861 = vmatprep.subr.mxu0 0.0
      %862 = vmatpush1.msra.mxu0 0.0
      %863 = vmatprep.subr.mxu0 0.0
      %864 = vmatpush1.msra.mxu0 0.0
      %865 = vmatprep.subr.mxu0 0.0
      %866 = vmatpush1.msra.mxu0 0.0
      %867 = vmatprep.subr.mxu0 0.0
      %868 = vmatpush1.msra.mxu0 0.0
      %869 = vmatprep.subr.mxu0 0.0
      %870 = vmatpush1.msra.mxu0 0.0
      %871 = vmatprep.subr.mxu0 0.0
      %872 = vmatpush1.msra.mxu0 0.0
      %873 = vmatprep.subr.mxu0 0.0
      %874 = vmatpush1.msra.mxu0 0.0
      %875 = vmatprep.subr.mxu0 0.0
      %876 = vmatpush1.msra.mxu0 0.0
      %877 = vmatprep.subr.mxu0 0.0
      %878 = vmatpush1.msra.mxu0 0.0
      %879 = vmatprep.subr.mxu0 0.0
      %880 = vmatpush1.msra.mxu0 0.0
      %881 = vmatprep.subr.mxu0 0.0
      %882 = vmatpush1.msra.mxu0 0.0
      %883 = vmatprep.subr.mxu0 0.0
      %884 = vmatpush1.msra.mxu0 0.0
      %885 = vmatprep.mubr.f32.mxu0 0.0
      %v886 = vand.u32 %v278, 4294901760
      %887 = vmatmul.mubr.f32.gmra.mrb[0].mxu0 %v886
      %v888 = vpop.f32.mrb[0].mxu0
      %v889 = vadd.f32 %v456, %v888
      %v890 = vpop.f32.mrb[0].mxu0
      %v891 = vadd.f32 %v458, %v890
      %892 = vmatprep.mubr.f32.mxu0 0.0
      %v893 = vand.u32 %v281, 4294901760
      %894 = vmatmul.mubr.f32.gmra.mrb[0].mxu0 %v893
      %v895 = vpop.f32.mrb[0].mxu0
      %v896 = vadd.f32 %v467, %v895
      %v897 = vpop.f32.mrb[0].mxu0
      %v898 = vadd.f32 %v469, %v897
      %899 = vmatprep.mubr.f32.mxu0 0.0
      %v900 = vand.u32 %v284, 4294901760
      %901 = vmatmul.mubr.f32.gmra.mrb[0].mxu0 %v900
      %v902 = vpop.f32.mrb[0].mxu0
      %v903 = vadd.f32 %v478, %v902
      %v904 = vpop.f32.mrb[0].mxu0
      %v905 = vadd.f32 %v480, %v904
      %906 = vmatprep.mubr.f32.mxu0 0.0
      %v907 = vand.u32 %v287, 4294901760
      %908 = vmatmul.mubr.f32.gmra.mrb[0].mxu0 %v907
      %v909 = vpop.f32.mrb[0].mxu0
      %v910 = vadd.f32 %v489, %v909
      %v911 = vpop.f32.mrb[0].mxu0
      %v912 = vadd.f32 %v491, %v911
      %913 = vmatprep.mubr.f32.mxu0 0.0
      %v914 = vand.u32 %v290, 4294901760
      %915 = vmatmul.mubr.f32.gmra.mrb[0].mxu0 %v914
      %v916 = vpop.f32.mrb[0].mxu0
      %v917 = vadd.f32 %v500, %v916
      %v918 = vpop.f32.mrb[0].mxu0
      %v919 = vadd.f32 %v502, %v918
      %920 = vmatprep.mubr.f32.mxu0 0.0
      %v921 = vand.u32 %v293, 4294901760
      %922 = vmatmul.mubr.f32.gmra.mrb[0].mxu0 %v921
      %v923 = vpop.f32.mrb[0].mxu0
      %v924 = vadd.f32 %v511, %v923
      %v925 = vpop.f32.mrb[0].mxu0
      %v926 = vadd.f32 %v513, %v925
      %927 = vmatprep.mubr.f32.mxu0 0.0
      %v928 = vand.u32 %v296, 4294901760
      %929 = vmatmul.mubr.f32.gmra.mrb[0].mxu0 %v928
      %v930 = vpop.f32.mrb[0].mxu0
      %v931 = vadd.f32 %v522, %v930
      %v932 = vpop.f32.mrb[0].mxu0
      %v933 = vadd.f32 %v524, %v932
      %934 = vmatprep.mubr.f32.mxu0 0.0
      %v935 = vand.u32 %v299, 4294901760
      %936 = vmatmul.mubr.f32.gmra.mrb[0].mxu0 %v935
      %v937 = vpop.f32.mrb[0].mxu0
      %v938 = vadd.f32 %v533, %v937
      %v939 = vpop.f32.mrb[0].mxu0
      %v940 = vadd.f32 %v535, %v939
      %941 = vmatprep.mubr.f32.mxu0 0.0
      %v942 = vand.u32 %v302, 4294901760
      %943 = vmatmul.mubr.f32.gmra.mrb[0].mxu0 %v942
      %v944 = vpop.f32.mrb[0].mxu0
      %v945 = vadd.f32 %v544, %v944
      %v946 = vpop.f32.mrb[0].mxu0
      %v947 = vadd.f32 %v546, %v946
      %948 = vmatprep.mubr.f32.mxu0 0.0
      %v949 = vand.u32 %v305, 4294901760
      %950 = vmatmul.mubr.f32.gmra.mrb[0].mxu0 %v949
      %v951 = vpop.f32.mrb[0].mxu0
      %v952 = vadd.f32 %v555, %v951
      %v953 = vpop.f32.mrb[0].mxu0
      %v954 = vadd.f32 %v557, %v953
      %955 = vmatprep.mubr.f32.mxu0 0.0
      %v956 = vand.u32 %v308, 4294901760
      %957 = vmatmul.mubr.f32.gmra.mrb[0].mxu0 %v956
      %v958 = vpop.f32.mrb[0].mxu0
      %v959 = vadd.f32 %v566, %v958
      %v960 = vpop.f32.mrb[0].mxu0
      %v961 = vadd.f32 %v568, %v960
      %962 = vmatprep.mubr.f32.mxu0 0.0
      %v963 = vand.u32 %v311, 4294901760
      %964 = vmatmul.mubr.f32.gmra.mrb[0].mxu0 %v963
      %v965 = vpop.f32.mrb[0].mxu0
      %v966 = vadd.f32 %v577, %v965
      %v967 = vpop.f32.mrb[0].mxu0
      %v968 = vadd.f32 %v579, %v967
      %969 = vmatprep.mubr.f32.mxu0 0.0
      %v970 = vand.u32 %v314, 4294901760
      %971 = vmatmul.mubr.f32.gmra.mrb[0].mxu0 %v970
      %v972 = vpop.f32.mrb[0].mxu0
      %v973 = vadd.f32 %v588, %v972
      %v974 = vpop.f32.mrb[0].mxu0
      %v975 = vadd.f32 %v590, %v974
      %976 = vmatprep.mubr.f32.mxu0 0.0
      %v977 = vand.u32 %v317, 4294901760
      %978 = vmatmul.mubr.f32.gmra.mrb[0].mxu0 %v977
      %v979 = vpop.f32.mrb[0].mxu0
      %v980 = vadd.f32 %v599, %v979
      %v981 = vpop.f32.mrb[0].mxu0
      %v982 = vadd.f32 %v601, %v981
      %983 = vmatprep.mubr.f32.mxu0 0.0
      %v984 = vand.u32 %v320, 4294901760
      %985 = vmatmul.mubr.f32.gmra.mrb[0].mxu0 %v984
      %v986 = vpop.f32.mrb[0].mxu0
      %v987 = vadd.f32 %v610, %v986
      %v988 = vpop.f32.mrb[0].mxu0
      %v989 = vadd.f32 %v612, %v988
      %990 = vmatprep.mubr.f32.mxu0 0.0
      %v991 = vand.u32 %v323, 4294901760
      %992 = vmatmul.mubr.f32.gmra.mrb[0].mxu0 %v991
      %v993 = vpop.f32.mrb[0].mxu0
      %v994 = vadd.f32 %v621, %v993
      %v995 = vpop.f32.mrb[0].mxu0
      %v996 = vadd.f32 %v623, %v995
      %997 = vmatprep.mubr.f32.mxu0 0.0
      %v998 = vand.u32 %v326, 4294901760
      %999 = vmatmul.mubr.f32.gmra.mrb[0].mxu0 %v998
      %v1000 = vpop.f32.mrb[0].mxu0
      %v1001 = vadd.f32 %v632, %v1000
      %v1002 = vpop.f32.mrb[0].mxu0
      %v1003 = vadd.f32 %v634, %v1002
      %1004 = vmatprep.mubr.f32.mxu0 0.0
      %v1005 = vand.u32 %v329, 4294901760
      %1006 = vmatmul.mubr.f32.gmra.mrb[0].mxu0 %v1005
      %v1007 = vpop.f32.mrb[0].mxu0
      %v1008 = vadd.f32 %v643, %v1007
      %v1009 = vpop.f32.mrb[0].mxu0
      %v1010 = vadd.f32 %v645, %v1009
      %1011 = vmatprep.mubr.f32.mxu0 0.0
      %v1012 = vand.u32 %v332, 4294901760
      %1013 = vmatmul.mubr.f32.gmra.mrb[0].mxu0 %v1012
      %v1014 = vpop.f32.mrb[0].mxu0
      %v1015 = vadd.f32 %v654, %v1014
      %v1016 = vpop.f32.mrb[0].mxu0
      %v1017 = vadd.f32 %v656, %v1016
      %1018 = vmatprep.mubr.f32.mxu0 0.0
      %v1019 = vand.u32 %v335, 4294901760
      %1020 = vmatmul.mubr.f32.gmra.mrb[0].mxu0 %v1019
      %v1021 = vpop.f32.mrb[0].mxu0
      %v1022 = vadd.f32 %v665, %v1021
      %v1023 = vpop.f32.mrb[0].mxu0
      %v1024 = vadd.f32 %v667, %v1023
      %1025 = vmatprep.mubr.f32.mxu0 0.0
      %v1026 = vand.u32 %v338, 4294901760
      %1027 = vmatmul.mubr.f32.gmra.mrb[0].mxu0 %v1026
      %v1028 = vpop.f32.mrb[0].mxu0
      %v1029 = vadd.f32 %v676, %v1028
      %v1030 = vpop.f32.mrb[0].mxu0
      %v1031 = vadd.f32 %v678, %v1030
      %1032 = vmatprep.mubr.f32.mxu0 0.0
      %v1033 = vand.u32 %v341, 4294901760
      %1034 = vmatmul.mubr.f32.gmra.mrb[0].mxu0 %v1033
      %v1035 = vpop.f32.mrb[0].mxu0
      %v1036 = vadd.f32 %v687, %v1035
      %v1037 = vpop.f32.mrb[0].mxu0
      %v1038 = vadd.f32 %v689, %v1037
      %1039 = vmatprep.mubr.f32.mxu0 0.0
      %v1040 = vand.u32 %v344, 4294901760
      %1041 = vmatmul.mubr.f32.gmra.mrb[0].mxu0 %v1040
      %v1042 = vpop.f32.mrb[0].mxu0
      %v1043 = vadd.f32 %v698, %v1042
      %v1044 = vpop.f32.mrb[0].mxu0
      %v1045 = vadd.f32 %v700, %v1044
      %1046 = vmatprep.mubr.f32.mxu0 0.0
      %v1047 = vand.u32 %v347, 4294901760
      %1048 = vmatmul.mubr.f32.gmra.mrb[0].mxu0 %v1047
      %v1049 = vpop.f32.mrb[0].mxu0
      %v1050 = vadd.f32 %v709, %v1049
      %v1051 = vpop.f32.mrb[0].mxu0
      %v1052 = vadd.f32 %v711, %v1051
      %1053 = vmatprep.mubr.f32.mxu0 0.0
      %v1054 = vand.u32 %v350, 4294901760
      %1055 = vmatmul.mubr.f32.gmra.mrb[0].mxu0 %v1054
      %v1056 = vpop.f32.mrb[0].mxu0
      %v1057 = vadd.f32 %v720, %v1056
      %v1058 = vpop.f32.mrb[0].mxu0
      %v1059 = vadd.f32 %v722, %v1058
      %1060 = vmatprep.mubr.f32.mxu0 0.0
      %v1061 = vand.u32 %v353, 4294901760
      %1062 = vmatmul.mubr.f32.gmra.mrb[0].mxu0 %v1061
      %v1063 = vpop.f32.mrb[0].mxu0
      %v1064 = vadd.f32 %v731, %v1063
      %v1065 = vpop.f32.mrb[0].mxu0
      %v1066 = vadd.f32 %v733, %v1065
      %1067 = vmatprep.mubr.f32.mxu0 0.0
      %v1068 = vand.u32 %v356, 4294901760
      %1069 = vmatmul.mubr.f32.gmra.mrb[0].mxu0 %v1068
      %v1070 = vpop.f32.mrb[0].mxu0
      %v1071 = vadd.f32 %v742, %v1070
      %v1072 = vpop.f32.mrb[0].mxu0
      %v1073 = vadd.f32 %v744, %v1072
      %1074 = vmatprep.mubr.f32.mxu0 0.0
      %v1075 = vand.u32 %v359, 4294901760
      %1076 = vmatmul.mubr.f32.gmra.mrb[0].mxu0 %v1075
      %v1077 = vpop.f32.mrb[0].mxu0
      %v1078 = vadd.f32 %v753, %v1077
      %v1079 = vpop.f32.mrb[0].mxu0
      %v1080 = vadd.f32 %v755, %v1079
      %1081 = vmatprep.mubr.f32.mxu0 0.0
      %v1082 = vand.u32 %v362, 4294901760
      %1083 = vmatmul.mubr.f32.gmra.mrb[0].mxu0 %v1082
      %v1084 = vpop.f32.mrb[0].mxu0
      %v1085 = vadd.f32 %v764, %v1084
      %v1086 = vpop.f32.mrb[0].mxu0
      %v1087 = vadd.f32 %v766, %v1086
      %1088 = vmatprep.mubr.f32.mxu0 0.0
      %v1089 = vand.u32 %v365, 4294901760
      %1090 = vmatmul.mubr.f32.gmra.mrb[0].mxu0 %v1089
      %v1091 = vpop.f32.mrb[0].mxu0
      %v1092 = vadd.f32 %v775, %v1091
      %v1093 = vpop.f32.mrb[0].mxu0
      %v1094 = vadd.f32 %v777, %v1093
      %1095 = vmatprep.mubr.f32.mxu0 0.0
      %v1096 = vand.u32 %v368, 4294901760
      %1097 = vmatmul.mubr.f32.gmra.mrb[0].mxu0 %v1096
      %v1098 = vpop.f32.mrb[0].mxu0
      %v1099 = vadd.f32 %v786, %v1098
      %v1100 = vpop.f32.mrb[0].mxu0
      %v1101 = vadd.f32 %v788, %v1100
      %1102 = vmatprep.mubr.f32.mxu0 0.0
      %v1103 = vand.u32 %v371, 4294901760
      %1104 = vmatmul.mubr.f32.gmra.mrb[0].mxu0 %v1103
      %v1105 = vpop.f32.mrb[0].mxu0
      %v1106 = vadd.f32 %v797, %v1105
      %v1107 = vpop.f32.mrb[0].mxu0
      %v1108 = vadd.f32 %v799, %v1107
      %1109 = vdwg.mxu0
      %v1110 = vand.u32 %v261, 4294901760
      %v1111 = vsub.f32 %v261, %v1110
      %1112 = vmatprep.subr.mxu0 %v1111
      %v1113 = vand.u32 %v260, 4294901760
      %v1114 = vsub.f32 %v260, %v1113
      %1115 = vmatpush1.msra.mxu0 %v1114
      %v1116 = vand.u32 %v378, 4294901760
      %v1117 = vsub.f32 %v378, %v1116
      %1118 = vmatprep.subr.mxu0 %v1117
      %v1119 = vand.u32 %v375, 4294901760
      %v1120 = vsub.f32 %v375, %v1119
      %1121 = vmatpush1.msra.mxu0 %v1120
      %1122 = vmatprep.subr.mxu0 0.0
      %1123 = vmatpush1.msra.mxu0 0.0
      %1124 = vmatprep.subr.mxu0 0.0
      %1125 = vmatpush1.msra.mxu0 0.0
      %1126 = vmatprep.subr.mxu0 0.0
      %1127 = vmatpush1.msra.mxu0 0.0
      %1128 = vmatprep.subr.mxu0 0.0
      %1129 = vmatpush1.msra.mxu0 0.0
      %1130 = vmatprep.subr.mxu0 0.0
      %1131 = vmatpush1.msra.mxu0 0.0
      %1132 = vmatprep.subr.mxu0 0.0
      %1133 = vmatpush1.msra.mxu0 0.0
      %1134 = vmatprep.subr.mxu0 0.0
      %1135 = vmatpush1.msra.mxu0 0.0
      %1136 = vmatprep.subr.mxu0 0.0
      %1137 = vmatpush1.msra.mxu0 0.0
      %1138 = vmatprep.subr.mxu0 0.0
      %1139 = vmatpush1.msra.mxu0 0.0
      %1140 = vmatprep.subr.mxu0 0.0
      %1141 = vmatpush1.msra.mxu0 0.0
      %1142 = vmatprep.subr.mxu0 0.0
      %1143 = vmatpush1.msra.mxu0 0.0
      %1144 = vmatprep.subr.mxu0 0.0
      %1145 = vmatpush1.msra.mxu0 0.0
      %1146 = vmatprep.subr.mxu0 0.0
      %1147 = vmatpush1.msra.mxu0 0.0
      %1148 = vmatprep.subr.mxu0 0.0
      %1149 = vmatpush1.msra.mxu0 0.0
      %1150 = vmatprep.subr.mxu0 0.0
      %1151 = vmatpush1.msra.mxu0 0.0
      %1152 = vmatprep.subr.mxu0 0.0
      %1153 = vmatpush1.msra.mxu0 0.0
      %1154 = vmatprep.subr.mxu0 0.0
      %1155 = vmatpush1.msra.mxu0 0.0
      %1156 = vmatprep.subr.mxu0 0.0
      %1157 = vmatpush1.msra.mxu0 0.0
      %1158 = vmatprep.subr.mxu0 0.0
      %1159 = vmatpush1.msra.mxu0 0.0
      %1160 = vmatprep.subr.mxu0 0.0
      %1161 = vmatpush1.msra.mxu0 0.0
      %1162 = vmatprep.subr.mxu0 0.0
      %1163 = vmatpush1.msra.mxu0 0.0
      %1164 = vmatprep.subr.mxu0 0.0
      %1165 = vmatpush1.msra.mxu0 0.0
      %1166 = vmatprep.subr.mxu0 0.0
      %1167 = vmatpush1.msra.mxu0 0.0
      %1168 = vmatprep.subr.mxu0 0.0
      %1169 = vmatpush1.msra.mxu0 0.0
      %1170 = vmatprep.subr.mxu0 0.0
      %1171 = vmatpush1.msra.mxu0 0.0
      %1172 = vmatprep.subr.mxu0 0.0
      %1173 = vmatpush1.msra.mxu0 0.0
      %1174 = vmatprep.subr.mxu0 0.0
      %1175 = vmatpush1.msra.mxu0 0.0
      %1176 = vmatprep.subr.mxu0 0.0
      %1177 = vmatpush1.msra.mxu0 0.0
      %1178 = vmatprep.subr.mxu0 0.0
      %1179 = vmatpush1.msra.mxu0 0.0
      %1180 = vmatprep.subr.mxu0 0.0
      %1181 = vmatpush1.msra.mxu0 0.0
      %1182 = vmatprep.mubr.f32.mxu0 0.0
      %v1183 = vand.u32 %v278, 4294901760
      %v1184 = vsub.f32 %v278, %v1183
      %1185 = vmatmul.mubr.f32.gmra.mrb[0].mxu0 %v1184
      %v1186 = vpop.f32.mrb[0].mxu0
      %v1187 = vadd.f32 %v889, %v1186
      %v1188 = vpop.f32.mrb[0].mxu0
      %v1189 = vadd.f32 %v891, %v1188
      %1190 = vmatprep.mubr.f32.mxu0 0.0
      %v1191 = vand.u32 %v281, 4294901760
      %v1192 = vsub.f32 %v281, %v1191
      %1193 = vmatmul.mubr.f32.gmra.mrb[0].mxu0 %v1192
      %v1194 = vpop.f32.mrb[0].mxu0
      %v1195 = vadd.f32 %v896, %v1194
      %v1196 = vpop.f32.mrb[0].mxu0
      %v1197 = vadd.f32 %v898, %v1196
      %1198 = vmatprep.mubr.f32.mxu0 0.0
      %v1199 = vand.u32 %v284, 4294901760
      %v1200 = vsub.f32 %v284, %v1199
      %1201 = vmatmul.mubr.f32.gmra.mrb[0].mxu0 %v1200
      %v1202 = vpop.f32.mrb[0].mxu0
      %v1203 = vadd.f32 %v903, %v1202
      %v1204 = vpop.f32.mrb[0].mxu0
      %v1205 = vadd.f32 %v905, %v1204
      %1206 = vmatprep.mubr.f32.mxu0 0.0
      %v1207 = vand.u32 %v287, 4294901760
      %v1208 = vsub.f32 %v287, %v1207
      %1209 = vmatmul.mubr.f32.gmra.mrb[0].mxu0 %v1208
      %v1210 = vpop.f32.mrb[0].mxu0
      %v1211 = vadd.f32 %v910, %v1210
      %v1212 = vpop.f32.mrb[0].mxu0
      %v1213 = vadd.f32 %v912, %v1212
      %1214 = vmatprep.mubr.f32.mxu0 0.0
      %v1215 = vand.u32 %v290, 4294901760
      %v1216 = vsub.f32 %v290, %v1215
      %1217 = vmatmul.mubr.f32.gmra.mrb[0].mxu0 %v1216
      %v1218 = vpop.f32.mrb[0].mxu0
      %v1219 = vadd.f32 %v917, %v1218
      %v1220 = vpop.f32.mrb[0].mxu0
      %v1221 = vadd.f32 %v919, %v1220
      %1222 = vmatprep.mubr.f32.mxu0 0.0
      %v1223 = vand.u32 %v293, 4294901760
      %v1224 = vsub.f32 %v293, %v1223
      %1225 = vmatmul.mubr.f32.gmra.mrb[0].mxu0 %v1224
      %v1226 = vpop.f32.mrb[0].mxu0
      %v1227 = vadd.f32 %v924, %v1226
      %v1228 = vpop.f32.mrb[0].mxu0
      %v1229 = vadd.f32 %v926, %v1228
      %1230 = vmatprep.mubr.f32.mxu0 0.0
      %v1231 = vand.u32 %v296, 4294901760
      %v1232 = vsub.f32 %v296, %v1231
      %1233 = vmatmul.mubr.f32.gmra.mrb[0].mxu0 %v1232
      %v1234 = vpop.f32.mrb[0].mxu0
      %v1235 = vadd.f32 %v931, %v1234
      %v1236 = vpop.f32.mrb[0].mxu0
      %v1237 = vadd.f32 %v933, %v1236
      %1238 = vmatprep.mubr.f32.mxu0 0.0
      %v1239 = vand.u32 %v299, 4294901760
      %v1240 = vsub.f32 %v299, %v1239
      %1241 = vmatmul.mubr.f32.gmra.mrb[0].mxu0 %v1240
      %v1242 = vpop.f32.mrb[0].mxu0
      %v1243 = vadd.f32 %v938, %v1242
      %v1244 = vpop.f32.mrb[0].mxu0
      %v1245 = vadd.f32 %v940, %v1244
      %1246 = vmatprep.mubr.f32.mxu0 0.0
      %v1247 = vand.u32 %v302, 4294901760
      %v1248 = vsub.f32 %v302, %v1247
      %1249 = vmatmul.mubr.f32.gmra.mrb[0].mxu0 %v1248
      %v1250 = vpop.f32.mrb[0].mxu0
      %v1251 = vadd.f32 %v945, %v1250
      %v1252 = vpop.f32.mrb[0].mxu0
      %v1253 = vadd.f32 %v947, %v1252
      %1254 = vmatprep.mubr.f32.mxu0 0.0
      %v1255 = vand.u32 %v305, 4294901760
      %v1256 = vsub.f32 %v305, %v1255
      %1257 = vmatmul.mubr.f32.gmra.mrb[0].mxu0 %v1256
      %v1258 = vpop.f32.mrb[0].mxu0
      %v1259 = vadd.f32 %v952, %v1258
      %v1260 = vpop.f32.mrb[0].mxu0
      %v1261 = vadd.f32 %v954, %v1260
      %1262 = vmatprep.mubr.f32.mxu0 0.0
      %v1263 = vand.u32 %v308, 4294901760
      %v1264 = vsub.f32 %v308, %v1263
      %1265 = vmatmul.mubr.f32.gmra.mrb[0].mxu0 %v1264
      %v1266 = vpop.f32.mrb[0].mxu0
      %v1267 = vadd.f32 %v959, %v1266
      %v1268 = vpop.f32.mrb[0].mxu0
      %v1269 = vadd.f32 %v961, %v1268
      %1270 = vmatprep.mubr.f32.mxu0 0.0
      %v1271 = vand.u32 %v311, 4294901760
      %v1272 = vsub.f32 %v311, %v1271
      %1273 = vmatmul.mubr.f32.gmra.mrb[0].mxu0 %v1272
      %v1274 = vpop.f32.mrb[0].mxu0
      %v1275 = vadd.f32 %v966, %v1274
      %v1276 = vpop.f32.mrb[0].mxu0
      %v1277 = vadd.f32 %v968, %v1276
      %1278 = vmatprep.mubr.f32.mxu0 0.0
      %v1279 = vand.u32 %v314, 4294901760
      %v1280 = vsub.f32 %v314, %v1279
      %1281 = vmatmul.mubr.f32.gmra.mrb[0].mxu0 %v1280
      %v1282 = vpop.f32.mrb[0].mxu0
      %v1283 = vadd.f32 %v973, %v1282
      %v1284 = vpop.f32.mrb[0].mxu0
      %v1285 = vadd.f32 %v975, %v1284
      %1286 = vmatprep.mubr.f32.mxu0 0.0
      %v1287 = vand.u32 %v317, 4294901760
      %v1288 = vsub.f32 %v317, %v1287
      %1289 = vmatmul.mubr.f32.gmra.mrb[0].mxu0 %v1288
      %v1290 = vpop.f32.mrb[0].mxu0
      %v1291 = vadd.f32 %v980, %v1290
      %v1292 = vpop.f32.mrb[0].mxu0
      %v1293 = vadd.f32 %v982, %v1292
      %1294 = vmatprep.mubr.f32.mxu0 0.0
      %v1295 = vand.u32 %v320, 4294901760
      %v1296 = vsub.f32 %v320, %v1295
      %1297 = vmatmul.mubr.f32.gmra.mrb[0].mxu0 %v1296
      %v1298 = vpop.f32.mrb[0].mxu0
      %v1299 = vadd.f32 %v987, %v1298
      %v1300 = vpop.f32.mrb[0].mxu0
      %v1301 = vadd.f32 %v989, %v1300
      %1302 = vmatprep.mubr.f32.mxu0 0.0
      %v1303 = vand.u32 %v323, 4294901760
      %v1304 = vsub.f32 %v323, %v1303
      %1305 = vmatmul.mubr.f32.gmra.mrb[0].mxu0 %v1304
      %v1306 = vpop.f32.mrb[0].mxu0
      %v1307 = vadd.f32 %v994, %v1306
      %v1308 = vpop.f32.mrb[0].mxu0
      %v1309 = vadd.f32 %v996, %v1308
      %1310 = vmatprep.mubr.f32.mxu0 0.0
      %v1311 = vand.u32 %v326, 4294901760
      %v1312 = vsub.f32 %v326, %v1311
      %1313 = vmatmul.mubr.f32.gmra.mrb[0].mxu0 %v1312
      %v1314 = vpop.f32.mrb[0].mxu0
      %v1315 = vadd.f32 %v1001, %v1314
      %v1316 = vpop.f32.mrb[0].mxu0
      %v1317 = vadd.f32 %v1003, %v1316
      %1318 = vmatprep.mubr.f32.mxu0 0.0
      %v1319 = vand.u32 %v329, 4294901760
      %v1320 = vsub.f32 %v329, %v1319
      %1321 = vmatmul.mubr.f32.gmra.mrb[0].mxu0 %v1320
      %v1322 = vpop.f32.mrb[0].mxu0
      %v1323 = vadd.f32 %v1008, %v1322
      %v1324 = vpop.f32.mrb[0].mxu0
      %v1325 = vadd.f32 %v1010, %v1324
      %1326 = vmatprep.mubr.f32.mxu0 0.0
      %v1327 = vand.u32 %v332, 4294901760
      %v1328 = vsub.f32 %v332, %v1327
      %1329 = vmatmul.mubr.f32.gmra.mrb[0].mxu0 %v1328
      %v1330 = vpop.f32.mrb[0].mxu0
      %v1331 = vadd.f32 %v1015, %v1330
      %v1332 = vpop.f32.mrb[0].mxu0
      %v1333 = vadd.f32 %v1017, %v1332
      %1334 = vmatprep.mubr.f32.mxu0 0.0
      %v1335 = vand.u32 %v335, 4294901760
      %v1336 = vsub.f32 %v335, %v1335
      %1337 = vmatmul.mubr.f32.gmra.mrb[0].mxu0 %v1336
      %v1338 = vpop.f32.mrb[0].mxu0
      %v1339 = vadd.f32 %v1022, %v1338
      %v1340 = vpop.f32.mrb[0].mxu0
      %v1341 = vadd.f32 %v1024, %v1340
      %1342 = vmatprep.mubr.f32.mxu0 0.0
      %v1343 = vand.u32 %v338, 4294901760
      %v1344 = vsub.f32 %v338, %v1343
      %1345 = vmatmul.mubr.f32.gmra.mrb[0].mxu0 %v1344
      %v1346 = vpop.f32.mrb[0].mxu0
      %v1347 = vadd.f32 %v1029, %v1346
      %v1348 = vpop.f32.mrb[0].mxu0
      %v1349 = vadd.f32 %v1031, %v1348
      %1350 = vmatprep.mubr.f32.mxu0 0.0
      %v1351 = vand.u32 %v341, 4294901760
      %v1352 = vsub.f32 %v341, %v1351
      %1353 = vmatmul.mubr.f32.gmra.mrb[0].mxu0 %v1352
      %v1354 = vpop.f32.mrb[0].mxu0
      %v1355 = vadd.f32 %v1036, %v1354
      %v1356 = vpop.f32.mrb[0].mxu0
      %v1357 = vadd.f32 %v1038, %v1356
      %1358 = vmatprep.mubr.f32.mxu0 0.0
      %v1359 = vand.u32 %v344, 4294901760
      %v1360 = vsub.f32 %v344, %v1359
      %1361 = vmatmul.mubr.f32.gmra.mrb[0].mxu0 %v1360
      %v1362 = vpop.f32.mrb[0].mxu0
      %v1363 = vadd.f32 %v1043, %v1362
      %v1364 = vpop.f32.mrb[0].mxu0
      %v1365 = vadd.f32 %v1045, %v1364
      %1366 = vmatprep.mubr.f32.mxu0 0.0
      %v1367 = vand.u32 %v347, 4294901760
      %v1368 = vsub.f32 %v347, %v1367
      %1369 = vmatmul.mubr.f32.gmra.mrb[0].mxu0 %v1368
      %v1370 = vpop.f32.mrb[0].mxu0
      %v1371 = vadd.f32 %v1050, %v1370
      %v1372 = vpop.f32.mrb[0].mxu0
      %v1373 = vadd.f32 %v1052, %v1372
      %1374 = vmatprep.mubr.f32.mxu0 0.0
      %v1375 = vand.u32 %v350, 4294901760
      %v1376 = vsub.f32 %v350, %v1375
      %1377 = vmatmul.mubr.f32.gmra.mrb[0].mxu0 %v1376
      %v1378 = vpop.f32.mrb[0].mxu0
      %v1379 = vadd.f32 %v1057, %v1378
      %v1380 = vpop.f32.mrb[0].mxu0
      %v1381 = vadd.f32 %v1059, %v1380
      %1382 = vmatprep.mubr.f32.mxu0 0.0
      %v1383 = vand.u32 %v353, 4294901760
      %v1384 = vsub.f32 %v353, %v1383
      %1385 = vmatmul.mubr.f32.gmra.mrb[0].mxu0 %v1384
      %v1386 = vpop.f32.mrb[0].mxu0
      %v1387 = vadd.f32 %v1064, %v1386
      %v1388 = vpop.f32.mrb[0].mxu0
      %v1389 = vadd.f32 %v1066, %v1388
      %1390 = vmatprep.mubr.f32.mxu0 0.0
      %v1391 = vand.u32 %v356, 4294901760
      %v1392 = vsub.f32 %v356, %v1391
      %1393 = vmatmul.mubr.f32.gmra.mrb[0].mxu0 %v1392
      %v1394 = vpop.f32.mrb[0].mxu0
      %v1395 = vadd.f32 %v1071, %v1394
      %v1396 = vpop.f32.mrb[0].mxu0
      %v1397 = vadd.f32 %v1073, %v1396
      %1398 = vmatprep.mubr.f32.mxu0 0.0
      %v1399 = vand.u32 %v359, 4294901760
      %v1400 = vsub.f32 %v359, %v1399
      %1401 = vmatmul.mubr.f32.gmra.mrb[0].mxu0 %v1400
      %v1402 = vpop.f32.mrb[0].mxu0
      %v1403 = vadd.f32 %v1078, %v1402
      %v1404 = vpop.f32.mrb[0].mxu0
      %v1405 = vadd.f32 %v1080, %v1404
      %1406 = vmatprep.mubr.f32.mxu0 0.0
      %v1407 = vand.u32 %v362, 4294901760
      %v1408 = vsub.f32 %v362, %v1407
      %1409 = vmatmul.mubr.f32.gmra.mrb[0].mxu0 %v1408
      %v1410 = vpop.f32.mrb[0].mxu0
      %v1411 = vadd.f32 %v1085, %v1410
      %v1412 = vpop.f32.mrb[0].mxu0
      %v1413 = vadd.f32 %v1087, %v1412
      %1414 = vmatprep.mubr.f32.mxu0 0.0
      %v1415 = vand.u32 %v365, 4294901760
      %v1416 = vsub.f32 %v365, %v1415
      %1417 = vmatmul.mubr.f32.gmra.mrb[0].mxu0 %v1416
      %v1418 = vpop.f32.mrb[0].mxu0
      %v1419 = vadd.f32 %v1092, %v1418
      %v1420 = vpop.f32.mrb[0].mxu0
      %v1421 = vadd.f32 %v1094, %v1420
      %1422 = vmatprep.mubr.f32.mxu0 0.0
      %v1423 = vand.u32 %v368, 4294901760
      %v1424 = vsub.f32 %v368, %v1423
      %1425 = vmatmul.mubr.f32.gmra.mrb[0].mxu0 %v1424
      %v1426 = vpop.f32.mrb[0].mxu0
      %v1427 = vadd.f32 %v1099, %v1426
      %v1428 = vpop.f32.mrb[0].mxu0
      %v1429 = vadd.f32 %v1101, %v1428
      %1430 = vmatprep.mubr.f32.mxu0 0.0
      %v1431 = vand.u32 %v371, 4294901760
      %v1432 = vsub.f32 %v371, %v1431
      %1433 = vmatmul.mubr.f32.gmra.mrb[0].mxu0 %v1432
      %v1434 = vpop.f32.mrb[0].mxu0
      %v1435 = vadd.f32 %v1106, %v1434
      %v1436 = vpop.f32.mrb[0].mxu0
      %v1437 = vadd.f32 %v1108, %v1436
      %1438 = vdwg.mxu0
      %v1439 = vand.u32 %v261, 4294901760
      %1440 = vmatprep.subr.mxu0 %v1439
      %v1441 = vand.u32 %v260, 4294901760
      %1442 = vmatpush1.msra.mxu0 %v1441
      %v1443 = vand.u32 %v378, 4294901760
      %1444 = vmatprep.subr.mxu0 %v1443
      %v1445 = vand.u32 %v375, 4294901760
      %1446 = vmatpush1.msra.mxu0 %v1445
      %1447 = vmatprep.subr.mxu0 0.0
      %1448 = vmatpush1.msra.mxu0 0.0
      %1449 = vmatprep.subr.mxu0 0.0
      %1450 = vmatpush1.msra.mxu0 0.0
      %1451 = vmatprep.subr.mxu0 0.0
      %1452 = vmatpush1.msra.mxu0 0.0
      %1453 = vmatprep.subr.mxu0 0.0
      %1454 = vmatpush1.msra.mxu0 0.0
      %1455 = vmatprep.subr.mxu0 0.0
      %1456 = vmatpush1.msra.mxu0 0.0
      %1457 = vmatprep.subr.mxu0 0.0
      %1458 = vmatpush1.msra.mxu0 0.0
      %1459 = vmatprep.subr.mxu0 0.0
      %1460 = vmatpush1.msra.mxu0 0.0
      %1461 = vmatprep.subr.mxu0 0.0
      %1462 = vmatpush1.msra.mxu0 0.0
      %1463 = vmatprep.subr.mxu0 0.0
      %1464 = vmatpush1.msra.mxu0 0.0
      %1465 = vmatprep.subr.mxu0 0.0
      %1466 = vmatpush1.msra.mxu0 0.0
      %1467 = vmatprep.subr.mxu0 0.0
      %1468 = vmatpush1.msra.mxu0 0.0
      %1469 = vmatprep.subr.mxu0 0.0
      %1470 = vmatpush1.msra.mxu0 0.0
      %1471 = vmatprep.subr.mxu0 0.0
      %1472 = vmatpush1.msra.mxu0 0.0
      %1473 = vmatprep.subr.mxu0 0.0
      %1474 = vmatpush1.msra.mxu0 0.0
      %1475 = vmatprep.subr.mxu0 0.0
      %1476 = vmatpush1.msra.mxu0 0.0
      %1477 = vmatprep.subr.mxu0 0.0
      %1478 = vmatpush1.msra.mxu0 0.0
      %1479 = vmatprep.subr.mxu0 0.0
      %1480 = vmatpush1.msra.mxu0 0.0
      %1481 = vmatprep.subr.mxu0 0.0
      %1482 = vmatpush1.msra.mxu0 0.0
      %1483 = vmatprep.subr.mxu0 0.0
      %1484 = vmatpush1.msra.mxu0 0.0
      %1485 = vmatprep.subr.mxu0 0.0
      %1486 = vmatpush1.msra.mxu0 0.0
      %1487 = vmatprep.subr.mxu0 0.0
      %1488 = vmatpush1.msra.mxu0 0.0
      %1489 = vmatprep.subr.mxu0 0.0
      %1490 = vmatpush1.msra.mxu0 0.0
      %1491 = vmatprep.subr.mxu0 0.0
      %1492 = vmatpush1.msra.mxu0 0.0
      %1493 = vmatprep.subr.mxu0 0.0
      %1494 = vmatpush1.msra.mxu0 0.0
      %1495 = vmatprep.subr.mxu0 0.0
      %1496 = vmatpush1.msra.mxu0 0.0
      %1497 = vmatprep.subr.mxu0 0.0
      %1498 = vmatpush1.msra.mxu0 0.0
      %1499 = vmatprep.subr.mxu0 0.0
      %1500 = vmatpush1.msra.mxu0 0.0
      %1501 = vmatprep.subr.mxu0 0.0
      %1502 = vmatpush1.msra.mxu0 0.0
      %1503 = vmatprep.subr.mxu0 0.0
      %1504 = vmatpush1.msra.mxu0 0.0
      %1505 = vmatprep.subr.mxu0 0.0
      %1506 = vmatpush1.msra.mxu0 0.0
      %1507 = vmatprep.mubr.f32.mxu0 0.0
      %v1508 = vand.u32 %v278, 4294901760
      %v1509 = vsub.f32 %v278, %v1508
      %v1510 = vand.u32 %v1509, 4294901760
      %1511 = vmatmul.mubr.f32.gmra.mrb[0].mxu0 %v1510
      %v1512 = vpop.f32.mrb[0].mxu0
      %v1513 = vadd.f32 %v1187, %v1512
      %v1514 = vpop.f32.mrb[0].mxu0
      %v1515 = vadd.f32 %v1189, %v1514
      %1516 = vmatprep.mubr.f32.mxu0 0.0
      %v1517 = vand.u32 %v281, 4294901760
      %v1518 = vsub.f32 %v281, %v1517
      %v1519 = vand.u32 %v1518, 4294901760
      %1520 = vmatmul.mubr.f32.gmra.mrb[0].mxu0 %v1519
      %v1521 = vpop.f32.mrb[0].mxu0
      %v1522 = vadd.f32 %v1195, %v1521
      %v1523 = vpop.f32.mrb[0].mxu0
      %v1524 = vadd.f32 %v1197, %v1523
      %1525 = vmatprep.mubr.f32.mxu0 0.0
      %v1526 = vand.u32 %v284, 4294901760
      %v1527 = vsub.f32 %v284, %v1526
      %v1528 = vand.u32 %v1527, 4294901760
      %1529 = vmatmul.mubr.f32.gmra.mrb[0].mxu0 %v1528
      %v1530 = vpop.f32.mrb[0].mxu0
      %v1531 = vadd.f32 %v1203, %v1530
      %v1532 = vpop.f32.mrb[0].mxu0
      %v1533 = vadd.f32 %v1205, %v1532
      %1534 = vmatprep.mubr.f32.mxu0 0.0
      %v1535 = vand.u32 %v287, 4294901760
      %v1536 = vsub.f32 %v287, %v1535
      %v1537 = vand.u32 %v1536, 4294901760
      %1538 = vmatmul.mubr.f32.gmra.mrb[0].mxu0 %v1537
      %v1539 = vpop.f32.mrb[0].mxu0
      %v1540 = vadd.f32 %v1211, %v1539
      %v1541 = vpop.f32.mrb[0].mxu0
      %v1542 = vadd.f32 %v1213, %v1541
      %1543 = vmatprep.mubr.f32.mxu0 0.0
      %v1544 = vand.u32 %v290, 4294901760
      %v1545 = vsub.f32 %v290, %v1544
      %v1546 = vand.u32 %v1545, 4294901760
      %1547 = vmatmul.mubr.f32.gmra.mrb[0].mxu0 %v1546
      %v1548 = vpop.f32.mrb[0].mxu0
      %v1549 = vadd.f32 %v1219, %v1548
      %v1550 = vpop.f32.mrb[0].mxu0
      %v1551 = vadd.f32 %v1221, %v1550
      %1552 = vmatprep.mubr.f32.mxu0 0.0
      %v1553 = vand.u32 %v293, 4294901760
      %v1554 = vsub.f32 %v293, %v1553
      %v1555 = vand.u32 %v1554, 4294901760
      %1556 = vmatmul.mubr.f32.gmra.mrb[0].mxu0 %v1555
      %v1557 = vpop.f32.mrb[0].mxu0
      %v1558 = vadd.f32 %v1227, %v1557
      %v1559 = vpop.f32.mrb[0].mxu0
      %v1560 = vadd.f32 %v1229, %v1559
      %1561 = vmatprep.mubr.f32.mxu0 0.0
      %v1562 = vand.u32 %v296, 4294901760
      %v1563 = vsub.f32 %v296, %v1562
      %v1564 = vand.u32 %v1563, 4294901760
      %1565 = vmatmul.mubr.f32.gmra.mrb[0].mxu0 %v1564
      %v1566 = vpop.f32.mrb[0].mxu0
      %v1567 = vadd.f32 %v1235, %v1566
      %v1568 = vpop.f32.mrb[0].mxu0
      %v1569 = vadd.f32 %v1237, %v1568
      %1570 = vmatprep.mubr.f32.mxu0 0.0
      %v1571 = vand.u32 %v299, 4294901760
      %v1572 = vsub.f32 %v299, %v1571
      %v1573 = vand.u32 %v1572, 4294901760
      %1574 = vmatmul.mubr.f32.gmra.mrb[0].mxu0 %v1573
      %v1575 = vpop.f32.mrb[0].mxu0
      %v1576 = vadd.f32 %v1243, %v1575
      %v1577 = vpop.f32.mrb[0].mxu0
      %v1578 = vadd.f32 %v1245, %v1577
      %1579 = vmatprep.mubr.f32.mxu0 0.0
      %v1580 = vand.u32 %v302, 4294901760
      %v1581 = vsub.f32 %v302, %v1580
      %v1582 = vand.u32 %v1581, 4294901760
      %1583 = vmatmul.mubr.f32.gmra.mrb[0].mxu0 %v1582
      %v1584 = vpop.f32.mrb[0].mxu0
      %v1585 = vadd.f32 %v1251, %v1584
      %v1586 = vpop.f32.mrb[0].mxu0
      %v1587 = vadd.f32 %v1253, %v1586
      %1588 = vmatprep.mubr.f32.mxu0 0.0
      %v1589 = vand.u32 %v305, 4294901760
      %v1590 = vsub.f32 %v305, %v1589
      %v1591 = vand.u32 %v1590, 4294901760
      %1592 = vmatmul.mubr.f32.gmra.mrb[0].mxu0 %v1591
      %v1593 = vpop.f32.mrb[0].mxu0
      %v1594 = vadd.f32 %v1259, %v1593
      %v1595 = vpop.f32.mrb[0].mxu0
      %v1596 = vadd.f32 %v1261, %v1595
      %1597 = vmatprep.mubr.f32.mxu0 0.0
      %v1598 = vand.u32 %v308, 4294901760
      %v1599 = vsub.f32 %v308, %v1598
      %v1600 = vand.u32 %v1599, 4294901760
      %1601 = vmatmul.mubr.f32.gmra.mrb[0].mxu0 %v1600
      %v1602 = vpop.f32.mrb[0].mxu0
      %v1603 = vadd.f32 %v1267, %v1602
      %v1604 = vpop.f32.mrb[0].mxu0
      %v1605 = vadd.f32 %v1269, %v1604
      %1606 = vmatprep.mubr.f32.mxu0 0.0
      %v1607 = vand.u32 %v311, 4294901760
      %v1608 = vsub.f32 %v311, %v1607
      %v1609 = vand.u32 %v1608, 4294901760
      %1610 = vmatmul.mubr.f32.gmra.mrb[0].mxu0 %v1609
      %v1611 = vpop.f32.mrb[0].mxu0
      %v1612 = vadd.f32 %v1275, %v1611
      %v1613 = vpop.f32.mrb[0].mxu0
      %v1614 = vadd.f32 %v1277, %v1613
      %1615 = vmatprep.mubr.f32.mxu0 0.0
      %v1616 = vand.u32 %v314, 4294901760
      %v1617 = vsub.f32 %v314, %v1616
      %v1618 = vand.u32 %v1617, 4294901760
      %1619 = vmatmul.mubr.f32.gmra.mrb[0].mxu0 %v1618
      %v1620 = vpop.f32.mrb[0].mxu0
      %v1621 = vadd.f32 %v1283, %v1620
      %v1622 = vpop.f32.mrb[0].mxu0
      %v1623 = vadd.f32 %v1285, %v1622
      %1624 = vmatprep.mubr.f32.mxu0 0.0
      %v1625 = vand.u32 %v317, 4294901760
      %v1626 = vsub.f32 %v317, %v1625
      %v1627 = vand.u32 %v1626, 4294901760
      %1628 = vmatmul.mubr.f32.gmra.mrb[0].mxu0 %v1627
      %v1629 = vpop.f32.mrb[0].mxu0
      %v1630 = vadd.f32 %v1291, %v1629
      %v1631 = vpop.f32.mrb[0].mxu0
      %v1632 = vadd.f32 %v1293, %v1631
      %1633 = vmatprep.mubr.f32.mxu0 0.0
      %v1634 = vand.u32 %v320, 4294901760
      %v1635 = vsub.f32 %v320, %v1634
      %v1636 = vand.u32 %v1635, 4294901760
      %1637 = vmatmul.mubr.f32.gmra.mrb[0].mxu0 %v1636
      %v1638 = vpop.f32.mrb[0].mxu0
      %v1639 = vadd.f32 %v1299, %v1638
      %v1640 = vpop.f32.mrb[0].mxu0
      %v1641 = vadd.f32 %v1301, %v1640
      %1642 = vmatprep.mubr.f32.mxu0 0.0
      %v1643 = vand.u32 %v323, 4294901760
      %v1644 = vsub.f32 %v323, %v1643
      %v1645 = vand.u32 %v1644, 4294901760
      %1646 = vmatmul.mubr.f32.gmra.mrb[0].mxu0 %v1645
      %v1647 = vpop.f32.mrb[0].mxu0
      %v1648 = vadd.f32 %v1307, %v1647
      %v1649 = vpop.f32.mrb[0].mxu0
      %v1650 = vadd.f32 %v1309, %v1649
      %1651 = vmatprep.mubr.f32.mxu0 0.0
      %v1652 = vand.u32 %v326, 4294901760
      %v1653 = vsub.f32 %v326, %v1652
      %v1654 = vand.u32 %v1653, 4294901760
      %1655 = vmatmul.mubr.f32.gmra.mrb[0].mxu0 %v1654
      %v1656 = vpop.f32.mrb[0].mxu0
      %v1657 = vadd.f32 %v1315, %v1656
      %v1658 = vpop.f32.mrb[0].mxu0
      %v1659 = vadd.f32 %v1317, %v1658
      %1660 = vmatprep.mubr.f32.mxu0 0.0
      %v1661 = vand.u32 %v329, 4294901760
      %v1662 = vsub.f32 %v329, %v1661
      %v1663 = vand.u32 %v1662, 4294901760
      %1664 = vmatmul.mubr.f32.gmra.mrb[0].mxu0 %v1663
      %v1665 = vpop.f32.mrb[0].mxu0
      %v1666 = vadd.f32 %v1323, %v1665
      %v1667 = vpop.f32.mrb[0].mxu0
      %v1668 = vadd.f32 %v1325, %v1667
      %1669 = vmatprep.mubr.f32.mxu0 0.0
      %v1670 = vand.u32 %v332, 4294901760
      %v1671 = vsub.f32 %v332, %v1670
      %v1672 = vand.u32 %v1671, 4294901760
      %1673 = vmatmul.mubr.f32.gmra.mrb[0].mxu0 %v1672
      %v1674 = vpop.f32.mrb[0].mxu0
      %v1675 = vadd.f32 %v1331, %v1674
      %v1676 = vpop.f32.mrb[0].mxu0
      %v1677 = vadd.f32 %v1333, %v1676
      %1678 = vmatprep.mubr.f32.mxu0 0.0
      %v1679 = vand.u32 %v335, 4294901760
      %v1680 = vsub.f32 %v335, %v1679
      %v1681 = vand.u32 %v1680, 4294901760
      %1682 = vmatmul.mubr.f32.gmra.mrb[0].mxu0 %v1681
      %v1683 = vpop.f32.mrb[0].mxu0
      %v1684 = vadd.f32 %v1339, %v1683
      %v1685 = vpop.f32.mrb[0].mxu0
      %v1686 = vadd.f32 %v1341, %v1685
      %1687 = vmatprep.mubr.f32.mxu0 0.0
      %v1688 = vand.u32 %v338, 4294901760
      %v1689 = vsub.f32 %v338, %v1688
      %v1690 = vand.u32 %v1689, 4294901760
      %1691 = vmatmul.mubr.f32.gmra.mrb[0].mxu0 %v1690
      %v1692 = vpop.f32.mrb[0].mxu0
      %v1693 = vadd.f32 %v1347, %v1692
      %v1694 = vpop.f32.mrb[0].mxu0
      %v1695 = vadd.f32 %v1349, %v1694
      %1696 = vmatprep.mubr.f32.mxu0 0.0
      %v1697 = vand.u32 %v341, 4294901760
      %v1698 = vsub.f32 %v341, %v1697
      %v1699 = vand.u32 %v1698, 4294901760
      %1700 = vmatmul.mubr.f32.gmra.mrb[0].mxu0 %v1699
      %v1701 = vpop.f32.mrb[0].mxu0
      %v1702 = vadd.f32 %v1355, %v1701
      %v1703 = vpop.f32.mrb[0].mxu0
      %v1704 = vadd.f32 %v1357, %v1703
      %1705 = vmatprep.mubr.f32.mxu0 0.0
      %v1706 = vand.u32 %v344, 4294901760
      %v1707 = vsub.f32 %v344, %v1706
      %v1708 = vand.u32 %v1707, 4294901760
      %1709 = vmatmul.mubr.f32.gmra.mrb[0].mxu0 %v1708
      %v1710 = vpop.f32.mrb[0].mxu0
      %v1711 = vadd.f32 %v1363, %v1710
      %v1712 = vpop.f32.mrb[0].mxu0
      %v1713 = vadd.f32 %v1365, %v1712
      %1714 = vmatprep.mubr.f32.mxu0 0.0
      %v1715 = vand.u32 %v347, 4294901760
      %v1716 = vsub.f32 %v347, %v1715
      %v1717 = vand.u32 %v1716, 4294901760
      %1718 = vmatmul.mubr.f32.gmra.mrb[0].mxu0 %v1717
      %v1719 = vpop.f32.mrb[0].mxu0
      %v1720 = vadd.f32 %v1371, %v1719
      %v1721 = vpop.f32.mrb[0].mxu0
      %v1722 = vadd.f32 %v1373, %v1721
      %1723 = vmatprep.mubr.f32.mxu0 0.0
      %v1724 = vand.u32 %v350, 4294901760
      %v1725 = vsub.f32 %v350, %v1724
      %v1726 = vand.u32 %v1725, 4294901760
      %1727 = vmatmul.mubr.f32.gmra.mrb[0].mxu0 %v1726
      %v1728 = vpop.f32.mrb[0].mxu0
      %v1729 = vadd.f32 %v1379, %v1728
      %v1730 = vpop.f32.mrb[0].mxu0
      %v1731 = vadd.f32 %v1381, %v1730
      %1732 = vmatprep.mubr.f32.mxu0 0.0
      %v1733 = vand.u32 %v353, 4294901760
      %v1734 = vsub.f32 %v353, %v1733
      %v1735 = vand.u32 %v1734, 4294901760
      %1736 = vmatmul.mubr.f32.gmra.mrb[0].mxu0 %v1735
      %v1737 = vpop.f32.mrb[0].mxu0
      %v1738 = vadd.f32 %v1387, %v1737
      %v1739 = vpop.f32.mrb[0].mxu0
      %v1740 = vadd.f32 %v1389, %v1739
      %1741 = vmatprep.mubr.f32.mxu0 0.0
      %v1742 = vand.u32 %v356, 4294901760
      %v1743 = vsub.f32 %v356, %v1742
      %v1744 = vand.u32 %v1743, 4294901760
      %1745 = vmatmul.mubr.f32.gmra.mrb[0].mxu0 %v1744
      %v1746 = vpop.f32.mrb[0].mxu0
      %v1747 = vadd.f32 %v1395, %v1746
      %v1748 = vpop.f32.mrb[0].mxu0
      %v1749 = vadd.f32 %v1397, %v1748
      %1750 = vmatprep.mubr.f32.mxu0 0.0
      %v1751 = vand.u32 %v359, 4294901760
      %v1752 = vsub.f32 %v359, %v1751
      %v1753 = vand.u32 %v1752, 4294901760
      %1754 = vmatmul.mubr.f32.gmra.mrb[0].mxu0 %v1753
      %v1755 = vpop.f32.mrb[0].mxu0
      %v1756 = vadd.f32 %v1403, %v1755
      %v1757 = vpop.f32.mrb[0].mxu0
      %v1758 = vadd.f32 %v1405, %v1757
      %1759 = vmatprep.mubr.f32.mxu0 0.0
      %v1760 = vand.u32 %v362, 4294901760
      %v1761 = vsub.f32 %v362, %v1760
      %v1762 = vand.u32 %v1761, 4294901760
      %1763 = vmatmul.mubr.f32.gmra.mrb[0].mxu0 %v1762
      %v1764 = vpop.f32.mrb[0].mxu0
      %v1765 = vadd.f32 %v1411, %v1764
      %v1766 = vpop.f32.mrb[0].mxu0
      %v1767 = vadd.f32 %v1413, %v1766
      %1768 = vmatprep.mubr.f32.mxu0 0.0
      %v1769 = vand.u32 %v365, 4294901760
      %v1770 = vsub.f32 %v365, %v1769
      %v1771 = vand.u32 %v1770, 4294901760
      %1772 = vmatmul.mubr.f32.gmra.mrb[0].mxu0 %v1771
      %v1773 = vpop.f32.mrb[0].mxu0
      %v1774 = vadd.f32 %v1419, %v1773
      %v1775 = vpop.f32.mrb[0].mxu0
      %v1776 = vadd.f32 %v1421, %v1775
      %1777 = vmatprep.mubr.f32.mxu0 0.0
      %v1778 = vand.u32 %v368, 4294901760
      %v1779 = vsub.f32 %v368, %v1778
      %v1780 = vand.u32 %v1779, 4294901760
      %1781 = vmatmul.mubr.f32.gmra.mrb[0].mxu0 %v1780
      %v1782 = vpop.f32.mrb[0].mxu0
      %v1783 = vadd.f32 %v1427, %v1782
      %v1784 = vpop.f32.mrb[0].mxu0
      %v1785 = vadd.f32 %v1429, %v1784
      %1786 = vmatprep.mubr.f32.mxu0 0.0
      %v1787 = vand.u32 %v371, 4294901760
      %v1788 = vsub.f32 %v371, %v1787
      %v1789 = vand.u32 %v1788, 4294901760
      %1790 = vmatmul.mubr.f32.gmra.mrb[0].mxu0 %v1789
      %v1791 = vpop.f32.mrb[0].mxu0
      %v1792 = vadd.f32 %v1435, %v1791
      %v1793 = vpop.f32.mrb[0].mxu0
      %v1794 = vadd.f32 %v1437, %v1793
      %1795 = vdwg.mxu0
      %v1796 = vand.u32 %v261, 4294901760
      %v1797 = vsub.f32 %v261, %v1796
      %v1798 = vand.u32 %v1797, 4294901760
      %1799 = vmatprep.subr.mxu0 %v1798
      %v1800 = vand.u32 %v260, 4294901760
      %v1801 = vsub.f32 %v260, %v1800
      %v1802 = vand.u32 %v1801, 4294901760
      %1803 = vmatpush1.msra.mxu0 %v1802
      %v1804 = vand.u32 %v378, 4294901760
      %v1805 = vsub.f32 %v378, %v1804
      %v1806 = vand.u32 %v1805, 4294901760
      %1807 = vmatprep.subr.mxu0 %v1806
      %v1808 = vand.u32 %v375, 4294901760
      %v1809 = vsub.f32 %v375, %v1808
      %v1810 = vand.u32 %v1809, 4294901760
      %1811 = vmatpush1.msra.mxu0 %v1810
      %1812 = vmatprep.subr.mxu0 0.0
      %1813 = vmatpush1.msra.mxu0 0.0
      %1814 = vmatprep.subr.mxu0 0.0
      %1815 = vmatpush1.msra.mxu0 0.0
      %1816 = vmatprep.subr.mxu0 0.0
      %1817 = vmatpush1.msra.mxu0 0.0
      %1818 = vmatprep.subr.mxu0 0.0
      %1819 = vmatpush1.msra.mxu0 0.0
      %1820 = vmatprep.subr.mxu0 0.0
      %1821 = vmatpush1.msra.mxu0 0.0
      %1822 = vmatprep.subr.mxu0 0.0
      %1823 = vmatpush1.msra.mxu0 0.0
      %1824 = vmatprep.subr.mxu0 0.0
      %1825 = vmatpush1.msra.mxu0 0.0
      %1826 = vmatprep.subr.mxu0 0.0
      %1827 = vmatpush1.msra.mxu0 0.0
      %1828 = vmatprep.subr.mxu0 0.0
      %1829 = vmatpush1.msra.mxu0 0.0
      %1830 = vmatprep.subr.mxu0 0.0
      %1831 = vmatpush1.msra.mxu0 0.0
      %1832 = vmatprep.subr.mxu0 0.0
      %1833 = vmatpush1.msra.mxu0 0.0
      %1834 = vmatprep.subr.mxu0 0.0
      %1835 = vmatpush1.msra.mxu0 0.0
      %1836 = vmatprep.subr.mxu0 0.0
      %1837 = vmatpush1.msra.mxu0 0.0
      %1838 = vmatprep.subr.mxu0 0.0
      %1839 = vmatpush1.msra.mxu0 0.0
      %1840 = vmatprep.subr.mxu0 0.0
      %1841 = vmatpush1.msra.mxu0 0.0
      %1842 = vmatprep.subr.mxu0 0.0
      %1843 = vmatpush1.msra.mxu0 0.0
      %1844 = vmatprep.subr.mxu0 0.0
      %1845 = vmatpush1.msra.mxu0 0.0
      %1846 = vmatprep.subr.mxu0 0.0
      %1847 = vmatpush1.msra.mxu0 0.0
      %1848 = vmatprep.subr.mxu0 0.0
      %1849 = vmatpush1.msra.mxu0 0.0
      %1850 = vmatprep.subr.mxu0 0.0
      %1851 = vmatpush1.msra.mxu0 0.0
      %1852 = vmatprep.subr.mxu0 0.0
      %1853 = vmatpush1.msra.mxu0 0.0
      %1854 = vmatprep.subr.mxu0 0.0
      %1855 = vmatpush1.msra.mxu0 0.0
      %1856 = vmatprep.subr.mxu0 0.0
      %1857 = vmatpush1.msra.mxu0 0.0
      %1858 = vmatprep.subr.mxu0 0.0
      %1859 = vmatpush1.msra.mxu0 0.0
      %1860 = vmatprep.subr.mxu0 0.0
      %1861 = vmatpush1.msra.mxu0 0.0
      %1862 = vmatprep.subr.mxu0 0.0
      %1863 = vmatpush1.msra.mxu0 0.0
      %1864 = vmatprep.subr.mxu0 0.0
      %1865 = vmatpush1.msra.mxu0 0.0
      %1866 = vmatprep.subr.mxu0 0.0
      %1867 = vmatpush1.msra.mxu0 0.0
      %1868 = vmatprep.subr.mxu0 0.0
      %1869 = vmatpush1.msra.mxu0 0.0
      %1870 = vmatprep.subr.mxu0 0.0
      %1871 = vmatpush1.msra.mxu0 0.0
      %1872 = vmatprep.mubr.f32.mxu0 0.0
      %v1873 = vand.u32 %v278, 4294901760
      %1874 = vmatmul.mubr.f32.gmra.mrb[0].mxu0 %v1873
      %v1875 = vpop.f32.mrb[0].mxu0
      %v1876 = vadd.f32 %v1513, %v1875
      %v1877 = vpop.f32.mrb[0].mxu0
      %v1878 = vadd.f32 %v1515, %v1877
      %1879 = vmatprep.mubr.f32.mxu0 0.0
      %v1880 = vand.u32 %v281, 4294901760
      %1881 = vmatmul.mubr.f32.gmra.mrb[0].mxu0 %v1880
      %v1882 = vpop.f32.mrb[0].mxu0
      %v1883 = vadd.f32 %v1522, %v1882
      %v1884 = vpop.f32.mrb[0].mxu0
      %v1885 = vadd.f32 %v1524, %v1884
      %1886 = vmatprep.mubr.f32.mxu0 0.0
      %v1887 = vand.u32 %v284, 4294901760
      %1888 = vmatmul.mubr.f32.gmra.mrb[0].mxu0 %v1887
      %v1889 = vpop.f32.mrb[0].mxu0
      %v1890 = vadd.f32 %v1531, %v1889
      %v1891 = vpop.f32.mrb[0].mxu0
      %v1892 = vadd.f32 %v1533, %v1891
      %1893 = vmatprep.mubr.f32.mxu0 0.0
      %v1894 = vand.u32 %v287, 4294901760
      %1895 = vmatmul.mubr.f32.gmra.mrb[0].mxu0 %v1894
      %v1896 = vpop.f32.mrb[0].mxu0
      %v1897 = vadd.f32 %v1540, %v1896
      %v1898 = vpop.f32.mrb[0].mxu0
      %v1899 = vadd.f32 %v1542, %v1898
      %1900 = vmatprep.mubr.f32.mxu0 0.0
      %v1901 = vand.u32 %v290, 4294901760
      %1902 = vmatmul.mubr.f32.gmra.mrb[0].mxu0 %v1901
      %v1903 = vpop.f32.mrb[0].mxu0
      %v1904 = vadd.f32 %v1549, %v1903
      %v1905 = vpop.f32.mrb[0].mxu0
      %v1906 = vadd.f32 %v1551, %v1905
      %1907 = vmatprep.mubr.f32.mxu0 0.0
      %v1908 = vand.u32 %v293, 4294901760
      %1909 = vmatmul.mubr.f32.gmra.mrb[0].mxu0 %v1908
      %v1910 = vpop.f32.mrb[0].mxu0
      %v1911 = vadd.f32 %v1558, %v1910
      %v1912 = vpop.f32.mrb[0].mxu0
      %v1913 = vadd.f32 %v1560, %v1912
      %1914 = vmatprep.mubr.f32.mxu0 0.0
      %v1915 = vand.u32 %v296, 4294901760
      %1916 = vmatmul.mubr.f32.gmra.mrb[0].mxu0 %v1915
      %v1917 = vpop.f32.mrb[0].mxu0
      %v1918 = vadd.f32 %v1567, %v1917
      %v1919 = vpop.f32.mrb[0].mxu0
      %v1920 = vadd.f32 %v1569, %v1919
      %1921 = vmatprep.mubr.f32.mxu0 0.0
      %v1922 = vand.u32 %v299, 4294901760
      %1923 = vmatmul.mubr.f32.gmra.mrb[0].mxu0 %v1922
      %v1924 = vpop.f32.mrb[0].mxu0
      %v1925 = vadd.f32 %v1576, %v1924
      %v1926 = vpop.f32.mrb[0].mxu0
      %v1927 = vadd.f32 %v1578, %v1926
      %1928 = vmatprep.mubr.f32.mxu0 0.0
      %v1929 = vand.u32 %v302, 4294901760
      %1930 = vmatmul.mubr.f32.gmra.mrb[0].mxu0 %v1929
      %v1931 = vpop.f32.mrb[0].mxu0
      %v1932 = vadd.f32 %v1585, %v1931
      %v1933 = vpop.f32.mrb[0].mxu0
      %v1934 = vadd.f32 %v1587, %v1933
      %1935 = vmatprep.mubr.f32.mxu0 0.0
      %v1936 = vand.u32 %v305, 4294901760
      %1937 = vmatmul.mubr.f32.gmra.mrb[0].mxu0 %v1936
      %v1938 = vpop.f32.mrb[0].mxu0
      %v1939 = vadd.f32 %v1594, %v1938
      %v1940 = vpop.f32.mrb[0].mxu0
      %v1941 = vadd.f32 %v1596, %v1940
      %1942 = vmatprep.mubr.f32.mxu0 0.0
      %v1943 = vand.u32 %v308, 4294901760
      %1944 = vmatmul.mubr.f32.gmra.mrb[0].mxu0 %v1943
      %v1945 = vpop.f32.mrb[0].mxu0
      %v1946 = vadd.f32 %v1603, %v1945
      %v1947 = vpop.f32.mrb[0].mxu0
      %v1948 = vadd.f32 %v1605, %v1947
      %1949 = vmatprep.mubr.f32.mxu0 0.0
      %v1950 = vand.u32 %v311, 4294901760
      %1951 = vmatmul.mubr.f32.gmra.mrb[0].mxu0 %v1950
      %v1952 = vpop.f32.mrb[0].mxu0
      %v1953 = vadd.f32 %v1612, %v1952
      %v1954 = vpop.f32.mrb[0].mxu0
      %v1955 = vadd.f32 %v1614, %v1954
      %1956 = vmatprep.mubr.f32.mxu0 0.0
      %v1957 = vand.u32 %v314, 4294901760
      %1958 = vmatmul.mubr.f32.gmra.mrb[0].mxu0 %v1957
      %v1959 = vpop.f32.mrb[0].mxu0
      %v1960 = vadd.f32 %v1621, %v1959
      %v1961 = vpop.f32.mrb[0].mxu0
      %v1962 = vadd.f32 %v1623, %v1961
      %1963 = vmatprep.mubr.f32.mxu0 0.0
      %v1964 = vand.u32 %v317, 4294901760
      %1965 = vmatmul.mubr.f32.gmra.mrb[0].mxu0 %v1964
      %v1966 = vpop.f32.mrb[0].mxu0
      %v1967 = vadd.f32 %v1630, %v1966
      %v1968 = vpop.f32.mrb[0].mxu0
      %v1969 = vadd.f32 %v1632, %v1968
      %1970 = vmatprep.mubr.f32.mxu0 0.0
      %v1971 = vand.u32 %v320, 4294901760
      %1972 = vmatmul.mubr.f32.gmra.mrb[0].mxu0 %v1971
      %v1973 = vpop.f32.mrb[0].mxu0
      %v1974 = vadd.f32 %v1639, %v1973
      %v1975 = vpop.f32.mrb[0].mxu0
      %v1976 = vadd.f32 %v1641, %v1975
      %1977 = vmatprep.mubr.f32.mxu0 0.0
      %v1978 = vand.u32 %v323, 4294901760
      %1979 = vmatmul.mubr.f32.gmra.mrb[0].mxu0 %v1978
      %v1980 = vpop.f32.mrb[0].mxu0
      %v1981 = vadd.f32 %v1648, %v1980
      %v1982 = vpop.f32.mrb[0].mxu0
      %v1983 = vadd.f32 %v1650, %v1982
      %1984 = vmatprep.mubr.f32.mxu0 0.0
      %v1985 = vand.u32 %v326, 4294901760
      %1986 = vmatmul.mubr.f32.gmra.mrb[0].mxu0 %v1985
      %v1987 = vpop.f32.mrb[0].mxu0
      %v1988 = vadd.f32 %v1657, %v1987
      %v1989 = vpop.f32.mrb[0].mxu0
      %v1990 = vadd.f32 %v1659, %v1989
      %1991 = vmatprep.mubr.f32.mxu0 0.0
      %v1992 = vand.u32 %v329, 4294901760
      %1993 = vmatmul.mubr.f32.gmra.mrb[0].mxu0 %v1992
      %v1994 = vpop.f32.mrb[0].mxu0
      %v1995 = vadd.f32 %v1666, %v1994
      %v1996 = vpop.f32.mrb[0].mxu0
      %v1997 = vadd.f32 %v1668, %v1996
      %1998 = vmatprep.mubr.f32.mxu0 0.0
      %v1999 = vand.u32 %v332, 4294901760
      %2000 = vmatmul.mubr.f32.gmra.mrb[0].mxu0 %v1999
      %v2001 = vpop.f32.mrb[0].mxu0
      %v2002 = vadd.f32 %v1675, %v2001
      %v2003 = vpop.f32.mrb[0].mxu0
      %v2004 = vadd.f32 %v1677, %v2003
      %2005 = vmatprep.mubr.f32.mxu0 0.0
      %v2006 = vand.u32 %v335, 4294901760
      %2007 = vmatmul.mubr.f32.gmra.mrb[0].mxu0 %v2006
      %v2008 = vpop.f32.mrb[0].mxu0
      %v2009 = vadd.f32 %v1684, %v2008
      %v2010 = vpop.f32.mrb[0].mxu0
      %v2011 = vadd.f32 %v1686, %v2010
      %2012 = vmatprep.mubr.f32.mxu0 0.0
      %v2013 = vand.u32 %v338, 4294901760
      %2014 = vmatmul.mubr.f32.gmra.mrb[0].mxu0 %v2013
      %v2015 = vpop.f32.mrb[0].mxu0
      %v2016 = vadd.f32 %v1693, %v2015
      %v2017 = vpop.f32.mrb[0].mxu0
      %v2018 = vadd.f32 %v1695, %v2017
      %2019 = vmatprep.mubr.f32.mxu0 0.0
      %v2020 = vand.u32 %v341, 4294901760
      %2021 = vmatmul.mubr.f32.gmra.mrb[0].mxu0 %v2020
      %v2022 = vpop.f32.mrb[0].mxu0
      %v2023 = vadd.f32 %v1702, %v2022
      %v2024 = vpop.f32.mrb[0].mxu0
      %v2025 = vadd.f32 %v1704, %v2024
      %2026 = vmatprep.mubr.f32.mxu0 0.0
      %v2027 = vand.u32 %v344, 4294901760
      %2028 = vmatmul.mubr.f32.gmra.mrb[0].mxu0 %v2027
      %v2029 = vpop.f32.mrb[0].mxu0
      %v2030 = vadd.f32 %v1711, %v2029
      %v2031 = vpop.f32.mrb[0].mxu0
      %v2032 = vadd.f32 %v1713, %v2031
      %2033 = vmatprep.mubr.f32.mxu0 0.0
      %v2034 = vand.u32 %v347, 4294901760
      %2035 = vmatmul.mubr.f32.gmra.mrb[0].mxu0 %v2034
      %v2036 = vpop.f32.mrb[0].mxu0
      %v2037 = vadd.f32 %v1720, %v2036
      %v2038 = vpop.f32.mrb[0].mxu0
      %v2039 = vadd.f32 %v1722, %v2038
      %2040 = vmatprep.mubr.f32.mxu0 0.0
      %v2041 = vand.u32 %v350, 4294901760
      %2042 = vmatmul.mubr.f32.gmra.mrb[0].mxu0 %v2041
      %v2043 = vpop.f32.mrb[0].mxu0
      %v2044 = vadd.f32 %v1729, %v2043
      %v2045 = vpop.f32.mrb[0].mxu0
      %v2046 = vadd.f32 %v1731, %v2045
      %2047 = vmatprep.mubr.f32.mxu0 0.0
      %v2048 = vand.u32 %v353, 4294901760
      %2049 = vmatmul.mubr.f32.gmra.mrb[0].mxu0 %v2048
      %v2050 = vpop.f32.mrb[0].mxu0
      %v2051 = vadd.f32 %v1738, %v2050
      %v2052 = vpop.f32.mrb[0].mxu0
      %v2053 = vadd.f32 %v1740, %v2052
      %2054 = vmatprep.mubr.f32.mxu0 0.0
      %v2055 = vand.u32 %v356, 4294901760
      %2056 = vmatmul.mubr.f32.gmra.mrb[0].mxu0 %v2055
      %v2057 = vpop.f32.mrb[0].mxu0
      %v2058 = vadd.f32 %v1747, %v2057
      %v2059 = vpop.f32.mrb[0].mxu0
      %v2060 = vadd.f32 %v1749, %v2059
      %2061 = vmatprep.mubr.f32.mxu0 0.0
      %v2062 = vand.u32 %v359, 4294901760
      %2063 = vmatmul.mubr.f32.gmra.mrb[0].mxu0 %v2062
      %v2064 = vpop.f32.mrb[0].mxu0
      %v2065 = vadd.f32 %v1756, %v2064
      %v2066 = vpop.f32.mrb[0].mxu0
      %v2067 = vadd.f32 %v1758, %v2066
      %2068 = vmatprep.mubr.f32.mxu0 0.0
      %v2069 = vand.u32 %v362, 4294901760
      %2070 = vmatmul.mubr.f32.gmra.mrb[0].mxu0 %v2069
      %v2071 = vpop.f32.mrb[0].mxu0
      %v2072 = vadd.f32 %v1765, %v2071
      %v2073 = vpop.f32.mrb[0].mxu0
      %v2074 = vadd.f32 %v1767, %v2073
      %2075 = vmatprep.mubr.f32.mxu0 0.0
      %v2076 = vand.u32 %v365, 4294901760
      %2077 = vmatmul.mubr.f32.gmra.mrb[0].mxu0 %v2076
      %v2078 = vpop.f32.mrb[0].mxu0
      %v2079 = vadd.f32 %v1774, %v2078
      %v2080 = vpop.f32.mrb[0].mxu0
      %v2081 = vadd.f32 %v1776, %v2080
      %2082 = vmatprep.mubr.f32.mxu0 0.0
      %v2083 = vand.u32 %v368, 4294901760
      %2084 = vmatmul.mubr.f32.gmra.mrb[0].mxu0 %v2083
      %v2085 = vpop.f32.mrb[0].mxu0
      %v2086 = vadd.f32 %v1783, %v2085
      %v2087 = vpop.f32.mrb[0].mxu0
      %v2088 = vadd.f32 %v1785, %v2087
      %2089 = vmatprep.mubr.f32.mxu0 0.0
      %v2090 = vand.u32 %v371, 4294901760
      %2091 = vmatmul.mubr.f32.gmra.mrb[0].mxu0 %v2090
      %v2092 = vpop.f32.mrb[0].mxu0
      %v2093 = vadd.f32 %v1792, %v2092
      %v2094 = vpop.f32.mrb[0].mxu0
      %v2095 = vadd.f32 %v1794, %v2094
      %2096 = vdwg.mxu0
      %v2097 = vand.u32 %v261, 4294901760
      %2098 = vmatprep.subr.mxu0 %v2097
      %v2099 = vand.u32 %v260, 4294901760
      %2100 = vmatpush1.msra.mxu0 %v2099
      %v2101 = vand.u32 %v378, 4294901760
      %2102 = vmatprep.subr.mxu0 %v2101
      %v2103 = vand.u32 %v375, 4294901760
      %2104 = vmatpush1.msra.mxu0 %v2103
      %2105 = vmatprep.subr.mxu0 0.0
      %2106 = vmatpush1.msra.mxu0 0.0
      %2107 = vmatprep.subr.mxu0 0.0
      %2108 = vmatpush1.msra.mxu0 0.0
      %2109 = vmatprep.subr.mxu0 0.0
      %2110 = vmatpush1.msra.mxu0 0.0
      %2111 = vmatprep.subr.mxu0 0.0
      %2112 = vmatpush1.msra.mxu0 0.0
      %2113 = vmatprep.subr.mxu0 0.0
      %2114 = vmatpush1.msra.mxu0 0.0
      %2115 = vmatprep.subr.mxu0 0.0
      %2116 = vmatpush1.msra.mxu0 0.0
      %2117 = vmatprep.subr.mxu0 0.0
      %2118 = vmatpush1.msra.mxu0 0.0
      %2119 = vmatprep.subr.mxu0 0.0
      %2120 = vmatpush1.msra.mxu0 0.0
      %2121 = vmatprep.subr.mxu0 0.0
      %2122 = vmatpush1.msra.mxu0 0.0
      %2123 = vmatprep.subr.mxu0 0.0
      %2124 = vmatpush1.msra.mxu0 0.0
      %2125 = vmatprep.subr.mxu0 0.0
      %2126 = vmatpush1.msra.mxu0 0.0
      %2127 = vmatprep.subr.mxu0 0.0
      %2128 = vmatpush1.msra.mxu0 0.0
      %2129 = vmatprep.subr.mxu0 0.0
      %2130 = vmatpush1.msra.mxu0 0.0
      %2131 = vmatprep.subr.mxu0 0.0
      %2132 = vmatpush1.msra.mxu0 0.0
      %2133 = vmatprep.subr.mxu0 0.0
      %2134 = vmatpush1.msra.mxu0 0.0
      %2135 = vmatprep.subr.mxu0 0.0
      %2136 = vmatpush1.msra.mxu0 0.0
      %2137 = vmatprep.subr.mxu0 0.0
      %2138 = vmatpush1.msra.mxu0 0.0
      %2139 = vmatprep.subr.mxu0 0.0
      %2140 = vmatpush1.msra.mxu0 0.0
      %2141 = vmatprep.subr.mxu0 0.0
      %2142 = vmatpush1.msra.mxu0 0.0
      %2143 = vmatprep.subr.mxu0 0.0
      %2144 = vmatpush1.msra.mxu0 0.0
      %2145 = vmatprep.subr.mxu0 0.0
      %2146 = vmatpush1.msra.mxu0 0.0
      %2147 = vmatprep.subr.mxu0 0.0
      %2148 = vmatpush1.msra.mxu0 0.0
      %2149 = vmatprep.subr.mxu0 0.0
      %2150 = vmatpush1.msra.mxu0 0.0
      %2151 = vmatprep.subr.mxu0 0.0
      %2152 = vmatpush1.msra.mxu0 0.0
      %2153 = vmatprep.subr.mxu0 0.0
      %2154 = vmatpush1.msra.mxu0 0.0
      %2155 = vmatprep.subr.mxu0 0.0
      %2156 = vmatpush1.msra.mxu0 0.0
      %2157 = vmatprep.subr.mxu0 0.0
      %2158 = vmatpush1.msra.mxu0 0.0
      %2159 = vmatprep.subr.mxu0 0.0
      %2160 = vmatpush1.msra.mxu0 0.0
      %2161 = vmatprep.subr.mxu0 0.0
      %2162 = vmatpush1.msra.mxu0 0.0
      %2163 = vmatprep.subr.mxu0 0.0
      %2164 = vmatpush1.msra.mxu0 0.0
      %2165 = vmatprep.mubr.f32.mxu0 0.0
      %v2166 = vand.u32 %v278, 4294901760
      %2167 = vmatmul.mubr.f32.gmra.mrb[0].mxu0 %v2166
      %v2168 = vpop.f32.mrb[0].mxu0
      %v2169 = vadd.f32 %v1876, %v2168
      %v2170 = vpop.f32.mrb[0].mxu0
      %v2171 = vadd.f32 %v1878, %v2170
      %2172 = vmatprep.mubr.f32.mxu0 0.0
      %v2173 = vand.u32 %v281, 4294901760
      %2174 = vmatmul.mubr.f32.gmra.mrb[0].mxu0 %v2173
      %v2175 = vpop.f32.mrb[0].mxu0
      %v2176 = vadd.f32 %v1883, %v2175
      %v2177 = vpop.f32.mrb[0].mxu0
      %v2178 = vadd.f32 %v1885, %v2177
      %2179 = vmatprep.mubr.f32.mxu0 0.0
      %v2180 = vand.u32 %v284, 4294901760
      %2181 = vmatmul.mubr.f32.gmra.mrb[0].mxu0 %v2180
      %v2182 = vpop.f32.mrb[0].mxu0
      %v2183 = vadd.f32 %v1890, %v2182
      %v2184 = vpop.f32.mrb[0].mxu0
      %v2185 = vadd.f32 %v1892, %v2184
      %2186 = vmatprep.mubr.f32.mxu0 0.0
      %v2187 = vand.u32 %v287, 4294901760
      %2188 = vmatmul.mubr.f32.gmra.mrb[0].mxu0 %v2187
      %v2189 = vpop.f32.mrb[0].mxu0
      %v2190 = vadd.f32 %v1897, %v2189
      %v2191 = vpop.f32.mrb[0].mxu0
      %v2192 = vadd.f32 %v1899, %v2191
      %2193 = vmatprep.mubr.f32.mxu0 0.0
      %v2194 = vand.u32 %v290, 4294901760
      %2195 = vmatmul.mubr.f32.gmra.mrb[0].mxu0 %v2194
      %v2196 = vpop.f32.mrb[0].mxu0
      %v2197 = vadd.f32 %v1904, %v2196
      %v2198 = vpop.f32.mrb[0].mxu0
      %v2199 = vadd.f32 %v1906, %v2198
      %2200 = vmatprep.mubr.f32.mxu0 0.0
      %v2201 = vand.u32 %v293, 4294901760
      %2202 = vmatmul.mubr.f32.gmra.mrb[0].mxu0 %v2201
      %v2203 = vpop.f32.mrb[0].mxu0
      %v2204 = vadd.f32 %v1911, %v2203
      %v2205 = vpop.f32.mrb[0].mxu0
      %v2206 = vadd.f32 %v1913, %v2205
      %2207 = vmatprep.mubr.f32.mxu0 0.0
      %v2208 = vand.u32 %v296, 4294901760
      %2209 = vmatmul.mubr.f32.gmra.mrb[0].mxu0 %v2208
      %v2210 = vpop.f32.mrb[0].mxu0
      %v2211 = vadd.f32 %v1918, %v2210
      %v2212 = vpop.f32.mrb[0].mxu0
      %v2213 = vadd.f32 %v1920, %v2212
      %2214 = vmatprep.mubr.f32.mxu0 0.0
      %v2215 = vand.u32 %v299, 4294901760
      %2216 = vmatmul.mubr.f32.gmra.mrb[0].mxu0 %v2215
      %v2217 = vpop.f32.mrb[0].mxu0
      %v2218 = vadd.f32 %v1925, %v2217
      %v2219 = vpop.f32.mrb[0].mxu0
      %v2220 = vadd.f32 %v1927, %v2219
      %2221 = vmatprep.mubr.f32.mxu0 0.0
      %v2222 = vand.u32 %v302, 4294901760
      %2223 = vmatmul.mubr.f32.gmra.mrb[0].mxu0 %v2222
      %v2224 = vpop.f32.mrb[0].mxu0
      %v2225 = vadd.f32 %v1932, %v2224
      %v2226 = vpop.f32.mrb[0].mxu0
      %v2227 = vadd.f32 %v1934, %v2226
      %2228 = vmatprep.mubr.f32.mxu0 0.0
      %v2229 = vand.u32 %v305, 4294901760
      %2230 = vmatmul.mubr.f32.gmra.mrb[0].mxu0 %v2229
      %v2231 = vpop.f32.mrb[0].mxu0
      %v2232 = vadd.f32 %v1939, %v2231
      %v2233 = vpop.f32.mrb[0].mxu0
      %v2234 = vadd.f32 %v1941, %v2233
      %2235 = vmatprep.mubr.f32.mxu0 0.0
      %v2236 = vand.u32 %v308, 4294901760
      %2237 = vmatmul.mubr.f32.gmra.mrb[0].mxu0 %v2236
      %v2238 = vpop.f32.mrb[0].mxu0
      %v2239 = vadd.f32 %v1946, %v2238
      %v2240 = vpop.f32.mrb[0].mxu0
      %v2241 = vadd.f32 %v1948, %v2240
      %2242 = vmatprep.mubr.f32.mxu0 0.0
      %v2243 = vand.u32 %v311, 4294901760
      %2244 = vmatmul.mubr.f32.gmra.mrb[0].mxu0 %v2243
      %v2245 = vpop.f32.mrb[0].mxu0
      %v2246 = vadd.f32 %v1953, %v2245
      %v2247 = vpop.f32.mrb[0].mxu0
      %v2248 = vadd.f32 %v1955, %v2247
      %2249 = vmatprep.mubr.f32.mxu0 0.0
      %v2250 = vand.u32 %v314, 4294901760
      %2251 = vmatmul.mubr.f32.gmra.mrb[0].mxu0 %v2250
      %v2252 = vpop.f32.mrb[0].mxu0
      %v2253 = vadd.f32 %v1960, %v2252
      %v2254 = vpop.f32.mrb[0].mxu0
      %v2255 = vadd.f32 %v1962, %v2254
      %2256 = vmatprep.mubr.f32.mxu0 0.0
      %v2257 = vand.u32 %v317, 4294901760
      %2258 = vmatmul.mubr.f32.gmra.mrb[0].mxu0 %v2257
      %v2259 = vpop.f32.mrb[0].mxu0
      %v2260 = vadd.f32 %v1967, %v2259
      %v2261 = vpop.f32.mrb[0].mxu0
      %v2262 = vadd.f32 %v1969, %v2261
      %2263 = vmatprep.mubr.f32.mxu0 0.0
      %v2264 = vand.u32 %v320, 4294901760
      %2265 = vmatmul.mubr.f32.gmra.mrb[0].mxu0 %v2264
      %v2266 = vpop.f32.mrb[0].mxu0
      %v2267 = vadd.f32 %v1974, %v2266
      %v2268 = vpop.f32.mrb[0].mxu0
      %v2269 = vadd.f32 %v1976, %v2268
      %2270 = vmatprep.mubr.f32.mxu0 0.0
      %v2271 = vand.u32 %v323, 4294901760
      %2272 = vmatmul.mubr.f32.gmra.mrb[0].mxu0 %v2271
      %v2273 = vpop.f32.mrb[0].mxu0
      %v2274 = vadd.f32 %v1981, %v2273
      %v2275 = vpop.f32.mrb[0].mxu0
      %v2276 = vadd.f32 %v1983, %v2275
      %2277 = vmatprep.mubr.f32.mxu0 0.0
      %v2278 = vand.u32 %v326, 4294901760
      %2279 = vmatmul.mubr.f32.gmra.mrb[0].mxu0 %v2278
      %v2280 = vpop.f32.mrb[0].mxu0
      %v2281 = vadd.f32 %v1988, %v2280
      %v2282 = vpop.f32.mrb[0].mxu0
      %v2283 = vadd.f32 %v1990, %v2282
      %2284 = vmatprep.mubr.f32.mxu0 0.0
      %v2285 = vand.u32 %v329, 4294901760
      %2286 = vmatmul.mubr.f32.gmra.mrb[0].mxu0 %v2285
      %v2287 = vpop.f32.mrb[0].mxu0
      %v2288 = vadd.f32 %v1995, %v2287
      %v2289 = vpop.f32.mrb[0].mxu0
      %v2290 = vadd.f32 %v1997, %v2289
      %2291 = vmatprep.mubr.f32.mxu0 0.0
      %v2292 = vand.u32 %v332, 4294901760
      %2293 = vmatmul.mubr.f32.gmra.mrb[0].mxu0 %v2292
      %v2294 = vpop.f32.mrb[0].mxu0
      %v2295 = vadd.f32 %v2002, %v2294
      %v2296 = vpop.f32.mrb[0].mxu0
      %v2297 = vadd.f32 %v2004, %v2296
      %2298 = vmatprep.mubr.f32.mxu0 0.0
      %v2299 = vand.u32 %v335, 4294901760
      %2300 = vmatmul.mubr.f32.gmra.mrb[0].mxu0 %v2299
      %v2301 = vpop.f32.mrb[0].mxu0
      %v2302 = vadd.f32 %v2009, %v2301
      %v2303 = vpop.f32.mrb[0].mxu0
      %v2304 = vadd.f32 %v2011, %v2303
      %2305 = vmatprep.mubr.f32.mxu0 0.0
      %v2306 = vand.u32 %v338, 4294901760
      %2307 = vmatmul.mubr.f32.gmra.mrb[0].mxu0 %v2306
      %v2308 = vpop.f32.mrb[0].mxu0
      %v2309 = vadd.f32 %v2016, %v2308
      %v2310 = vpop.f32.mrb[0].mxu0
      %v2311 = vadd.f32 %v2018, %v2310
      %2312 = vmatprep.mubr.f32.mxu0 0.0
      %v2313 = vand.u32 %v341, 4294901760
      %2314 = vmatmul.mubr.f32.gmra.mrb[0].mxu0 %v2313
      %v2315 = vpop.f32.mrb[0].mxu0
      %v2316 = vadd.f32 %v2023, %v2315
      %v2317 = vpop.f32.mrb[0].mxu0
      %v2318 = vadd.f32 %v2025, %v2317
      %2319 = vmatprep.mubr.f32.mxu0 0.0
      %v2320 = vand.u32 %v344, 4294901760
      %2321 = vmatmul.mubr.f32.gmra.mrb[0].mxu0 %v2320
      %v2322 = vpop.f32.mrb[0].mxu0
      %v2323 = vadd.f32 %v2030, %v2322
      %v2324 = vpop.f32.mrb[0].mxu0
      %v2325 = vadd.f32 %v2032, %v2324
      %2326 = vmatprep.mubr.f32.mxu0 0.0
      %v2327 = vand.u32 %v347, 4294901760
      %2328 = vmatmul.mubr.f32.gmra.mrb[0].mxu0 %v2327
      %v2329 = vpop.f32.mrb[0].mxu0
      %v2330 = vadd.f32 %v2037, %v2329
      %v2331 = vpop.f32.mrb[0].mxu0
      %v2332 = vadd.f32 %v2039, %v2331
      %2333 = vmatprep.mubr.f32.mxu0 0.0
      %v2334 = vand.u32 %v350, 4294901760
      %2335 = vmatmul.mubr.f32.gmra.mrb[0].mxu0 %v2334
      %v2336 = vpop.f32.mrb[0].mxu0
      %v2337 = vadd.f32 %v2044, %v2336
      %v2338 = vpop.f32.mrb[0].mxu0
      %v2339 = vadd.f32 %v2046, %v2338
      %2340 = vmatprep.mubr.f32.mxu0 0.0
      %v2341 = vand.u32 %v353, 4294901760
      %2342 = vmatmul.mubr.f32.gmra.mrb[0].mxu0 %v2341
      %v2343 = vpop.f32.mrb[0].mxu0
      %v2344 = vadd.f32 %v2051, %v2343
      %v2345 = vpop.f32.mrb[0].mxu0
      %v2346 = vadd.f32 %v2053, %v2345
      %2347 = vmatprep.mubr.f32.mxu0 0.0
      %v2348 = vand.u32 %v356, 4294901760
      %2349 = vmatmul.mubr.f32.gmra.mrb[0].mxu0 %v2348
      %v2350 = vpop.f32.mrb[0].mxu0
      %v2351 = vadd.f32 %v2058, %v2350
      %v2352 = vpop.f32.mrb[0].mxu0
      %v2353 = vadd.f32 %v2060, %v2352
      %2354 = vmatprep.mubr.f32.mxu0 0.0
      %v2355 = vand.u32 %v359, 4294901760
      %2356 = vmatmul.mubr.f32.gmra.mrb[0].mxu0 %v2355
      %v2357 = vpop.f32.mrb[0].mxu0
      %v2358 = vadd.f32 %v2065, %v2357
      %v2359 = vpop.f32.mrb[0].mxu0
      %v2360 = vadd.f32 %v2067, %v2359
      %2361 = vmatprep.mubr.f32.mxu0 0.0
      %v2362 = vand.u32 %v362, 4294901760
      %2363 = vmatmul.mubr.f32.gmra.mrb[0].mxu0 %v2362
      %v2364 = vpop.f32.mrb[0].mxu0
      %v2365 = vadd.f32 %v2072, %v2364
      %v2366 = vpop.f32.mrb[0].mxu0
      %v2367 = vadd.f32 %v2074, %v2366
      %2368 = vmatprep.mubr.f32.mxu0 0.0
      %v2369 = vand.u32 %v365, 4294901760
      %2370 = vmatmul.mubr.f32.gmra.mrb[0].mxu0 %v2369
      %v2371 = vpop.f32.mrb[0].mxu0
      %v2372 = vadd.f32 %v2079, %v2371
      %v2373 = vpop.f32.mrb[0].mxu0
      %v2374 = vadd.f32 %v2081, %v2373
      %2375 = vmatprep.mubr.f32.mxu0 0.0
      %v2376 = vand.u32 %v368, 4294901760
      %2377 = vmatmul.mubr.f32.gmra.mrb[0].mxu0 %v2376
      %v2378 = vpop.f32.mrb[0].mxu0
      %v2379 = vadd.f32 %v2086, %v2378
      %v2380 = vpop.f32.mrb[0].mxu0
      %v2381 = vadd.f32 %v2088, %v2380
      %2382 = vmatprep.mubr.f32.mxu0 0.0
      %v2383 = vand.u32 %v371, 4294901760
      %2384 = vmatmul.mubr.f32.gmra.mrb[0].mxu0 %v2383
      %v2385 = vpop.f32.mrb[0].mxu0
      %v2386 = vadd.f32 %v2093, %v2385
      %v2387 = vpop.f32.mrb[0].mxu0
      %v2388 = vadd.f32 %v2095, %v2387
      %2389 = vdwg.mxu0
      %v2390 = vmax.f32 %v2169, 0.0
      %v2391 = vmax.f32 %v2171, 0.0
      %v2392 = vmax.f32 %v2176, 0.0
      %v2393 = vmax.f32 %v2178, 0.0
      %v2394 = vmax.f32 %v2183, 0.0
      %v2395 = vmax.f32 %v2185, 0.0
      %v2396 = vmax.f32 %v2190, 0.0
      %v2397 = vmax.f32 %v2192, 0.0
      %v2398 = vmax.f32 %v2197, 0.0
      %v2399 = vmax.f32 %v2199, 0.0
      %v2400 = vmax.f32 %v2204, 0.0
      %v2401 = vmax.f32 %v2206, 0.0
      %v2402 = vmax.f32 %v2211, 0.0
      %v2403 = vmax.f32 %v2213, 0.0
      %v2404 = vmax.f32 %v2218, 0.0
      %v2405 = vmax.f32 %v2220, 0.0
      %v2406 = vmax.f32 %v2225, 0.0
      %v2407 = vmax.f32 %v2227, 0.0
      %v2408 = vmax.f32 %v2232, 0.0
      %v2409 = vmax.f32 %v2234, 0.0
      %v2410 = vmax.f32 %v2239, 0.0
      %v2411 = vmax.f32 %v2241, 0.0
      %v2412 = vmax.f32 %v2246, 0.0
      %v2413 = vmax.f32 %v2248, 0.0
      %v2414 = vmax.f32 %v2253, 0.0
      %v2415 = vmax.f32 %v2255, 0.0
      %v2416 = vmax.f32 %v2260, 0.0
      %v2417 = vmax.f32 %v2262, 0.0
      %v2418 = vmax.f32 %v2267, 0.0
      %v2419 = vmax.f32 %v2269, 0.0
      %v2420 = vmax.f32 %v2274, 0.0
      %v2421 = vmax.f32 %v2276, 0.0
      %v2422 = vmax.f32 %v2281, 0.0
      %v2423 = vmax.f32 %v2283, 0.0
      %v2424 = vmax.f32 %v2288, 0.0
      %v2425 = vmax.f32 %v2290, 0.0
      %v2426 = vmax.f32 %v2295, 0.0
      %v2427 = vmax.f32 %v2297, 0.0
      %v2428 = vmax.f32 %v2302, 0.0
      %v2429 = vmax.f32 %v2304, 0.0
      %v2430 = vmax.f32 %v2309, 0.0
      %v2431 = vmax.f32 %v2311, 0.0
      %v2432 = vmax.f32 %v2316, 0.0
      %v2433 = vmax.f32 %v2318, 0.0
      %v2434 = vmax.f32 %v2323, 0.0
      %v2435 = vmax.f32 %v2325, 0.0
      %v2436 = vmax.f32 %v2330, 0.0
      %v2437 = vmax.f32 %v2332, 0.0
      %v2438 = vmax.f32 %v2337, 0.0
      %v2439 = vmax.f32 %v2339, 0.0
      %v2440 = vmax.f32 %v2344, 0.0
      %v2441 = vmax.f32 %v2346, 0.0
      %v2442 = vmax.f32 %v2351, 0.0
      %v2443 = vmax.f32 %v2353, 0.0
      %v2444 = vmax.f32 %v2358, 0.0
      %v2445 = vmax.f32 %v2360, 0.0
      %v2446 = vmax.f32 %v2365, 0.0
      %v2447 = vmax.f32 %v2367, 0.0
      %v2448 = vmax.f32 %v2372, 0.0
      %v2449 = vmax.f32 %v2374, 0.0
      %v2450 = vmax.f32 %v2379, 0.0
      %v2451 = vmax.f32 %v2381, 0.0
      %v2452 = vmax.f32 %v2386, 0.0
      %v2453 = vmax.f32 %v2388, 0.0
      %v2454 = vld [vmem:[%s3] sm:$0xff]
      %v2455 = vld [vmem:[%s3 + $0x8] sm:$0xff]
      %v2456 = vld [vmem:[%s3 + $0x10] sm:$0xff]
      %v2457 = vld [vmem:[%s3 + $0x18] sm:$0xff]
      %v2458 = vld [vmem:[%s3 + $0x20] sm:$0xff]
      %v2459 = vld [vmem:[%s3 + $0x28] sm:$0xff]
      %v2460 = vld [vmem:[%s3 + $0x30] sm:$0xff]
      %v2461 = vld [vmem:[%s3 + $0x38] sm:$0xff]
      %v2462 = vld [vmem:[%s3 + $0x40] sm:$0xff]
      %v2463 = vld [vmem:[%s3 + $0x48] sm:$0xff]
      %v2464 = vld [vmem:[%s3 + $0x50] sm:$0xff]
      %v2465 = vld [vmem:[%s3 + $0x58] sm:$0xff]
      %v2466 = vld [vmem:[%s3 + $0x60] sm:$0xff]
      %v2467 = vld [vmem:[%s3 + $0x68] sm:$0xff]
      %v2468 = vld [vmem:[%s3 + $0x70] sm:$0xff]
      %v2469 = vld [vmem:[%s3 + $0x78] sm:$0xff]
      %v2470 = vld [vmem:[%s3 + $0x80] sm:$0xff]
      %v2471 = vld [vmem:[%s3 + $0x88] sm:$0xff]
      %v2472 = vld [vmem:[%s3 + $0x90] sm:$0xff]
      %v2473 = vld [vmem:[%s3 + $0x98] sm:$0xff]
      %v2474 = vld [vmem:[%s3 + $0xa0] sm:$0xff]
      %v2475 = vld [vmem:[%s3 + $0xa8] sm:$0xff]
      %v2476 = vld [vmem:[%s3 + $0xb0] sm:$0xff]
      %v2477 = vld [vmem:[%s3 + $0xb8] sm:$0xff]
      %v2478 = vld [vmem:[%s3 + $0xc0] sm:$0xff]
      %v2479 = vld [vmem:[%s3 + $0xc8] sm:$0xff]
      %v2480 = vld [vmem:[%s3 + $0xd0] sm:$0xff]
      %v2481 = vld [vmem:[%s3 + $0xd8] sm:$0xff]
      %v2482 = vld [vmem:[%s3 + $0xe0] sm:$0xff]
      %v2483 = vld [vmem:[%s3 + $0xe8] sm:$0xff]
      %v2484 = vld [vmem:[%s3 + $0xf0] sm:$0xff]
      %v2485 = vld [vmem:[%s3 + $0xf8] sm:$0xff]
      %v2486 = vld [vmem:[%s4] sm:$0x1]
      %v2488 = vlaneseq
      %v2489 = vshrl.u32 %v2488, 7
      %v2490 = vsub.s32 0, %v2489
      %v2491 = vrot.slane %v2486, %v2490
      %2493 = vmatprep.subr.mxu0 0.0
      %v2494 = vand.u32 %v2454, 4294901760
      %2495 = vmatpush1.msra.mxu0 %v2494
      %2496 = vmatprep.subr.mxu0 0.0
      %v2497 = vand.u32 %v2455, 4294901760
      %2498 = vmatpush1.msra.mxu0 %v2497
      %2499 = vmatprep.subr.mxu0 0.0
      %v2500 = vand.u32 %v2456, 4294901760
      %2501 = vmatpush1.msra.mxu0 %v2500
      %2502 = vmatprep.subr.mxu0 0.0
      %v2503 = vand.u32 %v2457, 4294901760
      %2504 = vmatpush1.msra.mxu0 %v2503
      %2505 = vmatprep.subr.mxu0 0.0
      %v2506 = vand.u32 %v2458, 4294901760
      %2507 = vmatpush1.msra.mxu0 %v2506
      %2508 = vmatprep.subr.mxu0 0.0
      %v2509 = vand.u32 %v2459, 4294901760
      %2510 = vmatpush1.msra.mxu0 %v2509
      %2511 = vmatprep.subr.mxu0 0.0
      %v2512 = vand.u32 %v2460, 4294901760
      %2513 = vmatpush1.msra.mxu0 %v2512
      %2514 = vmatprep.subr.mxu0 0.0
      %v2515 = vand.u32 %v2461, 4294901760
      %2516 = vmatpush1.msra.mxu0 %v2515
      %2517 = vmatprep.subr.mxu0 0.0
      %v2518 = vand.u32 %v2462, 4294901760
      %2519 = vmatpush1.msra.mxu0 %v2518
      %2520 = vmatprep.subr.mxu0 0.0
      %v2521 = vand.u32 %v2463, 4294901760
      %2522 = vmatpush1.msra.mxu0 %v2521
      %2523 = vmatprep.subr.mxu0 0.0
      %v2524 = vand.u32 %v2464, 4294901760
      %2525 = vmatpush1.msra.mxu0 %v2524
      %2526 = vmatprep.subr.mxu0 0.0
      %v2527 = vand.u32 %v2465, 4294901760
      %2528 = vmatpush1.msra.mxu0 %v2527
      %2529 = vmatprep.subr.mxu0 0.0
      %v2530 = vand.u32 %v2466, 4294901760
      %2531 = vmatpush1.msra.mxu0 %v2530
      %2532 = vmatprep.subr.mxu0 0.0
      %v2533 = vand.u32 %v2467, 4294901760
      %2534 = vmatpush1.msra.mxu0 %v2533
      %2535 = vmatprep.subr.mxu0 0.0
      %v2536 = vand.u32 %v2468, 4294901760
      %2537 = vmatpush1.msra.mxu0 %v2536
      %2538 = vmatprep.subr.mxu0 0.0
      %v2539 = vand.u32 %v2469, 4294901760
      %2540 = vmatpush1.msra.mxu0 %v2539
      %2541 = vmatprep.subr.mxu0 0.0
      %v2542 = vand.u32 %v2470, 4294901760
      %2543 = vmatpush1.msra.mxu0 %v2542
      %2544 = vmatprep.subr.mxu0 0.0
      %v2545 = vand.u32 %v2471, 4294901760
      %2546 = vmatpush1.msra.mxu0 %v2545
      %2547 = vmatprep.subr.mxu0 0.0
      %v2548 = vand.u32 %v2472, 4294901760
      %2549 = vmatpush1.msra.mxu0 %v2548
      %2550 = vmatprep.subr.mxu0 0.0
      %v2551 = vand.u32 %v2473, 4294901760
      %2552 = vmatpush1.msra.mxu0 %v2551
      %2553 = vmatprep.subr.mxu0 0.0
      %v2554 = vand.u32 %v2474, 4294901760
      %2555 = vmatpush1.msra.mxu0 %v2554
      %2556 = vmatprep.subr.mxu0 0.0
      %v2557 = vand.u32 %v2475, 4294901760
      %2558 = vmatpush1.msra.mxu0 %v2557
      %2559 = vmatprep.subr.mxu0 0.0
      %v2560 = vand.u32 %v2476, 4294901760
      %2561 = vmatpush1.msra.mxu0 %v2560
      %2562 = vmatprep.subr.mxu0 0.0
      %v2563 = vand.u32 %v2477, 4294901760
      %2564 = vmatpush1.msra.mxu0 %v2563
      %2565 = vmatprep.subr.mxu0 0.0
      %v2566 = vand.u32 %v2478, 4294901760
      %2567 = vmatpush1.msra.mxu0 %v2566
      %2568 = vmatprep.subr.mxu0 0.0
      %v2569 = vand.u32 %v2479, 4294901760
      %2570 = vmatpush1.msra.mxu0 %v2569
      %2571 = vmatprep.subr.mxu0 0.0
      %v2572 = vand.u32 %v2480, 4294901760
      %2573 = vmatpush1.msra.mxu0 %v2572
      %2574 = vmatprep.subr.mxu0 0.0
      %v2575 = vand.u32 %v2481, 4294901760
      %2576 = vmatpush1.msra.mxu0 %v2575
      %2577 = vmatprep.subr.mxu0 0.0
      %v2578 = vand.u32 %v2482, 4294901760
      %2579 = vmatpush1.msra.mxu0 %v2578
      %2580 = vmatprep.subr.mxu0 0.0
      %v2581 = vand.u32 %v2483, 4294901760
      %2582 = vmatpush1.msra.mxu0 %v2581
      %2583 = vmatprep.subr.mxu0 0.0
      %v2584 = vand.u32 %v2484, 4294901760
      %2585 = vmatpush1.msra.mxu0 %v2584
      %2586 = vmatprep.subr.mxu0 0.0
      %v2587 = vand.u32 %v2485, 4294901760
      %2588 = vmatpush1.msra.mxu0 %v2587
      %v2589 = vand.u32 %v2391, 4294901760
      %v2590 = vsub.f32 %v2391, %v2589
      %v2591 = vand.u32 %v2590, 4294901760
      %v2592 = vsub.f32 %v2590, %v2591
      %v2593 = vand.u32 %v2592, 4294901760
      %2594 = vmatprep.mubr.f32.mxu0 %v2593
      %v2595 = vand.u32 %v2390, 4294901760
      %v2596 = vsub.f32 %v2390, %v2595
      %v2597 = vand.u32 %v2596, 4294901760
      %v2598 = vsub.f32 %v2596, %v2597
      %v2599 = vand.u32 %v2598, 4294901760
      %2600 = vmatmul.mubr.f32.gmra.mrb[0].mxu0 %v2599
      %v2601 = vpop.f32.mrb[0].mxu0
      %v2602 = vadd.f32 %v2491, %v2601
      %v2603 = vpop.f32.mrb[0].mxu0
      %v2604 = vand.u32 %v2393, 4294901760
      %v2605 = vsub.f32 %v2393, %v2604
      %v2606 = vand.u32 %v2605, 4294901760
      %v2607 = vsub.f32 %v2605, %v2606
      %v2608 = vand.u32 %v2607, 4294901760
      %2609 = vmatprep.mubr.f32.mxu0 %v2608
      %v2610 = vand.u32 %v2392, 4294901760
      %v2611 = vsub.f32 %v2392, %v2610
      %v2612 = vand.u32 %v2611, 4294901760
      %v2613 = vsub.f32 %v2611, %v2612
      %v2614 = vand.u32 %v2613, 4294901760
      %2615 = vmatmul.mubr.f32.gmra.mrb[0].mxu0 %v2614
      %v2616 = vpop.f32.mrb[0].mxu0
      %v2617 = vadd.f32 %v2491, %v2616
      %v2618 = vpop.f32.mrb[0].mxu0
      %v2619 = vand.u32 %v2395, 4294901760
      %v2620 = vsub.f32 %v2395, %v2619
      %v2621 = vand.u32 %v2620, 4294901760
      %v2622 = vsub.f32 %v2620, %v2621
      %v2623 = vand.u32 %v2622, 4294901760
      %2624 = vmatprep.mubr.f32.mxu0 %v2623
      %v2625 = vand.u32 %v2394, 4294901760
      %v2626 = vsub.f32 %v2394, %v2625
      %v2627 = vand.u32 %v2626, 4294901760
      %v2628 = vsub.f32 %v2626, %v2627
      %v2629 = vand.u32 %v2628, 4294901760
      %2630 = vmatmul.mubr.f32.gmra.mrb[0].mxu0 %v2629
      %v2631 = vpop.f32.mrb[0].mxu0
      %v2632 = vadd.f32 %v2491, %v2631
      %v2633 = vpop.f32.mrb[0].mxu0
      %v2634 = vand.u32 %v2397, 4294901760
      %v2635 = vsub.f32 %v2397, %v2634
      %v2636 = vand.u32 %v2635, 4294901760
      %v2637 = vsub.f32 %v2635, %v2636
      %v2638 = vand.u32 %v2637, 4294901760
      %2639 = vmatprep.mubr.f32.mxu0 %v2638
      %v2640 = vand.u32 %v2396, 4294901760
      %v2641 = vsub.f32 %v2396, %v2640
      %v2642 = vand.u32 %v2641, 4294901760
      %v2643 = vsub.f32 %v2641, %v2642
      %v2644 = vand.u32 %v2643, 4294901760
      %2645 = vmatmul.mubr.f32.gmra.mrb[0].mxu0 %v2644
      %v2646 = vpop.f32.mrb[0].mxu0
      %v2647 = vadd.f32 %v2491, %v2646
      %v2648 = vpop.f32.mrb[0].mxu0
      %v2649 = vand.u32 %v2399, 4294901760
      %v2650 = vsub.f32 %v2399, %v2649
      %v2651 = vand.u32 %v2650, 4294901760
      %v2652 = vsub.f32 %v2650, %v2651
      %v2653 = vand.u32 %v2652, 4294901760
      %2654 = vmatprep.mubr.f32.mxu0 %v2653
      %v2655 = vand.u32 %v2398, 4294901760
      %v2656 = vsub.f32 %v2398, %v2655
      %v2657 = vand.u32 %v2656, 4294901760
      %v2658 = vsub.f32 %v2656, %v2657
      %v2659 = vand.u32 %v2658, 4294901760
      %2660 = vmatmul.mubr.f32.gmra.mrb[0].mxu0 %v2659
      %v2661 = vpop.f32.mrb[0].mxu0
      %v2662 = vadd.f32 %v2491, %v2661
      %v2663 = vpop.f32.mrb[0].mxu0
      %v2664 = vand.u32 %v2401, 4294901760
      %v2665 = vsub.f32 %v2401, %v2664
      %v2666 = vand.u32 %v2665, 4294901760
      %v2667 = vsub.f32 %v2665, %v2666
      %v2668 = vand.u32 %v2667, 4294901760
      %2669 = vmatprep.mubr.f32.mxu0 %v2668
      %v2670 = vand.u32 %v2400, 4294901760
      %v2671 = vsub.f32 %v2400, %v2670
      %v2672 = vand.u32 %v2671, 4294901760
      %v2673 = vsub.f32 %v2671, %v2672
      %v2674 = vand.u32 %v2673, 4294901760
      %2675 = vmatmul.mubr.f32.gmra.mrb[0].mxu0 %v2674
      %v2676 = vpop.f32.mrb[0].mxu0
      %v2677 = vadd.f32 %v2491, %v2676
      %v2678 = vpop.f32.mrb[0].mxu0
      %v2679 = vand.u32 %v2403, 4294901760
      %v2680 = vsub.f32 %v2403, %v2679
      %v2681 = vand.u32 %v2680, 4294901760
      %v2682 = vsub.f32 %v2680, %v2681
      %v2683 = vand.u32 %v2682, 4294901760
      %2684 = vmatprep.mubr.f32.mxu0 %v2683
      %v2685 = vand.u32 %v2402, 4294901760
      %v2686 = vsub.f32 %v2402, %v2685
      %v2687 = vand.u32 %v2686, 4294901760
      %v2688 = vsub.f32 %v2686, %v2687
      %v2689 = vand.u32 %v2688, 4294901760
      %2690 = vmatmul.mubr.f32.gmra.mrb[0].mxu0 %v2689
      %v2691 = vpop.f32.mrb[0].mxu0
      %v2692 = vadd.f32 %v2491, %v2691
      %v2693 = vpop.f32.mrb[0].mxu0
      %v2694 = vand.u32 %v2405, 4294901760
      %v2695 = vsub.f32 %v2405, %v2694
      %v2696 = vand.u32 %v2695, 4294901760
      %v2697 = vsub.f32 %v2695, %v2696
      %v2698 = vand.u32 %v2697, 4294901760
      %2699 = vmatprep.mubr.f32.mxu0 %v2698
      %v2700 = vand.u32 %v2404, 4294901760
      %v2701 = vsub.f32 %v2404, %v2700
      %v2702 = vand.u32 %v2701, 4294901760
      %v2703 = vsub.f32 %v2701, %v2702
      %v2704 = vand.u32 %v2703, 4294901760
      %2705 = vmatmul.mubr.f32.gmra.mrb[0].mxu0 %v2704
      %v2706 = vpop.f32.mrb[0].mxu0
      %v2707 = vadd.f32 %v2491, %v2706
      %v2708 = vpop.f32.mrb[0].mxu0
      %v2709 = vand.u32 %v2407, 4294901760
      %v2710 = vsub.f32 %v2407, %v2709
      %v2711 = vand.u32 %v2710, 4294901760
      %v2712 = vsub.f32 %v2710, %v2711
      %v2713 = vand.u32 %v2712, 4294901760
      %2714 = vmatprep.mubr.f32.mxu0 %v2713
      %v2715 = vand.u32 %v2406, 4294901760
      %v2716 = vsub.f32 %v2406, %v2715
      %v2717 = vand.u32 %v2716, 4294901760
      %v2718 = vsub.f32 %v2716, %v2717
      %v2719 = vand.u32 %v2718, 4294901760
      %2720 = vmatmul.mubr.f32.gmra.mrb[0].mxu0 %v2719
      %v2721 = vpop.f32.mrb[0].mxu0
      %v2722 = vadd.f32 %v2491, %v2721
      %v2723 = vpop.f32.mrb[0].mxu0
      %v2724 = vand.u32 %v2409, 4294901760
      %v2725 = vsub.f32 %v2409, %v2724
      %v2726 = vand.u32 %v2725, 4294901760
      %v2727 = vsub.f32 %v2725, %v2726
      %v2728 = vand.u32 %v2727, 4294901760
      %2729 = vmatprep.mubr.f32.mxu0 %v2728
      %v2730 = vand.u32 %v2408, 4294901760
      %v2731 = vsub.f32 %v2408, %v2730
      %v2732 = vand.u32 %v2731, 4294901760
      %v2733 = vsub.f32 %v2731, %v2732
      %v2734 = vand.u32 %v2733, 4294901760
      %2735 = vmatmul.mubr.f32.gmra.mrb[0].mxu0 %v2734
      %v2736 = vpop.f32.mrb[0].mxu0
      %v2737 = vadd.f32 %v2491, %v2736
      %v2738 = vpop.f32.mrb[0].mxu0
      %v2739 = vand.u32 %v2411, 4294901760
      %v2740 = vsub.f32 %v2411, %v2739
      %v2741 = vand.u32 %v2740, 4294901760
      %v2742 = vsub.f32 %v2740, %v2741
      %v2743 = vand.u32 %v2742, 4294901760
      %2744 = vmatprep.mubr.f32.mxu0 %v2743
      %v2745 = vand.u32 %v2410, 4294901760
      %v2746 = vsub.f32 %v2410, %v2745
      %v2747 = vand.u32 %v2746, 4294901760
      %v2748 = vsub.f32 %v2746, %v2747
      %v2749 = vand.u32 %v2748, 4294901760
      %2750 = vmatmul.mubr.f32.gmra.mrb[0].mxu0 %v2749
      %v2751 = vpop.f32.mrb[0].mxu0
      %v2752 = vadd.f32 %v2491, %v2751
      %v2753 = vpop.f32.mrb[0].mxu0
      %v2754 = vand.u32 %v2413, 4294901760
      %v2755 = vsub.f32 %v2413, %v2754
      %v2756 = vand.u32 %v2755, 4294901760
      %v2757 = vsub.f32 %v2755, %v2756
      %v2758 = vand.u32 %v2757, 4294901760
      %2759 = vmatprep.mubr.f32.mxu0 %v2758
      %v2760 = vand.u32 %v2412, 4294901760
      %v2761 = vsub.f32 %v2412, %v2760
      %v2762 = vand.u32 %v2761, 4294901760
      %v2763 = vsub.f32 %v2761, %v2762
      %v2764 = vand.u32 %v2763, 4294901760
      %2765 = vmatmul.mubr.f32.gmra.mrb[0].mxu0 %v2764
      %v2766 = vpop.f32.mrb[0].mxu0
      %v2767 = vadd.f32 %v2491, %v2766
      %v2768 = vpop.f32.mrb[0].mxu0
      %v2769 = vand.u32 %v2415, 4294901760
      %v2770 = vsub.f32 %v2415, %v2769
      %v2771 = vand.u32 %v2770, 4294901760
      %v2772 = vsub.f32 %v2770, %v2771
      %v2773 = vand.u32 %v2772, 4294901760
      %2774 = vmatprep.mubr.f32.mxu0 %v2773
      %v2775 = vand.u32 %v2414, 4294901760
      %v2776 = vsub.f32 %v2414, %v2775
      %v2777 = vand.u32 %v2776, 4294901760
      %v2778 = vsub.f32 %v2776, %v2777
      %v2779 = vand.u32 %v2778, 4294901760
      %2780 = vmatmul.mubr.f32.gmra.mrb[0].mxu0 %v2779
      %v2781 = vpop.f32.mrb[0].mxu0
      %v2782 = vadd.f32 %v2491, %v2781
      %v2783 = vpop.f32.mrb[0].mxu0
      %v2784 = vand.u32 %v2417, 4294901760
      %v2785 = vsub.f32 %v2417, %v2784
      %v2786 = vand.u32 %v2785, 4294901760
      %v2787 = vsub.f32 %v2785, %v2786
      %v2788 = vand.u32 %v2787, 4294901760
      %2789 = vmatprep.mubr.f32.mxu0 %v2788
      %v2790 = vand.u32 %v2416, 4294901760
      %v2791 = vsub.f32 %v2416, %v2790
      %v2792 = vand.u32 %v2791, 4294901760
      %v2793 = vsub.f32 %v2791, %v2792
      %v2794 = vand.u32 %v2793, 4294901760
      %2795 = vmatmul.mubr.f32.gmra.mrb[0].mxu0 %v2794
      %v2796 = vpop.f32.mrb[0].mxu0
      %v2797 = vadd.f32 %v2491, %v2796
      %v2798 = vpop.f32.mrb[0].mxu0
      %v2799 = vand.u32 %v2419, 4294901760
      %v2800 = vsub.f32 %v2419, %v2799
      %v2801 = vand.u32 %v2800, 4294901760
      %v2802 = vsub.f32 %v2800, %v2801
      %v2803 = vand.u32 %v2802, 4294901760
      %2804 = vmatprep.mubr.f32.mxu0 %v2803
      %v2805 = vand.u32 %v2418, 4294901760
      %v2806 = vsub.f32 %v2418, %v2805
      %v2807 = vand.u32 %v2806, 4294901760
      %v2808 = vsub.f32 %v2806, %v2807
      %v2809 = vand.u32 %v2808, 4294901760
      %2810 = vmatmul.mubr.f32.gmra.mrb[0].mxu0 %v2809
      %v2811 = vpop.f32.mrb[0].mxu0
      %v2812 = vadd.f32 %v2491, %v2811
      %v2813 = vpop.f32.mrb[0].mxu0
      %v2814 = vand.u32 %v2421, 4294901760
      %v2815 = vsub.f32 %v2421, %v2814
      %v2816 = vand.u32 %v2815, 4294901760
      %v2817 = vsub.f32 %v2815, %v2816
      %v2818 = vand.u32 %v2817, 4294901760
      %2819 = vmatprep.mubr.f32.mxu0 %v2818
      %v2820 = vand.u32 %v2420, 4294901760
      %v2821 = vsub.f32 %v2420, %v2820
      %v2822 = vand.u32 %v2821, 4294901760
      %v2823 = vsub.f32 %v2821, %v2822
      %v2824 = vand.u32 %v2823, 4294901760
      %2825 = vmatmul.mubr.f32.gmra.mrb[0].mxu0 %v2824
      %v2826 = vpop.f32.mrb[0].mxu0
      %v2827 = vadd.f32 %v2491, %v2826
      %v2828 = vpop.f32.mrb[0].mxu0
      %v2829 = vand.u32 %v2423, 4294901760
      %v2830 = vsub.f32 %v2423, %v2829
      %v2831 = vand.u32 %v2830, 4294901760
      %v2832 = vsub.f32 %v2830, %v2831
      %v2833 = vand.u32 %v2832, 4294901760
      %2834 = vmatprep.mubr.f32.mxu0 %v2833
      %v2835 = vand.u32 %v2422, 4294901760
      %v2836 = vsub.f32 %v2422, %v2835
      %v2837 = vand.u32 %v2836, 4294901760
      %v2838 = vsub.f32 %v2836, %v2837
      %v2839 = vand.u32 %v2838, 4294901760
      %2840 = vmatmul.mubr.f32.gmra.mrb[0].mxu0 %v2839
      %v2841 = vpop.f32.mrb[0].mxu0
      %v2842 = vadd.f32 %v2491, %v2841
      %v2843 = vpop.f32.mrb[0].mxu0
      %v2844 = vand.u32 %v2425, 4294901760
      %v2845 = vsub.f32 %v2425, %v2844
      %v2846 = vand.u32 %v2845, 4294901760
      %v2847 = vsub.f32 %v2845, %v2846
      %v2848 = vand.u32 %v2847, 4294901760
      %2849 = vmatprep.mubr.f32.mxu0 %v2848
      %v2850 = vand.u32 %v2424, 4294901760
      %v2851 = vsub.f32 %v2424, %v2850
      %v2852 = vand.u32 %v2851, 4294901760
      %v2853 = vsub.f32 %v2851, %v2852
      %v2854 = vand.u32 %v2853, 4294901760
      %2855 = vmatmul.mubr.f32.gmra.mrb[0].mxu0 %v2854
      %v2856 = vpop.f32.mrb[0].mxu0
      %v2857 = vadd.f32 %v2491, %v2856
      %v2858 = vpop.f32.mrb[0].mxu0
      %v2859 = vand.u32 %v2427, 4294901760
      %v2860 = vsub.f32 %v2427, %v2859
      %v2861 = vand.u32 %v2860, 4294901760
      %v2862 = vsub.f32 %v2860, %v2861
      %v2863 = vand.u32 %v2862, 4294901760
      %2864 = vmatprep.mubr.f32.mxu0 %v2863
      %v2865 = vand.u32 %v2426, 4294901760
      %v2866 = vsub.f32 %v2426, %v2865
      %v2867 = vand.u32 %v2866, 4294901760
      %v2868 = vsub.f32 %v2866, %v2867
      %v2869 = vand.u32 %v2868, 4294901760
      %2870 = vmatmul.mubr.f32.gmra.mrb[0].mxu0 %v2869
      %v2871 = vpop.f32.mrb[0].mxu0
      %v2872 = vadd.f32 %v2491, %v2871
      %v2873 = vpop.f32.mrb[0].mxu0
      %v2874 = vand.u32 %v2429, 4294901760
      %v2875 = vsub.f32 %v2429, %v2874
      %v2876 = vand.u32 %v2875, 4294901760
      %v2877 = vsub.f32 %v2875, %v2876
      %v2878 = vand.u32 %v2877, 4294901760
      %2879 = vmatprep.mubr.f32.mxu0 %v2878
      %v2880 = vand.u32 %v2428, 4294901760
      %v2881 = vsub.f32 %v2428, %v2880
      %v2882 = vand.u32 %v2881, 4294901760
      %v2883 = vsub.f32 %v2881, %v2882
      %v2884 = vand.u32 %v2883, 4294901760
      %2885 = vmatmul.mubr.f32.gmra.mrb[0].mxu0 %v2884
      %v2886 = vpop.f32.mrb[0].mxu0
      %v2887 = vadd.f32 %v2491, %v2886
      %v2888 = vpop.f32.mrb[0].mxu0
      %v2889 = vand.u32 %v2431, 4294901760
      %v2890 = vsub.f32 %v2431, %v2889
      %v2891 = vand.u32 %v2890, 4294901760
      %v2892 = vsub.f32 %v2890, %v2891
      %v2893 = vand.u32 %v2892, 4294901760
      %2894 = vmatprep.mubr.f32.mxu0 %v2893
      %v2895 = vand.u32 %v2430, 4294901760
      %v2896 = vsub.f32 %v2430, %v2895
      %v2897 = vand.u32 %v2896, 4294901760
      %v2898 = vsub.f32 %v2896, %v2897
      %v2899 = vand.u32 %v2898, 4294901760
      %2900 = vmatmul.mubr.f32.gmra.mrb[0].mxu0 %v2899
      %v2901 = vpop.f32.mrb[0].mxu0
      %v2902 = vadd.f32 %v2491, %v2901
      %v2903 = vpop.f32.mrb[0].mxu0
      %v2904 = vand.u32 %v2433, 4294901760
      %v2905 = vsub.f32 %v2433, %v2904
      %v2906 = vand.u32 %v2905, 4294901760
      %v2907 = vsub.f32 %v2905, %v2906
      %v2908 = vand.u32 %v2907, 4294901760
      %2909 = vmatprep.mubr.f32.mxu0 %v2908
      %v2910 = vand.u32 %v2432, 4294901760
      %v2911 = vsub.f32 %v2432, %v2910
      %v2912 = vand.u32 %v2911, 4294901760
      %v2913 = vsub.f32 %v2911, %v2912
      %v2914 = vand.u32 %v2913, 4294901760
      %2915 = vmatmul.mubr.f32.gmra.mrb[0].mxu0 %v2914
      %v2916 = vpop.f32.mrb[0].mxu0
      %v2917 = vadd.f32 %v2491, %v2916
      %v2918 = vpop.f32.mrb[0].mxu0
      %v2919 = vand.u32 %v2435, 4294901760
      %v2920 = vsub.f32 %v2435, %v2919
      %v2921 = vand.u32 %v2920, 4294901760
      %v2922 = vsub.f32 %v2920, %v2921
      %v2923 = vand.u32 %v2922, 4294901760
      %2924 = vmatprep.mubr.f32.mxu0 %v2923
      %v2925 = vand.u32 %v2434, 4294901760
      %v2926 = vsub.f32 %v2434, %v2925
      %v2927 = vand.u32 %v2926, 4294901760
      %v2928 = vsub.f32 %v2926, %v2927
      %v2929 = vand.u32 %v2928, 4294901760
      %2930 = vmatmul.mubr.f32.gmra.mrb[0].mxu0 %v2929
      %v2931 = vpop.f32.mrb[0].mxu0
      %v2932 = vadd.f32 %v2491, %v2931
      %v2933 = vpop.f32.mrb[0].mxu0
      %v2934 = vand.u32 %v2437, 4294901760
      %v2935 = vsub.f32 %v2437, %v2934
      %v2936 = vand.u32 %v2935, 4294901760
      %v2937 = vsub.f32 %v2935, %v2936
      %v2938 = vand.u32 %v2937, 4294901760
      %2939 = vmatprep.mubr.f32.mxu0 %v2938
      %v2940 = vand.u32 %v2436, 4294901760
      %v2941 = vsub.f32 %v2436, %v2940
      %v2942 = vand.u32 %v2941, 4294901760
      %v2943 = vsub.f32 %v2941, %v2942
      %v2944 = vand.u32 %v2943, 4294901760
      %2945 = vmatmul.mubr.f32.gmra.mrb[0].mxu0 %v2944
      %v2946 = vpop.f32.mrb[0].mxu0
      %v2947 = vadd.f32 %v2491, %v2946
      %v2948 = vpop.f32.mrb[0].mxu0
      %v2949 = vand.u32 %v2439, 4294901760
      %v2950 = vsub.f32 %v2439, %v2949
      %v2951 = vand.u32 %v2950, 4294901760
      %v2952 = vsub.f32 %v2950, %v2951
      %v2953 = vand.u32 %v2952, 4294901760
      %2954 = vmatprep.mubr.f32.mxu0 %v2953
      %v2955 = vand.u32 %v2438, 4294901760
      %v2956 = vsub.f32 %v2438, %v2955
      %v2957 = vand.u32 %v2956, 4294901760
      %v2958 = vsub.f32 %v2956, %v2957
      %v2959 = vand.u32 %v2958, 4294901760
      %2960 = vmatmul.mubr.f32.gmra.mrb[0].mxu0 %v2959
      %v2961 = vpop.f32.mrb[0].mxu0
      %v2962 = vadd.f32 %v2491, %v2961
      %v2963 = vpop.f32.mrb[0].mxu0
      %v2964 = vand.u32 %v2441, 4294901760
      %v2965 = vsub.f32 %v2441, %v2964
      %v2966 = vand.u32 %v2965, 4294901760
      %v2967 = vsub.f32 %v2965, %v2966
      %v2968 = vand.u32 %v2967, 4294901760
      %2969 = vmatprep.mubr.f32.mxu0 %v2968
      %v2970 = vand.u32 %v2440, 4294901760
      %v2971 = vsub.f32 %v2440, %v2970
      %v2972 = vand.u32 %v2971, 4294901760
      %v2973 = vsub.f32 %v2971, %v2972
      %v2974 = vand.u32 %v2973, 4294901760
      %2975 = vmatmul.mubr.f32.gmra.mrb[0].mxu0 %v2974
      %v2976 = vpop.f32.mrb[0].mxu0
      %v2977 = vadd.f32 %v2491, %v2976
      %v2978 = vpop.f32.mrb[0].mxu0
      %v2979 = vand.u32 %v2443, 4294901760
      %v2980 = vsub.f32 %v2443, %v2979
      %v2981 = vand.u32 %v2980, 4294901760
      %v2982 = vsub.f32 %v2980, %v2981
      %v2983 = vand.u32 %v2982, 4294901760
      %2984 = vmatprep.mubr.f32.mxu0 %v2983
      %v2985 = vand.u32 %v2442, 4294901760
      %v2986 = vsub.f32 %v2442, %v2985
      %v2987 = vand.u32 %v2986, 4294901760
      %v2988 = vsub.f32 %v2986, %v2987
      %v2989 = vand.u32 %v2988, 4294901760
      %2990 = vmatmul.mubr.f32.gmra.mrb[0].mxu0 %v2989
      %v2991 = vpop.f32.mrb[0].mxu0
      %v2992 = vadd.f32 %v2491, %v2991
      %v2993 = vpop.f32.mrb[0].mxu0
      %v2994 = vand.u32 %v2445, 4294901760
      %v2995 = vsub.f32 %v2445, %v2994
      %v2996 = vand.u32 %v2995, 4294901760
      %v2997 = vsub.f32 %v2995, %v2996
      %v2998 = vand.u32 %v2997, 4294901760
      %2999 = vmatprep.mubr.f32.mxu0 %v2998
      %v3000 = vand.u32 %v2444, 4294901760
      %v3001 = vsub.f32 %v2444, %v3000
      %v3002 = vand.u32 %v3001, 4294901760
      %v3003 = vsub.f32 %v3001, %v3002
      %v3004 = vand.u32 %v3003, 4294901760
      %3005 = vmatmul.mubr.f32.gmra.mrb[0].mxu0 %v3004
      %v3006 = vpop.f32.mrb[0].mxu0
      %v3007 = vadd.f32 %v2491, %v3006
      %v3008 = vpop.f32.mrb[0].mxu0
      %v3009 = vand.u32 %v2447, 4294901760
      %v3010 = vsub.f32 %v2447, %v3009
      %v3011 = vand.u32 %v3010, 4294901760
      %v3012 = vsub.f32 %v3010, %v3011
      %v3013 = vand.u32 %v3012, 4294901760
      %3014 = vmatprep.mubr.f32.mxu0 %v3013
      %v3015 = vand.u32 %v2446, 4294901760
      %v3016 = vsub.f32 %v2446, %v3015
      %v3017 = vand.u32 %v3016, 4294901760
      %v3018 = vsub.f32 %v3016, %v3017
      %v3019 = vand.u32 %v3018, 4294901760
      %3020 = vmatmul.mubr.f32.gmra.mrb[0].mxu0 %v3019
      %v3021 = vpop.f32.mrb[0].mxu0
      %v3022 = vadd.f32 %v2491, %v3021
      %v3023 = vpop.f32.mrb[0].mxu0
      %v3024 = vand.u32 %v2449, 4294901760
      %v3025 = vsub.f32 %v2449, %v3024
      %v3026 = vand.u32 %v3025, 4294901760
      %v3027 = vsub.f32 %v3025, %v3026
      %v3028 = vand.u32 %v3027, 4294901760
      %3029 = vmatprep.mubr.f32.mxu0 %v3028
      %v3030 = vand.u32 %v2448, 4294901760
      %v3031 = vsub.f32 %v2448, %v3030
      %v3032 = vand.u32 %v3031, 4294901760
      %v3033 = vsub.f32 %v3031, %v3032
      %v3034 = vand.u32 %v3033, 4294901760
      %3035 = vmatmul.mubr.f32.gmra.mrb[0].mxu0 %v3034
      %v3036 = vpop.f32.mrb[0].mxu0
      %v3037 = vadd.f32 %v2491, %v3036
      %v3038 = vpop.f32.mrb[0].mxu0
      %v3039 = vand.u32 %v2451, 4294901760
      %v3040 = vsub.f32 %v2451, %v3039
      %v3041 = vand.u32 %v3040, 4294901760
      %v3042 = vsub.f32 %v3040, %v3041
      %v3043 = vand.u32 %v3042, 4294901760
      %3044 = vmatprep.mubr.f32.mxu0 %v3043
      %v3045 = vand.u32 %v2450, 4294901760
      %v3046 = vsub.f32 %v2450, %v3045
      %v3047 = vand.u32 %v3046, 4294901760
      %v3048 = vsub.f32 %v3046, %v3047
      %v3049 = vand.u32 %v3048, 4294901760
      %3050 = vmatmul.mubr.f32.gmra.mrb[0].mxu0 %v3049
      %v3051 = vpop.f32.mrb[0].mxu0
      %v3052 = vadd.f32 %v2491, %v3051
      %v3053 = vpop.f32.mrb[0].mxu0
      %v3054 = vand.u32 %v2453, 4294901760
      %v3055 = vsub.f32 %v2453, %v3054
      %v3056 = vand.u32 %v3055, 4294901760
      %v3057 = vsub.f32 %v3055, %v3056
      %v3058 = vand.u32 %v3057, 4294901760
      %3059 = vmatprep.mubr.f32.mxu0 %v3058
      %v3060 = vand.u32 %v2452, 4294901760
      %v3061 = vsub.f32 %v2452, %v3060
      %v3062 = vand.u32 %v3061, 4294901760
      %v3063 = vsub.f32 %v3061, %v3062
      %v3064 = vand.u32 %v3063, 4294901760
      %3065 = vmatmul.mubr.f32.gmra.mrb[0].mxu0 %v3064
      %v3066 = vpop.f32.mrb[0].mxu0
      %v3067 = vadd.f32 %v2491, %v3066
      %v3068 = vpop.f32.mrb[0].mxu0
      %3069 = vdwg.mxu0
      %3070 = vmatprep.subr.mxu0 0.0
      %v3071 = vand.u32 %v2454, 4294901760
      %v3072 = vsub.f32 %v2454, %v3071
      %v3073 = vand.u32 %v3072, 4294901760
      %v3074 = vsub.f32 %v3072, %v3073
      %v3075 = vand.u32 %v3074, 4294901760
      %3076 = vmatpush1.msra.mxu0 %v3075
      %3077 = vmatprep.subr.mxu0 0.0
      %v3078 = vand.u32 %v2455, 4294901760
      %v3079 = vsub.f32 %v2455, %v3078
      %v3080 = vand.u32 %v3079, 4294901760
      %v3081 = vsub.f32 %v3079, %v3080
      %v3082 = vand.u32 %v3081, 4294901760
      %3083 = vmatpush1.msra.mxu0 %v3082
      %3084 = vmatprep.subr.mxu0 0.0
      %v3085 = vand.u32 %v2456, 4294901760
      %v3086 = vsub.f32 %v2456, %v3085
      %v3087 = vand.u32 %v3086, 4294901760
      %v3088 = vsub.f32 %v3086, %v3087
      %v3089 = vand.u32 %v3088, 4294901760
      %3090 = vmatpush1.msra.mxu0 %v3089
      %3091 = vmatprep.subr.mxu0 0.0
      %v3092 = vand.u32 %v2457, 4294901760
      %v3093 = vsub.f32 %v2457, %v3092
      %v3094 = vand.u32 %v3093, 4294901760
      %v3095 = vsub.f32 %v3093, %v3094
      %v3096 = vand.u32 %v3095, 4294901760
      %3097 = vmatpush1.msra.mxu0 %v3096
      %3098 = vmatprep.subr.mxu0 0.0
      %v3099 = vand.u32 %v2458, 4294901760
      %v3100 = vsub.f32 %v2458, %v3099
      %v3101 = vand.u32 %v3100, 4294901760
      %v3102 = vsub.f32 %v3100, %v3101
      %v3103 = vand.u32 %v3102, 4294901760
      %3104 = vmatpush1.msra.mxu0 %v3103
      %3105 = vmatprep.subr.mxu0 0.0
      %v3106 = vand.u32 %v2459, 4294901760
      %v3107 = vsub.f32 %v2459, %v3106
      %v3108 = vand.u32 %v3107, 4294901760
      %v3109 = vsub.f32 %v3107, %v3108
      %v3110 = vand.u32 %v3109, 4294901760
      %3111 = vmatpush1.msra.mxu0 %v3110
      %3112 = vmatprep.subr.mxu0 0.0
      %v3113 = vand.u32 %v2460, 4294901760
      %v3114 = vsub.f32 %v2460, %v3113
      %v3115 = vand.u32 %v3114, 4294901760
      %v3116 = vsub.f32 %v3114, %v3115
      %v3117 = vand.u32 %v3116, 4294901760
      %3118 = vmatpush1.msra.mxu0 %v3117
      %3119 = vmatprep.subr.mxu0 0.0
      %v3120 = vand.u32 %v2461, 4294901760
      %v3121 = vsub.f32 %v2461, %v3120
      %v3122 = vand.u32 %v3121, 4294901760
      %v3123 = vsub.f32 %v3121, %v3122
      %v3124 = vand.u32 %v3123, 4294901760
      %3125 = vmatpush1.msra.mxu0 %v3124
      %3126 = vmatprep.subr.mxu0 0.0
      %v3127 = vand.u32 %v2462, 4294901760
      %v3128 = vsub.f32 %v2462, %v3127
      %v3129 = vand.u32 %v3128, 4294901760
      %v3130 = vsub.f32 %v3128, %v3129
      %v3131 = vand.u32 %v3130, 4294901760
      %3132 = vmatpush1.msra.mxu0 %v3131
      %3133 = vmatprep.subr.mxu0 0.0
      %v3134 = vand.u32 %v2463, 4294901760
      %v3135 = vsub.f32 %v2463, %v3134
      %v3136 = vand.u32 %v3135, 4294901760
      %v3137 = vsub.f32 %v3135, %v3136
      %v3138 = vand.u32 %v3137, 4294901760
      %3139 = vmatpush1.msra.mxu0 %v3138
      %3140 = vmatprep.subr.mxu0 0.0
      %v3141 = vand.u32 %v2464, 4294901760
      %v3142 = vsub.f32 %v2464, %v3141
      %v3143 = vand.u32 %v3142, 4294901760
      %v3144 = vsub.f32 %v3142, %v3143
      %v3145 = vand.u32 %v3144, 4294901760
      %3146 = vmatpush1.msra.mxu0 %v3145
      %3147 = vmatprep.subr.mxu0 0.0
      %v3148 = vand.u32 %v2465, 4294901760
      %v3149 = vsub.f32 %v2465, %v3148
      %v3150 = vand.u32 %v3149, 4294901760
      %v3151 = vsub.f32 %v3149, %v3150
      %v3152 = vand.u32 %v3151, 4294901760
      %3153 = vmatpush1.msra.mxu0 %v3152
      %3154 = vmatprep.subr.mxu0 0.0
      %v3155 = vand.u32 %v2466, 4294901760
      %v3156 = vsub.f32 %v2466, %v3155
      %v3157 = vand.u32 %v3156, 4294901760
      %v3158 = vsub.f32 %v3156, %v3157
      %v3159 = vand.u32 %v3158, 4294901760
      %3160 = vmatpush1.msra.mxu0 %v3159
      %3161 = vmatprep.subr.mxu0 0.0
      %v3162 = vand.u32 %v2467, 4294901760
      %v3163 = vsub.f32 %v2467, %v3162
      %v3164 = vand.u32 %v3163, 4294901760
      %v3165 = vsub.f32 %v3163, %v3164
      %v3166 = vand.u32 %v3165, 4294901760
      %3167 = vmatpush1.msra.mxu0 %v3166
      %3168 = vmatprep.subr.mxu0 0.0
      %v3169 = vand.u32 %v2468, 4294901760
      %v3170 = vsub.f32 %v2468, %v3169
      %v3171 = vand.u32 %v3170, 4294901760
      %v3172 = vsub.f32 %v3170, %v3171
      %v3173 = vand.u32 %v3172, 4294901760
      %3174 = vmatpush1.msra.mxu0 %v3173
      %3175 = vmatprep.subr.mxu0 0.0
      %v3176 = vand.u32 %v2469, 4294901760
      %v3177 = vsub.f32 %v2469, %v3176
      %v3178 = vand.u32 %v3177, 4294901760
      %v3179 = vsub.f32 %v3177, %v3178
      %v3180 = vand.u32 %v3179, 4294901760
      %3181 = vmatpush1.msra.mxu0 %v3180
      %3182 = vmatprep.subr.mxu0 0.0
      %v3183 = vand.u32 %v2470, 4294901760
      %v3184 = vsub.f32 %v2470, %v3183
      %v3185 = vand.u32 %v3184, 4294901760
      %v3186 = vsub.f32 %v3184, %v3185
      %v3187 = vand.u32 %v3186, 4294901760
      %3188 = vmatpush1.msra.mxu0 %v3187
      %3189 = vmatprep.subr.mxu0 0.0
      %v3190 = vand.u32 %v2471, 4294901760
      %v3191 = vsub.f32 %v2471, %v3190
      %v3192 = vand.u32 %v3191, 4294901760
      %v3193 = vsub.f32 %v3191, %v3192
      %v3194 = vand.u32 %v3193, 4294901760
      %3195 = vmatpush1.msra.mxu0 %v3194
      %3196 = vmatprep.subr.mxu0 0.0
      %v3197 = vand.u32 %v2472, 4294901760
      %v3198 = vsub.f32 %v2472, %v3197
      %v3199 = vand.u32 %v3198, 4294901760
      %v3200 = vsub.f32 %v3198, %v3199
      %v3201 = vand.u32 %v3200, 4294901760
      %3202 = vmatpush1.msra.mxu0 %v3201
      %3203 = vmatprep.subr.mxu0 0.0
      %v3204 = vand.u32 %v2473, 4294901760
      %v3205 = vsub.f32 %v2473, %v3204
      %v3206 = vand.u32 %v3205, 4294901760
      %v3207 = vsub.f32 %v3205, %v3206
      %v3208 = vand.u32 %v3207, 4294901760
      %3209 = vmatpush1.msra.mxu0 %v3208
      %3210 = vmatprep.subr.mxu0 0.0
      %v3211 = vand.u32 %v2474, 4294901760
      %v3212 = vsub.f32 %v2474, %v3211
      %v3213 = vand.u32 %v3212, 4294901760
      %v3214 = vsub.f32 %v3212, %v3213
      %v3215 = vand.u32 %v3214, 4294901760
      %3216 = vmatpush1.msra.mxu0 %v3215
      %3217 = vmatprep.subr.mxu0 0.0
      %v3218 = vand.u32 %v2475, 4294901760
      %v3219 = vsub.f32 %v2475, %v3218
      %v3220 = vand.u32 %v3219, 4294901760
      %v3221 = vsub.f32 %v3219, %v3220
      %v3222 = vand.u32 %v3221, 4294901760
      %3223 = vmatpush1.msra.mxu0 %v3222
      %3224 = vmatprep.subr.mxu0 0.0
      %v3225 = vand.u32 %v2476, 4294901760
      %v3226 = vsub.f32 %v2476, %v3225
      %v3227 = vand.u32 %v3226, 4294901760
      %v3228 = vsub.f32 %v3226, %v3227
      %v3229 = vand.u32 %v3228, 4294901760
      %3230 = vmatpush1.msra.mxu0 %v3229
      %3231 = vmatprep.subr.mxu0 0.0
      %v3232 = vand.u32 %v2477, 4294901760
      %v3233 = vsub.f32 %v2477, %v3232
      %v3234 = vand.u32 %v3233, 4294901760
      %v3235 = vsub.f32 %v3233, %v3234
      %v3236 = vand.u32 %v3235, 4294901760
      %3237 = vmatpush1.msra.mxu0 %v3236
      %3238 = vmatprep.subr.mxu0 0.0
      %v3239 = vand.u32 %v2478, 4294901760
      %v3240 = vsub.f32 %v2478, %v3239
      %v3241 = vand.u32 %v3240, 4294901760
      %v3242 = vsub.f32 %v3240, %v3241
      %v3243 = vand.u32 %v3242, 4294901760
      %3244 = vmatpush1.msra.mxu0 %v3243
      %3245 = vmatprep.subr.mxu0 0.0
      %v3246 = vand.u32 %v2479, 4294901760
      %v3247 = vsub.f32 %v2479, %v3246
      %v3248 = vand.u32 %v3247, 4294901760
      %v3249 = vsub.f32 %v3247, %v3248
      %v3250 = vand.u32 %v3249, 4294901760
      %3251 = vmatpush1.msra.mxu0 %v3250
      %3252 = vmatprep.subr.mxu0 0.0
      %v3253 = vand.u32 %v2480, 4294901760
      %v3254 = vsub.f32 %v2480, %v3253
      %v3255 = vand.u32 %v3254, 4294901760
      %v3256 = vsub.f32 %v3254, %v3255
      %v3257 = vand.u32 %v3256, 4294901760
      %3258 = vmatpush1.msra.mxu0 %v3257
      %3259 = vmatprep.subr.mxu0 0.0
      %v3260 = vand.u32 %v2481, 4294901760
      %v3261 = vsub.f32 %v2481, %v3260
      %v3262 = vand.u32 %v3261, 4294901760
      %v3263 = vsub.f32 %v3261, %v3262
      %v3264 = vand.u32 %v3263, 4294901760
      %3265 = vmatpush1.msra.mxu0 %v3264
      %3266 = vmatprep.subr.mxu0 0.0
      %v3267 = vand.u32 %v2482, 4294901760
      %v3268 = vsub.f32 %v2482, %v3267
      %v3269 = vand.u32 %v3268, 4294901760
      %v3270 = vsub.f32 %v3268, %v3269
      %v3271 = vand.u32 %v3270, 4294901760
      %3272 = vmatpush1.msra.mxu0 %v3271
      %3273 = vmatprep.subr.mxu0 0.0
      %v3274 = vand.u32 %v2483, 4294901760
      %v3275 = vsub.f32 %v2483, %v3274
      %v3276 = vand.u32 %v3275, 4294901760
      %v3277 = vsub.f32 %v3275, %v3276
      %v3278 = vand.u32 %v3277, 4294901760
      %3279 = vmatpush1.msra.mxu0 %v3278
      %3280 = vmatprep.subr.mxu0 0.0
      %v3281 = vand.u32 %v2484, 4294901760
      %v3282 = vsub.f32 %v2484, %v3281
      %v3283 = vand.u32 %v3282, 4294901760
      %v3284 = vsub.f32 %v3282, %v3283
      %v3285 = vand.u32 %v3284, 4294901760
      %3286 = vmatpush1.msra.mxu0 %v3285
      %3287 = vmatprep.subr.mxu0 0.0
      %v3288 = vand.u32 %v2485, 4294901760
      %v3289 = vsub.f32 %v2485, %v3288
      %v3290 = vand.u32 %v3289, 4294901760
      %v3291 = vsub.f32 %v3289, %v3290
      %v3292 = vand.u32 %v3291, 4294901760
      %3293 = vmatpush1.msra.mxu0 %v3292
      %v3294 = vand.u32 %v2391, 4294901760
      %3295 = vmatprep.mubr.f32.mxu0 %v3294
      %v3296 = vand.u32 %v2390, 4294901760
      %3297 = vmatmul.mubr.f32.gmra.mrb[0].mxu0 %v3296
      %v3298 = vpop.f32.mrb[0].mxu0
      %v3299 = vadd.f32 %v2602, %v3298
      %v3300 = vpop.f32.mrb[0].mxu0
      %v3301 = vand.u32 %v2393, 4294901760
      %3302 = vmatprep.mubr.f32.mxu0 %v3301
      %v3303 = vand.u32 %v2392, 4294901760
      %3304 = vmatmul.mubr.f32.gmra.mrb[0].mxu0 %v3303
      %v3305 = vpop.f32.mrb[0].mxu0
      %v3306 = vadd.f32 %v2617, %v3305
      %v3307 = vpop.f32.mrb[0].mxu0
      %v3308 = vand.u32 %v2395, 4294901760
      %3309 = vmatprep.mubr.f32.mxu0 %v3308
      %v3310 = vand.u32 %v2394, 4294901760
      %3311 = vmatmul.mubr.f32.gmra.mrb[0].mxu0 %v3310
      %v3312 = vpop.f32.mrb[0].mxu0
      %v3313 = vadd.f32 %v2632, %v3312
      %v3314 = vpop.f32.mrb[0].mxu0
      %v3315 = vand.u32 %v2397, 4294901760
      %3316 = vmatprep.mubr.f32.mxu0 %v3315
      %v3317 = vand.u32 %v2396, 4294901760
      %3318 = vmatmul.mubr.f32.gmra.mrb[0].mxu0 %v3317
      %v3319 = vpop.f32.mrb[0].mxu0
      %v3320 = vadd.f32 %v2647, %v3319
      %v3321 = vpop.f32.mrb[0].mxu0
      %v3322 = vand.u32 %v2399, 4294901760
      %3323 = vmatprep.mubr.f32.mxu0 %v3322
      %v3324 = vand.u32 %v2398, 4294901760
      %3325 = vmatmul.mubr.f32.gmra.mrb[0].mxu0 %v3324
      %v3326 = vpop.f32.mrb[0].mxu0
      %v3327 = vadd.f32 %v2662, %v3326
      %v3328 = vpop.f32.mrb[0].mxu0
      %v3329 = vand.u32 %v2401, 4294901760
      %3330 = vmatprep.mubr.f32.mxu0 %v3329
      %v3331 = vand.u32 %v2400, 4294901760
      %3332 = vmatmul.mubr.f32.gmra.mrb[0].mxu0 %v3331
      %v3333 = vpop.f32.mrb[0].mxu0
      %v3334 = vadd.f32 %v2677, %v3333
      %v3335 = vpop.f32.mrb[0].mxu0
      %v3336 = vand.u32 %v2403, 4294901760
      %3337 = vmatprep.mubr.f32.mxu0 %v3336
      %v3338 = vand.u32 %v2402, 4294901760
      %3339 = vmatmul.mubr.f32.gmra.mrb[0].mxu0 %v3338
      %v3340 = vpop.f32.mrb[0].mxu0
      %v3341 = vadd.f32 %v2692, %v3340
      %v3342 = vpop.f32.mrb[0].mxu0
      %v3343 = vand.u32 %v2405, 4294901760
      %3344 = vmatprep.mubr.f32.mxu0 %v3343
      %v3345 = vand.u32 %v2404, 4294901760
      %3346 = vmatmul.mubr.f32.gmra.mrb[0].mxu0 %v3345
      %v3347 = vpop.f32.mrb[0].mxu0
      %v3348 = vadd.f32 %v2707, %v3347
      %v3349 = vpop.f32.mrb[0].mxu0
      %v3350 = vand.u32 %v2407, 4294901760
      %3351 = vmatprep.mubr.f32.mxu0 %v3350
      %v3352 = vand.u32 %v2406, 4294901760
      %3353 = vmatmul.mubr.f32.gmra.mrb[0].mxu0 %v3352
      %v3354 = vpop.f32.mrb[0].mxu0
      %v3355 = vadd.f32 %v2722, %v3354
      %v3356 = vpop.f32.mrb[0].mxu0
      %v3357 = vand.u32 %v2409, 4294901760
      %3358 = vmatprep.mubr.f32.mxu0 %v3357
      %v3359 = vand.u32 %v2408, 4294901760
      %3360 = vmatmul.mubr.f32.gmra.mrb[0].mxu0 %v3359
      %v3361 = vpop.f32.mrb[0].mxu0
      %v3362 = vadd.f32 %v2737, %v3361
      %v3363 = vpop.f32.mrb[0].mxu0
      %v3364 = vand.u32 %v2411, 4294901760
      %3365 = vmatprep.mubr.f32.mxu0 %v3364
      %v3366 = vand.u32 %v2410, 4294901760
      %3367 = vmatmul.mubr.f32.gmra.mrb[0].mxu0 %v3366
      %v3368 = vpop.f32.mrb[0].mxu0
      %v3369 = vadd.f32 %v2752, %v3368
      %v3370 = vpop.f32.mrb[0].mxu0
      %v3371 = vand.u32 %v2413, 4294901760
      %3372 = vmatprep.mubr.f32.mxu0 %v3371
      %v3373 = vand.u32 %v2412, 4294901760
      %3374 = vmatmul.mubr.f32.gmra.mrb[0].mxu0 %v3373
      %v3375 = vpop.f32.mrb[0].mxu0
      %v3376 = vadd.f32 %v2767, %v3375
      %v3377 = vpop.f32.mrb[0].mxu0
      %v3378 = vand.u32 %v2415, 4294901760
      %3379 = vmatprep.mubr.f32.mxu0 %v3378
      %v3380 = vand.u32 %v2414, 4294901760
      %3381 = vmatmul.mubr.f32.gmra.mrb[0].mxu0 %v3380
      %v3382 = vpop.f32.mrb[0].mxu0
      %v3383 = vadd.f32 %v2782, %v3382
      %v3384 = vpop.f32.mrb[0].mxu0
      %v3385 = vand.u32 %v2417, 4294901760
      %3386 = vmatprep.mubr.f32.mxu0 %v3385
      %v3387 = vand.u32 %v2416, 4294901760
      %3388 = vmatmul.mubr.f32.gmra.mrb[0].mxu0 %v3387
      %v3389 = vpop.f32.mrb[0].mxu0
      %v3390 = vadd.f32 %v2797, %v3389
      %v3391 = vpop.f32.mrb[0].mxu0
      %v3392 = vand.u32 %v2419, 4294901760
      %3393 = vmatprep.mubr.f32.mxu0 %v3392
      %v3394 = vand.u32 %v2418, 4294901760
      %3395 = vmatmul.mubr.f32.gmra.mrb[0].mxu0 %v3394
      %v3396 = vpop.f32.mrb[0].mxu0
      %v3397 = vadd.f32 %v2812, %v3396
      %v3398 = vpop.f32.mrb[0].mxu0
      %v3399 = vand.u32 %v2421, 4294901760
      %3400 = vmatprep.mubr.f32.mxu0 %v3399
      %v3401 = vand.u32 %v2420, 4294901760
      %3402 = vmatmul.mubr.f32.gmra.mrb[0].mxu0 %v3401
      %v3403 = vpop.f32.mrb[0].mxu0
      %v3404 = vadd.f32 %v2827, %v3403
      %v3405 = vpop.f32.mrb[0].mxu0
      %v3406 = vand.u32 %v2423, 4294901760
      %3407 = vmatprep.mubr.f32.mxu0 %v3406
      %v3408 = vand.u32 %v2422, 4294901760
      %3409 = vmatmul.mubr.f32.gmra.mrb[0].mxu0 %v3408
      %v3410 = vpop.f32.mrb[0].mxu0
      %v3411 = vadd.f32 %v2842, %v3410
      %v3412 = vpop.f32.mrb[0].mxu0
      %v3413 = vand.u32 %v2425, 4294901760
      %3414 = vmatprep.mubr.f32.mxu0 %v3413
      %v3415 = vand.u32 %v2424, 4294901760
      %3416 = vmatmul.mubr.f32.gmra.mrb[0].mxu0 %v3415
      %v3417 = vpop.f32.mrb[0].mxu0
      %v3418 = vadd.f32 %v2857, %v3417
      %v3419 = vpop.f32.mrb[0].mxu0
      %v3420 = vand.u32 %v2427, 4294901760
      %3421 = vmatprep.mubr.f32.mxu0 %v3420
      %v3422 = vand.u32 %v2426, 4294901760
      %3423 = vmatmul.mubr.f32.gmra.mrb[0].mxu0 %v3422
      %v3424 = vpop.f32.mrb[0].mxu0
      %v3425 = vadd.f32 %v2872, %v3424
      %v3426 = vpop.f32.mrb[0].mxu0
      %v3427 = vand.u32 %v2429, 4294901760
      %3428 = vmatprep.mubr.f32.mxu0 %v3427
      %v3429 = vand.u32 %v2428, 4294901760
      %3430 = vmatmul.mubr.f32.gmra.mrb[0].mxu0 %v3429
      %v3431 = vpop.f32.mrb[0].mxu0
      %v3432 = vadd.f32 %v2887, %v3431
      %v3433 = vpop.f32.mrb[0].mxu0
      %v3434 = vand.u32 %v2431, 4294901760
      %3435 = vmatprep.mubr.f32.mxu0 %v3434
      %v3436 = vand.u32 %v2430, 4294901760
      %3437 = vmatmul.mubr.f32.gmra.mrb[0].mxu0 %v3436
      %v3438 = vpop.f32.mrb[0].mxu0
      %v3439 = vadd.f32 %v2902, %v3438
      %v3440 = vpop.f32.mrb[0].mxu0
      %v3441 = vand.u32 %v2433, 4294901760
      %3442 = vmatprep.mubr.f32.mxu0 %v3441
      %v3443 = vand.u32 %v2432, 4294901760
      %3444 = vmatmul.mubr.f32.gmra.mrb[0].mxu0 %v3443
      %v3445 = vpop.f32.mrb[0].mxu0
      %v3446 = vadd.f32 %v2917, %v3445
      %v3447 = vpop.f32.mrb[0].mxu0
      %v3448 = vand.u32 %v2435, 4294901760
      %3449 = vmatprep.mubr.f32.mxu0 %v3448
      %v3450 = vand.u32 %v2434, 4294901760
      %3451 = vmatmul.mubr.f32.gmra.mrb[0].mxu0 %v3450
      %v3452 = vpop.f32.mrb[0].mxu0
      %v3453 = vadd.f32 %v2932, %v3452
      %v3454 = vpop.f32.mrb[0].mxu0
      %v3455 = vand.u32 %v2437, 4294901760
      %3456 = vmatprep.mubr.f32.mxu0 %v3455
      %v3457 = vand.u32 %v2436, 4294901760
      %3458 = vmatmul.mubr.f32.gmra.mrb[0].mxu0 %v3457
      %v3459 = vpop.f32.mrb[0].mxu0
      %v3460 = vadd.f32 %v2947, %v3459
      %v3461 = vpop.f32.mrb[0].mxu0
      %v3462 = vand.u32 %v2439, 4294901760
      %3463 = vmatprep.mubr.f32.mxu0 %v3462
      %v3464 = vand.u32 %v2438, 4294901760
      %3465 = vmatmul.mubr.f32.gmra.mrb[0].mxu0 %v3464
      %v3466 = vpop.f32.mrb[0].mxu0
      %v3467 = vadd.f32 %v2962, %v3466
      %v3468 = vpop.f32.mrb[0].mxu0
      %v3469 = vand.u32 %v2441, 4294901760
      %3470 = vmatprep.mubr.f32.mxu0 %v3469
      %v3471 = vand.u32 %v2440, 4294901760
      %3472 = vmatmul.mubr.f32.gmra.mrb[0].mxu0 %v3471
      %v3473 = vpop.f32.mrb[0].mxu0
      %v3474 = vadd.f32 %v2977, %v3473
      %v3475 = vpop.f32.mrb[0].mxu0
      %v3476 = vand.u32 %v2443, 4294901760
      %3477 = vmatprep.mubr.f32.mxu0 %v3476
      %v3478 = vand.u32 %v2442, 4294901760
      %3479 = vmatmul.mubr.f32.gmra.mrb[0].mxu0 %v3478
      %v3480 = vpop.f32.mrb[0].mxu0
      %v3481 = vadd.f32 %v2992, %v3480
      %v3482 = vpop.f32.mrb[0].mxu0
      %v3483 = vand.u32 %v2445, 4294901760
      %3484 = vmatprep.mubr.f32.mxu0 %v3483
      %v3485 = vand.u32 %v2444, 4294901760
      %3486 = vmatmul.mubr.f32.gmra.mrb[0].mxu0 %v3485
      %v3487 = vpop.f32.mrb[0].mxu0
      %v3488 = vadd.f32 %v3007, %v3487
      %v3489 = vpop.f32.mrb[0].mxu0
      %v3490 = vand.u32 %v2447, 4294901760
      %3491 = vmatprep.mubr.f32.mxu0 %v3490
      %v3492 = vand.u32 %v2446, 4294901760
      %3493 = vmatmul.mubr.f32.gmra.mrb[0].mxu0 %v3492
      %v3494 = vpop.f32.mrb[0].mxu0
      %v3495 = vadd.f32 %v3022, %v3494
      %v3496 = vpop.f32.mrb[0].mxu0
      %v3497 = vand.u32 %v2449, 4294901760
      %3498 = vmatprep.mubr.f32.mxu0 %v3497
      %v3499 = vand.u32 %v2448, 4294901760
      %3500 = vmatmul.mubr.f32.gmra.mrb[0].mxu0 %v3499
      %v3501 = vpop.f32.mrb[0].mxu0
      %v3502 = vadd.f32 %v3037, %v3501
      %v3503 = vpop.f32.mrb[0].mxu0
      %v3504 = vand.u32 %v2451, 4294901760
      %3505 = vmatprep.mubr.f32.mxu0 %v3504
      %v3506 = vand.u32 %v2450, 4294901760
      %3507 = vmatmul.mubr.f32.gmra.mrb[0].mxu0 %v3506
      %v3508 = vpop.f32.mrb[0].mxu0
      %v3509 = vadd.f32 %v3052, %v3508
      %v3510 = vpop.f32.mrb[0].mxu0
      %v3511 = vand.u32 %v2453, 4294901760
      %3512 = vmatprep.mubr.f32.mxu0 %v3511
      %v3513 = vand.u32 %v2452, 4294901760
      %3514 = vmatmul.mubr.f32.gmra.mrb[0].mxu0 %v3513
      %v3515 = vpop.f32.mrb[0].mxu0
      %v3516 = vadd.f32 %v3067, %v3515
      %v3517 = vpop.f32.mrb[0].mxu0
      %3518 = vdwg.mxu0
      %3519 = vmatprep.subr.mxu0 0.0
      %v3520 = vand.u32 %v2454, 4294901760
      %v3521 = vsub.f32 %v2454, %v3520
      %3522 = vmatpush1.msra.mxu0 %v3521
      %3523 = vmatprep.subr.mxu0 0.0
      %v3524 = vand.u32 %v2455, 4294901760
      %v3525 = vsub.f32 %v2455, %v3524
      %3526 = vmatpush1.msra.mxu0 %v3525
      %3527 = vmatprep.subr.mxu0 0.0
      %v3528 = vand.u32 %v2456, 4294901760
      %v3529 = vsub.f32 %v2456, %v3528
      %3530 = vmatpush1.msra.mxu0 %v3529
      %3531 = vmatprep.subr.mxu0 0.0
      %v3532 = vand.u32 %v2457, 4294901760
      %v3533 = vsub.f32 %v2457, %v3532
      %3534 = vmatpush1.msra.mxu0 %v3533
      %3535 = vmatprep.subr.mxu0 0.0
      %v3536 = vand.u32 %v2458, 4294901760
      %v3537 = vsub.f32 %v2458, %v3536
      %3538 = vmatpush1.msra.mxu0 %v3537
      %3539 = vmatprep.subr.mxu0 0.0
      %v3540 = vand.u32 %v2459, 4294901760
      %v3541 = vsub.f32 %v2459, %v3540
      %3542 = vmatpush1.msra.mxu0 %v3541
      %3543 = vmatprep.subr.mxu0 0.0
      %v3544 = vand.u32 %v2460, 4294901760
      %v3545 = vsub.f32 %v2460, %v3544
      %3546 = vmatpush1.msra.mxu0 %v3545
      %3547 = vmatprep.subr.mxu0 0.0
      %v3548 = vand.u32 %v2461, 4294901760
      %v3549 = vsub.f32 %v2461, %v3548
      %3550 = vmatpush1.msra.mxu0 %v3549
      %3551 = vmatprep.subr.mxu0 0.0
      %v3552 = vand.u32 %v2462, 4294901760
      %v3553 = vsub.f32 %v2462, %v3552
      %3554 = vmatpush1.msra.mxu0 %v3553
      %3555 = vmatprep.subr.mxu0 0.0
      %v3556 = vand.u32 %v2463, 4294901760
      %v3557 = vsub.f32 %v2463, %v3556
      %3558 = vmatpush1.msra.mxu0 %v3557
      %3559 = vmatprep.subr.mxu0 0.0
      %v3560 = vand.u32 %v2464, 4294901760
      %v3561 = vsub.f32 %v2464, %v3560
      %3562 = vmatpush1.msra.mxu0 %v3561
      %3563 = vmatprep.subr.mxu0 0.0
      %v3564 = vand.u32 %v2465, 4294901760
      %v3565 = vsub.f32 %v2465, %v3564
      %3566 = vmatpush1.msra.mxu0 %v3565
      %3567 = vmatprep.subr.mxu0 0.0
      %v3568 = vand.u32 %v2466, 4294901760
      %v3569 = vsub.f32 %v2466, %v3568
      %3570 = vmatpush1.msra.mxu0 %v3569
      %3571 = vmatprep.subr.mxu0 0.0
      %v3572 = vand.u32 %v2467, 4294901760
      %v3573 = vsub.f32 %v2467, %v3572
      %3574 = vmatpush1.msra.mxu0 %v3573
      %3575 = vmatprep.subr.mxu0 0.0
      %v3576 = vand.u32 %v2468, 4294901760
      %v3577 = vsub.f32 %v2468, %v3576
      %3578 = vmatpush1.msra.mxu0 %v3577
      %3579 = vmatprep.subr.mxu0 0.0
      %v3580 = vand.u32 %v2469, 4294901760
      %v3581 = vsub.f32 %v2469, %v3580
      %3582 = vmatpush1.msra.mxu0 %v3581
      %3583 = vmatprep.subr.mxu0 0.0
      %v3584 = vand.u32 %v2470, 4294901760
      %v3585 = vsub.f32 %v2470, %v3584
      %3586 = vmatpush1.msra.mxu0 %v3585
      %3587 = vmatprep.subr.mxu0 0.0
      %v3588 = vand.u32 %v2471, 4294901760
      %v3589 = vsub.f32 %v2471, %v3588
      %3590 = vmatpush1.msra.mxu0 %v3589
      %3591 = vmatprep.subr.mxu0 0.0
      %v3592 = vand.u32 %v2472, 4294901760
      %v3593 = vsub.f32 %v2472, %v3592
      %3594 = vmatpush1.msra.mxu0 %v3593
      %3595 = vmatprep.subr.mxu0 0.0
      %v3596 = vand.u32 %v2473, 4294901760
      %v3597 = vsub.f32 %v2473, %v3596
      %3598 = vmatpush1.msra.mxu0 %v3597
      %3599 = vmatprep.subr.mxu0 0.0
      %v3600 = vand.u32 %v2474, 4294901760
      %v3601 = vsub.f32 %v2474, %v3600
      %3602 = vmatpush1.msra.mxu0 %v3601
      %3603 = vmatprep.subr.mxu0 0.0
      %v3604 = vand.u32 %v2475, 4294901760
      %v3605 = vsub.f32 %v2475, %v3604
      %3606 = vmatpush1.msra.mxu0 %v3605
      %3607 = vmatprep.subr.mxu0 0.0
      %v3608 = vand.u32 %v2476, 4294901760
      %v3609 = vsub.f32 %v2476, %v3608
      %3610 = vmatpush1.msra.mxu0 %v3609
      %3611 = vmatprep.subr.mxu0 0.0
      %v3612 = vand.u32 %v2477, 4294901760
      %v3613 = vsub.f32 %v2477, %v3612
      %3614 = vmatpush1.msra.mxu0 %v3613
      %3615 = vmatprep.subr.mxu0 0.0
      %v3616 = vand.u32 %v2478, 4294901760
      %v3617 = vsub.f32 %v2478, %v3616
      %3618 = vmatpush1.msra.mxu0 %v3617
      %3619 = vmatprep.subr.mxu0 0.0
      %v3620 = vand.u32 %v2479, 4294901760
      %v3621 = vsub.f32 %v2479, %v3620
      %3622 = vmatpush1.msra.mxu0 %v3621
      %3623 = vmatprep.subr.mxu0 0.0
      %v3624 = vand.u32 %v2480, 4294901760
      %v3625 = vsub.f32 %v2480, %v3624
      %3626 = vmatpush1.msra.mxu0 %v3625
      %3627 = vmatprep.subr.mxu0 0.0
      %v3628 = vand.u32 %v2481, 4294901760
      %v3629 = vsub.f32 %v2481, %v3628
      %3630 = vmatpush1.msra.mxu0 %v3629
      %3631 = vmatprep.subr.mxu0 0.0
      %v3632 = vand.u32 %v2482, 4294901760
      %v3633 = vsub.f32 %v2482, %v3632
      %3634 = vmatpush1.msra.mxu0 %v3633
      %3635 = vmatprep.subr.mxu0 0.0
      %v3636 = vand.u32 %v2483, 4294901760
      %v3637 = vsub.f32 %v2483, %v3636
      %3638 = vmatpush1.msra.mxu0 %v3637
      %3639 = vmatprep.subr.mxu0 0.0
      %v3640 = vand.u32 %v2484, 4294901760
      %v3641 = vsub.f32 %v2484, %v3640
      %3642 = vmatpush1.msra.mxu0 %v3641
      %3643 = vmatprep.subr.mxu0 0.0
      %v3644 = vand.u32 %v2485, 4294901760
      %v3645 = vsub.f32 %v2485, %v3644
      %3646 = vmatpush1.msra.mxu0 %v3645
      %v3647 = vand.u32 %v2391, 4294901760
      %v3648 = vsub.f32 %v2391, %v3647
      %3649 = vmatprep.mubr.f32.mxu0 %v3648
      %v3650 = vand.u32 %v2390, 4294901760
      %v3651 = vsub.f32 %v2390, %v3650
      %3652 = vmatmul.mubr.f32.gmra.mrb[0].mxu0 %v3651
      %v3653 = vpop.f32.mrb[0].mxu0
      %v3654 = vadd.f32 %v3299, %v3653
      %v3655 = vpop.f32.mrb[0].mxu0
      %v3656 = vand.u32 %v2393, 4294901760
      %v3657 = vsub.f32 %v2393, %v3656
      %3658 = vmatprep.mubr.f32.mxu0 %v3657
      %v3659 = vand.u32 %v2392, 4294901760
      %v3660 = vsub.f32 %v2392, %v3659
      %3661 = vmatmul.mubr.f32.gmra.mrb[0].mxu0 %v3660
      %v3662 = vpop.f32.mrb[0].mxu0
      %v3663 = vadd.f32 %v3306, %v3662
      %v3664 = vpop.f32.mrb[0].mxu0
      %v3665 = vand.u32 %v2395, 4294901760
      %v3666 = vsub.f32 %v2395, %v3665
      %3667 = vmatprep.mubr.f32.mxu0 %v3666
      %v3668 = vand.u32 %v2394, 4294901760
      %v3669 = vsub.f32 %v2394, %v3668
      %3670 = vmatmul.mubr.f32.gmra.mrb[0].mxu0 %v3669
      %v3671 = vpop.f32.mrb[0].mxu0
      %v3672 = vadd.f32 %v3313, %v3671
      %v3673 = vpop.f32.mrb[0].mxu0
      %v3674 = vand.u32 %v2397, 4294901760
      %v3675 = vsub.f32 %v2397, %v3674
      %3676 = vmatprep.mubr.f32.mxu0 %v3675
      %v3677 = vand.u32 %v2396, 4294901760
      %v3678 = vsub.f32 %v2396, %v3677
      %3679 = vmatmul.mubr.f32.gmra.mrb[0].mxu0 %v3678
      %v3680 = vpop.f32.mrb[0].mxu0
      %v3681 = vadd.f32 %v3320, %v3680
      %v3682 = vpop.f32.mrb[0].mxu0
      %v3683 = vand.u32 %v2399, 4294901760
      %v3684 = vsub.f32 %v2399, %v3683
      %3685 = vmatprep.mubr.f32.mxu0 %v3684
      %v3686 = vand.u32 %v2398, 4294901760
      %v3687 = vsub.f32 %v2398, %v3686
      %3688 = vmatmul.mubr.f32.gmra.mrb[0].mxu0 %v3687
      %v3689 = vpop.f32.mrb[0].mxu0
      %v3690 = vadd.f32 %v3327, %v3689
      %v3691 = vpop.f32.mrb[0].mxu0
      %v3692 = vand.u32 %v2401, 4294901760
      %v3693 = vsub.f32 %v2401, %v3692
      %3694 = vmatprep.mubr.f32.mxu0 %v3693
      %v3695 = vand.u32 %v2400, 4294901760
      %v3696 = vsub.f32 %v2400, %v3695
      %3697 = vmatmul.mubr.f32.gmra.mrb[0].mxu0 %v3696
      %v3698 = vpop.f32.mrb[0].mxu0
      %v3699 = vadd.f32 %v3334, %v3698
      %v3700 = vpop.f32.mrb[0].mxu0
      %v3701 = vand.u32 %v2403, 4294901760
      %v3702 = vsub.f32 %v2403, %v3701
      %3703 = vmatprep.mubr.f32.mxu0 %v3702
      %v3704 = vand.u32 %v2402, 4294901760
      %v3705 = vsub.f32 %v2402, %v3704
      %3706 = vmatmul.mubr.f32.gmra.mrb[0].mxu0 %v3705
      %v3707 = vpop.f32.mrb[0].mxu0
      %v3708 = vadd.f32 %v3341, %v3707
      %v3709 = vpop.f32.mrb[0].mxu0
      %v3710 = vand.u32 %v2405, 4294901760
      %v3711 = vsub.f32 %v2405, %v3710
      %3712 = vmatprep.mubr.f32.mxu0 %v3711
      %v3713 = vand.u32 %v2404, 4294901760
      %v3714 = vsub.f32 %v2404, %v3713
      %3715 = vmatmul.mubr.f32.gmra.mrb[0].mxu0 %v3714
      %v3716 = vpop.f32.mrb[0].mxu0
      %v3717 = vadd.f32 %v3348, %v3716
      %v3718 = vpop.f32.mrb[0].mxu0
      %v3719 = vand.u32 %v2407, 4294901760
      %v3720 = vsub.f32 %v2407, %v3719
      %3721 = vmatprep.mubr.f32.mxu0 %v3720
      %v3722 = vand.u32 %v2406, 4294901760
      %v3723 = vsub.f32 %v2406, %v3722
      %3724 = vmatmul.mubr.f32.gmra.mrb[0].mxu0 %v3723
      %v3725 = vpop.f32.mrb[0].mxu0
      %v3726 = vadd.f32 %v3355, %v3725
      %v3727 = vpop.f32.mrb[0].mxu0
      %v3728 = vand.u32 %v2409, 4294901760
      %v3729 = vsub.f32 %v2409, %v3728
      %3730 = vmatprep.mubr.f32.mxu0 %v3729
      %v3731 = vand.u32 %v2408, 4294901760
      %v3732 = vsub.f32 %v2408, %v3731
      %3733 = vmatmul.mubr.f32.gmra.mrb[0].mxu0 %v3732
      %v3734 = vpop.f32.mrb[0].mxu0
      %v3735 = vadd.f32 %v3362, %v3734
      %v3736 = vpop.f32.mrb[0].mxu0
      %v3737 = vand.u32 %v2411, 4294901760
      %v3738 = vsub.f32 %v2411, %v3737
      %3739 = vmatprep.mubr.f32.mxu0 %v3738
      %v3740 = vand.u32 %v2410, 4294901760
      %v3741 = vsub.f32 %v2410, %v3740
      %3742 = vmatmul.mubr.f32.gmra.mrb[0].mxu0 %v3741
      %v3743 = vpop.f32.mrb[0].mxu0
      %v3744 = vadd.f32 %v3369, %v3743
      %v3745 = vpop.f32.mrb[0].mxu0
      %v3746 = vand.u32 %v2413, 4294901760
      %v3747 = vsub.f32 %v2413, %v3746
      %3748 = vmatprep.mubr.f32.mxu0 %v3747
      %v3749 = vand.u32 %v2412, 4294901760
      %v3750 = vsub.f32 %v2412, %v3749
      %3751 = vmatmul.mubr.f32.gmra.mrb[0].mxu0 %v3750
      %v3752 = vpop.f32.mrb[0].mxu0
      %v3753 = vadd.f32 %v3376, %v3752
      %v3754 = vpop.f32.mrb[0].mxu0
      %v3755 = vand.u32 %v2415, 4294901760
      %v3756 = vsub.f32 %v2415, %v3755
      %3757 = vmatprep.mubr.f32.mxu0 %v3756
      %v3758 = vand.u32 %v2414, 4294901760
      %v3759 = vsub.f32 %v2414, %v3758
      %3760 = vmatmul.mubr.f32.gmra.mrb[0].mxu0 %v3759
      %v3761 = vpop.f32.mrb[0].mxu0
      %v3762 = vadd.f32 %v3383, %v3761
      %v3763 = vpop.f32.mrb[0].mxu0
      %v3764 = vand.u32 %v2417, 4294901760
      %v3765 = vsub.f32 %v2417, %v3764
      %3766 = vmatprep.mubr.f32.mxu0 %v3765
      %v3767 = vand.u32 %v2416, 4294901760
      %v3768 = vsub.f32 %v2416, %v3767
      %3769 = vmatmul.mubr.f32.gmra.mrb[0].mxu0 %v3768
      %v3770 = vpop.f32.mrb[0].mxu0
      %v3771 = vadd.f32 %v3390, %v3770
      %v3772 = vpop.f32.mrb[0].mxu0
      %v3773 = vand.u32 %v2419, 4294901760
      %v3774 = vsub.f32 %v2419, %v3773
      %3775 = vmatprep.mubr.f32.mxu0 %v3774
      %v3776 = vand.u32 %v2418, 4294901760
      %v3777 = vsub.f32 %v2418, %v3776
      %3778 = vmatmul.mubr.f32.gmra.mrb[0].mxu0 %v3777
      %v3779 = vpop.f32.mrb[0].mxu0
      %v3780 = vadd.f32 %v3397, %v3779
      %v3781 = vpop.f32.mrb[0].mxu0
      %v3782 = vand.u32 %v2421, 4294901760
      %v3783 = vsub.f32 %v2421, %v3782
      %3784 = vmatprep.mubr.f32.mxu0 %v3783
      %v3785 = vand.u32 %v2420, 4294901760
      %v3786 = vsub.f32 %v2420, %v3785
      %3787 = vmatmul.mubr.f32.gmra.mrb[0].mxu0 %v3786
      %v3788 = vpop.f32.mrb[0].mxu0
      %v3789 = vadd.f32 %v3404, %v3788
      %v3790 = vpop.f32.mrb[0].mxu0
      %v3791 = vand.u32 %v2423, 4294901760
      %v3792 = vsub.f32 %v2423, %v3791
      %3793 = vmatprep.mubr.f32.mxu0 %v3792
      %v3794 = vand.u32 %v2422, 4294901760
      %v3795 = vsub.f32 %v2422, %v3794
      %3796 = vmatmul.mubr.f32.gmra.mrb[0].mxu0 %v3795
      %v3797 = vpop.f32.mrb[0].mxu0
      %v3798 = vadd.f32 %v3411, %v3797
      %v3799 = vpop.f32.mrb[0].mxu0
      %v3800 = vand.u32 %v2425, 4294901760
      %v3801 = vsub.f32 %v2425, %v3800
      %3802 = vmatprep.mubr.f32.mxu0 %v3801
      %v3803 = vand.u32 %v2424, 4294901760
      %v3804 = vsub.f32 %v2424, %v3803
      %3805 = vmatmul.mubr.f32.gmra.mrb[0].mxu0 %v3804
      %v3806 = vpop.f32.mrb[0].mxu0
      %v3807 = vadd.f32 %v3418, %v3806
      %v3808 = vpop.f32.mrb[0].mxu0
      %v3809 = vand.u32 %v2427, 4294901760
      %v3810 = vsub.f32 %v2427, %v3809
      %3811 = vmatprep.mubr.f32.mxu0 %v3810
      %v3812 = vand.u32 %v2426, 4294901760
      %v3813 = vsub.f32 %v2426, %v3812
      %3814 = vmatmul.mubr.f32.gmra.mrb[0].mxu0 %v3813
      %v3815 = vpop.f32.mrb[0].mxu0
      %v3816 = vadd.f32 %v3425, %v3815
      %v3817 = vpop.f32.mrb[0].mxu0
      %v3818 = vand.u32 %v2429, 4294901760
      %v3819 = vsub.f32 %v2429, %v3818
      %3820 = vmatprep.mubr.f32.mxu0 %v3819
      %v3821 = vand.u32 %v2428, 4294901760
      %v3822 = vsub.f32 %v2428, %v3821
      %3823 = vmatmul.mubr.f32.gmra.mrb[0].mxu0 %v3822
      %v3824 = vpop.f32.mrb[0].mxu0
      %v3825 = vadd.f32 %v3432, %v3824
      %v3826 = vpop.f32.mrb[0].mxu0
      %v3827 = vand.u32 %v2431, 4294901760
      %v3828 = vsub.f32 %v2431, %v3827
      %3829 = vmatprep.mubr.f32.mxu0 %v3828
      %v3830 = vand.u32 %v2430, 4294901760
      %v3831 = vsub.f32 %v2430, %v3830
      %3832 = vmatmul.mubr.f32.gmra.mrb[0].mxu0 %v3831
      %v3833 = vpop.f32.mrb[0].mxu0
      %v3834 = vadd.f32 %v3439, %v3833
      %v3835 = vpop.f32.mrb[0].mxu0
      %v3836 = vand.u32 %v2433, 4294901760
      %v3837 = vsub.f32 %v2433, %v3836
      %3838 = vmatprep.mubr.f32.mxu0 %v3837
      %v3839 = vand.u32 %v2432, 4294901760
      %v3840 = vsub.f32 %v2432, %v3839
      %3841 = vmatmul.mubr.f32.gmra.mrb[0].mxu0 %v3840
      %v3842 = vpop.f32.mrb[0].mxu0
      %v3843 = vadd.f32 %v3446, %v3842
      %v3844 = vpop.f32.mrb[0].mxu0
      %v3845 = vand.u32 %v2435, 4294901760
      %v3846 = vsub.f32 %v2435, %v3845
      %3847 = vmatprep.mubr.f32.mxu0 %v3846
      %v3848 = vand.u32 %v2434, 4294901760
      %v3849 = vsub.f32 %v2434, %v3848
      %3850 = vmatmul.mubr.f32.gmra.mrb[0].mxu0 %v3849
      %v3851 = vpop.f32.mrb[0].mxu0
      %v3852 = vadd.f32 %v3453, %v3851
      %v3853 = vpop.f32.mrb[0].mxu0
      %v3854 = vand.u32 %v2437, 4294901760
      %v3855 = vsub.f32 %v2437, %v3854
      %3856 = vmatprep.mubr.f32.mxu0 %v3855
      %v3857 = vand.u32 %v2436, 4294901760
      %v3858 = vsub.f32 %v2436, %v3857
      %3859 = vmatmul.mubr.f32.gmra.mrb[0].mxu0 %v3858
      %v3860 = vpop.f32.mrb[0].mxu0
      %v3861 = vadd.f32 %v3460, %v3860
      %v3862 = vpop.f32.mrb[0].mxu0
      %v3863 = vand.u32 %v2439, 4294901760
      %v3864 = vsub.f32 %v2439, %v3863
      %3865 = vmatprep.mubr.f32.mxu0 %v3864
      %v3866 = vand.u32 %v2438, 4294901760
      %v3867 = vsub.f32 %v2438, %v3866
      %3868 = vmatmul.mubr.f32.gmra.mrb[0].mxu0 %v3867
      %v3869 = vpop.f32.mrb[0].mxu0
      %v3870 = vadd.f32 %v3467, %v3869
      %v3871 = vpop.f32.mrb[0].mxu0
      %v3872 = vand.u32 %v2441, 4294901760
      %v3873 = vsub.f32 %v2441, %v3872
      %3874 = vmatprep.mubr.f32.mxu0 %v3873
      %v3875 = vand.u32 %v2440, 4294901760
      %v3876 = vsub.f32 %v2440, %v3875
      %3877 = vmatmul.mubr.f32.gmra.mrb[0].mxu0 %v3876
      %v3878 = vpop.f32.mrb[0].mxu0
      %v3879 = vadd.f32 %v3474, %v3878
      %v3880 = vpop.f32.mrb[0].mxu0
      %v3881 = vand.u32 %v2443, 4294901760
      %v3882 = vsub.f32 %v2443, %v3881
      %3883 = vmatprep.mubr.f32.mxu0 %v3882
      %v3884 = vand.u32 %v2442, 4294901760
      %v3885 = vsub.f32 %v2442, %v3884
      %3886 = vmatmul.mubr.f32.gmra.mrb[0].mxu0 %v3885
      %v3887 = vpop.f32.mrb[0].mxu0
      %v3888 = vadd.f32 %v3481, %v3887
      %v3889 = vpop.f32.mrb[0].mxu0
      %v3890 = vand.u32 %v2445, 4294901760
      %v3891 = vsub.f32 %v2445, %v3890
      %3892 = vmatprep.mubr.f32.mxu0 %v3891
      %v3893 = vand.u32 %v2444, 4294901760
      %v3894 = vsub.f32 %v2444, %v3893
      %3895 = vmatmul.mubr.f32.gmra.mrb[0].mxu0 %v3894
      %v3896 = vpop.f32.mrb[0].mxu0
      %v3897 = vadd.f32 %v3488, %v3896
      %v3898 = vpop.f32.mrb[0].mxu0
      %v3899 = vand.u32 %v2447, 4294901760
      %v3900 = vsub.f32 %v2447, %v3899
      %3901 = vmatprep.mubr.f32.mxu0 %v3900
      %v3902 = vand.u32 %v2446, 4294901760
      %v3903 = vsub.f32 %v2446, %v3902
      %3904 = vmatmul.mubr.f32.gmra.mrb[0].mxu0 %v3903
      %v3905 = vpop.f32.mrb[0].mxu0
      %v3906 = vadd.f32 %v3495, %v3905
      %v3907 = vpop.f32.mrb[0].mxu0
      %v3908 = vand.u32 %v2449, 4294901760
      %v3909 = vsub.f32 %v2449, %v3908
      %3910 = vmatprep.mubr.f32.mxu0 %v3909
      %v3911 = vand.u32 %v2448, 4294901760
      %v3912 = vsub.f32 %v2448, %v3911
      %3913 = vmatmul.mubr.f32.gmra.mrb[0].mxu0 %v3912
      %v3914 = vpop.f32.mrb[0].mxu0
      %v3915 = vadd.f32 %v3502, %v3914
      %v3916 = vpop.f32.mrb[0].mxu0
      %v3917 = vand.u32 %v2451, 4294901760
      %v3918 = vsub.f32 %v2451, %v3917
      %3919 = vmatprep.mubr.f32.mxu0 %v3918
      %v3920 = vand.u32 %v2450, 4294901760
      %v3921 = vsub.f32 %v2450, %v3920
      %3922 = vmatmul.mubr.f32.gmra.mrb[0].mxu0 %v3921
      %v3923 = vpop.f32.mrb[0].mxu0
      %v3924 = vadd.f32 %v3509, %v3923
      %v3925 = vpop.f32.mrb[0].mxu0
      %v3926 = vand.u32 %v2453, 4294901760
      %v3927 = vsub.f32 %v2453, %v3926
      %3928 = vmatprep.mubr.f32.mxu0 %v3927
      %v3929 = vand.u32 %v2452, 4294901760
      %v3930 = vsub.f32 %v2452, %v3929
      %3931 = vmatmul.mubr.f32.gmra.mrb[0].mxu0 %v3930
      %v3932 = vpop.f32.mrb[0].mxu0
      %v3933 = vadd.f32 %v3516, %v3932
      %v3934 = vpop.f32.mrb[0].mxu0
      %3935 = vdwg.mxu0
      %3936 = vmatprep.subr.mxu0 0.0
      %v3937 = vand.u32 %v2454, 4294901760
      %3938 = vmatpush1.msra.mxu0 %v3937
      %3939 = vmatprep.subr.mxu0 0.0
      %v3940 = vand.u32 %v2455, 4294901760
      %3941 = vmatpush1.msra.mxu0 %v3940
      %3942 = vmatprep.subr.mxu0 0.0
      %v3943 = vand.u32 %v2456, 4294901760
      %3944 = vmatpush1.msra.mxu0 %v3943
      %3945 = vmatprep.subr.mxu0 0.0
      %v3946 = vand.u32 %v2457, 4294901760
      %3947 = vmatpush1.msra.mxu0 %v3946
      %3948 = vmatprep.subr.mxu0 0.0
      %v3949 = vand.u32 %v2458, 4294901760
      %3950 = vmatpush1.msra.mxu0 %v3949
      %3951 = vmatprep.subr.mxu0 0.0
      %v3952 = vand.u32 %v2459, 4294901760
      %3953 = vmatpush1.msra.mxu0 %v3952
      %3954 = vmatprep.subr.mxu0 0.0
      %v3955 = vand.u32 %v2460, 4294901760
      %3956 = vmatpush1.msra.mxu0 %v3955
      %3957 = vmatprep.subr.mxu0 0.0
      %v3958 = vand.u32 %v2461, 4294901760
      %3959 = vmatpush1.msra.mxu0 %v3958
      %3960 = vmatprep.subr.mxu0 0.0
      %v3961 = vand.u32 %v2462, 4294901760
      %3962 = vmatpush1.msra.mxu0 %v3961
      %3963 = vmatprep.subr.mxu0 0.0
      %v3964 = vand.u32 %v2463, 4294901760
      %3965 = vmatpush1.msra.mxu0 %v3964
      %3966 = vmatprep.subr.mxu0 0.0
      %v3967 = vand.u32 %v2464, 4294901760
      %3968 = vmatpush1.msra.mxu0 %v3967
      %3969 = vmatprep.subr.mxu0 0.0
      %v3970 = vand.u32 %v2465, 4294901760
      %3971 = vmatpush1.msra.mxu0 %v3970
      %3972 = vmatprep.subr.mxu0 0.0
      %v3973 = vand.u32 %v2466, 4294901760
      %3974 = vmatpush1.msra.mxu0 %v3973
      %3975 = vmatprep.subr.mxu0 0.0
      %v3976 = vand.u32 %v2467, 4294901760
      %3977 = vmatpush1.msra.mxu0 %v3976
      %3978 = vmatprep.subr.mxu0 0.0
      %v3979 = vand.u32 %v2468, 4294901760
      %3980 = vmatpush1.msra.mxu0 %v3979
      %3981 = vmatprep.subr.mxu0 0.0
      %v3982 = vand.u32 %v2469, 4294901760
      %3983 = vmatpush1.msra.mxu0 %v3982
      %3984 = vmatprep.subr.mxu0 0.0
      %v3985 = vand.u32 %v2470, 4294901760
      %3986 = vmatpush1.msra.mxu0 %v3985
      %3987 = vmatprep.subr.mxu0 0.0
      %v3988 = vand.u32 %v2471, 4294901760
      %3989 = vmatpush1.msra.mxu0 %v3988
      %3990 = vmatprep.subr.mxu0 0.0
      %v3991 = vand.u32 %v2472, 4294901760
      %3992 = vmatpush1.msra.mxu0 %v3991
      %3993 = vmatprep.subr.mxu0 0.0
      %v3994 = vand.u32 %v2473, 4294901760
      %3995 = vmatpush1.msra.mxu0 %v3994
      %3996 = vmatprep.subr.mxu0 0.0
      %v3997 = vand.u32 %v2474, 4294901760
      %3998 = vmatpush1.msra.mxu0 %v3997
      %3999 = vmatprep.subr.mxu0 0.0
      %v4000 = vand.u32 %v2475, 4294901760
      %4001 = vmatpush1.msra.mxu0 %v4000
      %4002 = vmatprep.subr.mxu0 0.0
      %v4003 = vand.u32 %v2476, 4294901760
      %4004 = vmatpush1.msra.mxu0 %v4003
      %4005 = vmatprep.subr.mxu0 0.0
      %v4006 = vand.u32 %v2477, 4294901760
      %4007 = vmatpush1.msra.mxu0 %v4006
      %4008 = vmatprep.subr.mxu0 0.0
      %v4009 = vand.u32 %v2478, 4294901760
      %4010 = vmatpush1.msra.mxu0 %v4009
      %4011 = vmatprep.subr.mxu0 0.0
      %v4012 = vand.u32 %v2479, 4294901760
      %4013 = vmatpush1.msra.mxu0 %v4012
      %4014 = vmatprep.subr.mxu0 0.0
      %v4015 = vand.u32 %v2480, 4294901760
      %4016 = vmatpush1.msra.mxu0 %v4015
      %4017 = vmatprep.subr.mxu0 0.0
      %v4018 = vand.u32 %v2481, 4294901760
      %4019 = vmatpush1.msra.mxu0 %v4018
      %4020 = vmatprep.subr.mxu0 0.0
      %v4021 = vand.u32 %v2482, 4294901760
      %4022 = vmatpush1.msra.mxu0 %v4021
      %4023 = vmatprep.subr.mxu0 0.0
      %v4024 = vand.u32 %v2483, 4294901760
      %4025 = vmatpush1.msra.mxu0 %v4024
      %4026 = vmatprep.subr.mxu0 0.0
      %v4027 = vand.u32 %v2484, 4294901760
      %4028 = vmatpush1.msra.mxu0 %v4027
      %4029 = vmatprep.subr.mxu0 0.0
      %v4030 = vand.u32 %v2485, 4294901760
      %4031 = vmatpush1.msra.mxu0 %v4030
      %v4032 = vand.u32 %v2391, 4294901760
      %v4033 = vsub.f32 %v2391, %v4032
      %v4034 = vand.u32 %v4033, 4294901760
      %4035 = vmatprep.mubr.f32.mxu0 %v4034
      %v4036 = vand.u32 %v2390, 4294901760
      %v4037 = vsub.f32 %v2390, %v4036
      %v4038 = vand.u32 %v4037, 4294901760
      %4039 = vmatmul.mubr.f32.gmra.mrb[0].mxu0 %v4038
      %v4040 = vpop.f32.mrb[0].mxu0
      %v4041 = vadd.f32 %v3654, %v4040
      %v4042 = vpop.f32.mrb[0].mxu0
      %v4043 = vand.u32 %v2393, 4294901760
      %v4044 = vsub.f32 %v2393, %v4043
      %v4045 = vand.u32 %v4044, 4294901760
      %4046 = vmatprep.mubr.f32.mxu0 %v4045
      %v4047 = vand.u32 %v2392, 4294901760
      %v4048 = vsub.f32 %v2392, %v4047
      %v4049 = vand.u32 %v4048, 4294901760
      %4050 = vmatmul.mubr.f32.gmra.mrb[0].mxu0 %v4049
      %v4051 = vpop.f32.mrb[0].mxu0
      %v4052 = vadd.f32 %v3663, %v4051
      %v4053 = vpop.f32.mrb[0].mxu0
      %v4054 = vand.u32 %v2395, 4294901760
      %v4055 = vsub.f32 %v2395, %v4054
      %v4056 = vand.u32 %v4055, 4294901760
      %4057 = vmatprep.mubr.f32.mxu0 %v4056
      %v4058 = vand.u32 %v2394, 4294901760
      %v4059 = vsub.f32 %v2394, %v4058
      %v4060 = vand.u32 %v4059, 4294901760
      %4061 = vmatmul.mubr.f32.gmra.mrb[0].mxu0 %v4060
      %v4062 = vpop.f32.mrb[0].mxu0
      %v4063 = vadd.f32 %v3672, %v4062
      %v4064 = vpop.f32.mrb[0].mxu0
      %v4065 = vand.u32 %v2397, 4294901760
      %v4066 = vsub.f32 %v2397, %v4065
      %v4067 = vand.u32 %v4066, 4294901760
      %4068 = vmatprep.mubr.f32.mxu0 %v4067
      %v4069 = vand.u32 %v2396, 4294901760
      %v4070 = vsub.f32 %v2396, %v4069
      %v4071 = vand.u32 %v4070, 4294901760
      %4072 = vmatmul.mubr.f32.gmra.mrb[0].mxu0 %v4071
      %v4073 = vpop.f32.mrb[0].mxu0
      %v4074 = vadd.f32 %v3681, %v4073
      %v4075 = vpop.f32.mrb[0].mxu0
      %v4076 = vand.u32 %v2399, 4294901760
      %v4077 = vsub.f32 %v2399, %v4076
      %v4078 = vand.u32 %v4077, 4294901760
      %4079 = vmatprep.mubr.f32.mxu0 %v4078
      %v4080 = vand.u32 %v2398, 4294901760
      %v4081 = vsub.f32 %v2398, %v4080
      %v4082 = vand.u32 %v4081, 4294901760
      %4083 = vmatmul.mubr.f32.gmra.mrb[0].mxu0 %v4082
      %v4084 = vpop.f32.mrb[0].mxu0
      %v4085 = vadd.f32 %v3690, %v4084
      %v4086 = vpop.f32.mrb[0].mxu0
      %v4087 = vand.u32 %v2401, 4294901760
      %v4088 = vsub.f32 %v2401, %v4087
      %v4089 = vand.u32 %v4088, 4294901760
      %4090 = vmatprep.mubr.f32.mxu0 %v4089
      %v4091 = vand.u32 %v2400, 4294901760
      %v4092 = vsub.f32 %v2400, %v4091
      %v4093 = vand.u32 %v4092, 4294901760
      %4094 = vmatmul.mubr.f32.gmra.mrb[0].mxu0 %v4093
      %v4095 = vpop.f32.mrb[0].mxu0
      %v4096 = vadd.f32 %v3699, %v4095
      %v4097 = vpop.f32.mrb[0].mxu0
      %v4098 = vand.u32 %v2403, 4294901760
      %v4099 = vsub.f32 %v2403, %v4098
      %v4100 = vand.u32 %v4099, 4294901760
      %4101 = vmatprep.mubr.f32.mxu0 %v4100
      %v4102 = vand.u32 %v2402, 4294901760
      %v4103 = vsub.f32 %v2402, %v4102
      %v4104 = vand.u32 %v4103, 4294901760
      %4105 = vmatmul.mubr.f32.gmra.mrb[0].mxu0 %v4104
      %v4106 = vpop.f32.mrb[0].mxu0
      %v4107 = vadd.f32 %v3708, %v4106
      %v4108 = vpop.f32.mrb[0].mxu0
      %v4109 = vand.u32 %v2405, 4294901760
      %v4110 = vsub.f32 %v2405, %v4109
      %v4111 = vand.u32 %v4110, 4294901760
      %4112 = vmatprep.mubr.f32.mxu0 %v4111
      %v4113 = vand.u32 %v2404, 4294901760
      %v4114 = vsub.f32 %v2404, %v4113
      %v4115 = vand.u32 %v4114, 4294901760
      %4116 = vmatmul.mubr.f32.gmra.mrb[0].mxu0 %v4115
      %v4117 = vpop.f32.mrb[0].mxu0
      %v4118 = vadd.f32 %v3717, %v4117
      %v4119 = vpop.f32.mrb[0].mxu0
      %v4120 = vand.u32 %v2407, 4294901760
      %v4121 = vsub.f32 %v2407, %v4120
      %v4122 = vand.u32 %v4121, 4294901760
      %4123 = vmatprep.mubr.f32.mxu0 %v4122
      %v4124 = vand.u32 %v2406, 4294901760
      %v4125 = vsub.f32 %v2406, %v4124
      %v4126 = vand.u32 %v4125, 4294901760
      %4127 = vmatmul.mubr.f32.gmra.mrb[0].mxu0 %v4126
      %v4128 = vpop.f32.mrb[0].mxu0
      %v4129 = vadd.f32 %v3726, %v4128
      %v4130 = vpop.f32.mrb[0].mxu0
      %v4131 = vand.u32 %v2409, 4294901760
      %v4132 = vsub.f32 %v2409, %v4131
      %v4133 = vand.u32 %v4132, 4294901760
      %4134 = vmatprep.mubr.f32.mxu0 %v4133
      %v4135 = vand.u32 %v2408, 4294901760
      %v4136 = vsub.f32 %v2408, %v4135
      %v4137 = vand.u32 %v4136, 4294901760
      %4138 = vmatmul.mubr.f32.gmra.mrb[0].mxu0 %v4137
      %v4139 = vpop.f32.mrb[0].mxu0
      %v4140 = vadd.f32 %v3735, %v4139
      %v4141 = vpop.f32.mrb[0].mxu0
      %v4142 = vand.u32 %v2411, 4294901760
      %v4143 = vsub.f32 %v2411, %v4142
      %v4144 = vand.u32 %v4143, 4294901760
      %4145 = vmatprep.mubr.f32.mxu0 %v4144
      %v4146 = vand.u32 %v2410, 4294901760
      %v4147 = vsub.f32 %v2410, %v4146
      %v4148 = vand.u32 %v4147, 4294901760
      %4149 = vmatmul.mubr.f32.gmra.mrb[0].mxu0 %v4148
      %v4150 = vpop.f32.mrb[0].mxu0
      %v4151 = vadd.f32 %v3744, %v4150
      %v4152 = vpop.f32.mrb[0].mxu0
      %v4153 = vand.u32 %v2413, 4294901760
      %v4154 = vsub.f32 %v2413, %v4153
      %v4155 = vand.u32 %v4154, 4294901760
      %4156 = vmatprep.mubr.f32.mxu0 %v4155
      %v4157 = vand.u32 %v2412, 4294901760
      %v4158 = vsub.f32 %v2412, %v4157
      %v4159 = vand.u32 %v4158, 4294901760
      %4160 = vmatmul.mubr.f32.gmra.mrb[0].mxu0 %v4159
      %v4161 = vpop.f32.mrb[0].mxu0
      %v4162 = vadd.f32 %v3753, %v4161
      %v4163 = vpop.f32.mrb[0].mxu0
      %v4164 = vand.u32 %v2415, 4294901760
      %v4165 = vsub.f32 %v2415, %v4164
      %v4166 = vand.u32 %v4165, 4294901760
      %4167 = vmatprep.mubr.f32.mxu0 %v4166
      %v4168 = vand.u32 %v2414, 4294901760
      %v4169 = vsub.f32 %v2414, %v4168
      %v4170 = vand.u32 %v4169, 4294901760
      %4171 = vmatmul.mubr.f32.gmra.mrb[0].mxu0 %v4170
      %v4172 = vpop.f32.mrb[0].mxu0
      %v4173 = vadd.f32 %v3762, %v4172
      %v4174 = vpop.f32.mrb[0].mxu0
      %v4175 = vand.u32 %v2417, 4294901760
      %v4176 = vsub.f32 %v2417, %v4175
      %v4177 = vand.u32 %v4176, 4294901760
      %4178 = vmatprep.mubr.f32.mxu0 %v4177
      %v4179 = vand.u32 %v2416, 4294901760
      %v4180 = vsub.f32 %v2416, %v4179
      %v4181 = vand.u32 %v4180, 4294901760
      %4182 = vmatmul.mubr.f32.gmra.mrb[0].mxu0 %v4181
      %v4183 = vpop.f32.mrb[0].mxu0
      %v4184 = vadd.f32 %v3771, %v4183
      %v4185 = vpop.f32.mrb[0].mxu0
      %v4186 = vand.u32 %v2419, 4294901760
      %v4187 = vsub.f32 %v2419, %v4186
      %v4188 = vand.u32 %v4187, 4294901760
      %4189 = vmatprep.mubr.f32.mxu0 %v4188
      %v4190 = vand.u32 %v2418, 4294901760
      %v4191 = vsub.f32 %v2418, %v4190
      %v4192 = vand.u32 %v4191, 4294901760
      %4193 = vmatmul.mubr.f32.gmra.mrb[0].mxu0 %v4192
      %v4194 = vpop.f32.mrb[0].mxu0
      %v4195 = vadd.f32 %v3780, %v4194
      %v4196 = vpop.f32.mrb[0].mxu0
      %v4197 = vand.u32 %v2421, 4294901760
      %v4198 = vsub.f32 %v2421, %v4197
      %v4199 = vand.u32 %v4198, 4294901760
      %4200 = vmatprep.mubr.f32.mxu0 %v4199
      %v4201 = vand.u32 %v2420, 4294901760
      %v4202 = vsub.f32 %v2420, %v4201
      %v4203 = vand.u32 %v4202, 4294901760
      %4204 = vmatmul.mubr.f32.gmra.mrb[0].mxu0 %v4203
      %v4205 = vpop.f32.mrb[0].mxu0
      %v4206 = vadd.f32 %v3789, %v4205
      %v4207 = vpop.f32.mrb[0].mxu0
      %v4208 = vand.u32 %v2423, 4294901760
      %v4209 = vsub.f32 %v2423, %v4208
      %v4210 = vand.u32 %v4209, 4294901760
      %4211 = vmatprep.mubr.f32.mxu0 %v4210
      %v4212 = vand.u32 %v2422, 4294901760
      %v4213 = vsub.f32 %v2422, %v4212
      %v4214 = vand.u32 %v4213, 4294901760
      %4215 = vmatmul.mubr.f32.gmra.mrb[0].mxu0 %v4214
      %v4216 = vpop.f32.mrb[0].mxu0
      %v4217 = vadd.f32 %v3798, %v4216
      %v4218 = vpop.f32.mrb[0].mxu0
      %v4219 = vand.u32 %v2425, 4294901760
      %v4220 = vsub.f32 %v2425, %v4219
      %v4221 = vand.u32 %v4220, 4294901760
      %4222 = vmatprep.mubr.f32.mxu0 %v4221
      %v4223 = vand.u32 %v2424, 4294901760
      %v4224 = vsub.f32 %v2424, %v4223
      %v4225 = vand.u32 %v4224, 4294901760
      %4226 = vmatmul.mubr.f32.gmra.mrb[0].mxu0 %v4225
      %v4227 = vpop.f32.mrb[0].mxu0
      %v4228 = vadd.f32 %v3807, %v4227
      %v4229 = vpop.f32.mrb[0].mxu0
      %v4230 = vand.u32 %v2427, 4294901760
      %v4231 = vsub.f32 %v2427, %v4230
      %v4232 = vand.u32 %v4231, 4294901760
      %4233 = vmatprep.mubr.f32.mxu0 %v4232
      %v4234 = vand.u32 %v2426, 4294901760
      %v4235 = vsub.f32 %v2426, %v4234
      %v4236 = vand.u32 %v4235, 4294901760
      %4237 = vmatmul.mubr.f32.gmra.mrb[0].mxu0 %v4236
      %v4238 = vpop.f32.mrb[0].mxu0
      %v4239 = vadd.f32 %v3816, %v4238
      %v4240 = vpop.f32.mrb[0].mxu0
      %v4241 = vand.u32 %v2429, 4294901760
      %v4242 = vsub.f32 %v2429, %v4241
      %v4243 = vand.u32 %v4242, 4294901760
      %4244 = vmatprep.mubr.f32.mxu0 %v4243
      %v4245 = vand.u32 %v2428, 4294901760
      %v4246 = vsub.f32 %v2428, %v4245
      %v4247 = vand.u32 %v4246, 4294901760
      %4248 = vmatmul.mubr.f32.gmra.mrb[0].mxu0 %v4247
      %v4249 = vpop.f32.mrb[0].mxu0
      %v4250 = vadd.f32 %v3825, %v4249
      %v4251 = vpop.f32.mrb[0].mxu0
      %v4252 = vand.u32 %v2431, 4294901760
      %v4253 = vsub.f32 %v2431, %v4252
      %v4254 = vand.u32 %v4253, 4294901760
      %4255 = vmatprep.mubr.f32.mxu0 %v4254
      %v4256 = vand.u32 %v2430, 4294901760
      %v4257 = vsub.f32 %v2430, %v4256
      %v4258 = vand.u32 %v4257, 4294901760
      %4259 = vmatmul.mubr.f32.gmra.mrb[0].mxu0 %v4258
      %v4260 = vpop.f32.mrb[0].mxu0
      %v4261 = vadd.f32 %v3834, %v4260
      %v4262 = vpop.f32.mrb[0].mxu0
      %v4263 = vand.u32 %v2433, 4294901760
      %v4264 = vsub.f32 %v2433, %v4263
      %v4265 = vand.u32 %v4264, 4294901760
      %4266 = vmatprep.mubr.f32.mxu0 %v4265
      %v4267 = vand.u32 %v2432, 4294901760
      %v4268 = vsub.f32 %v2432, %v4267
      %v4269 = vand.u32 %v4268, 4294901760
      %4270 = vmatmul.mubr.f32.gmra.mrb[0].mxu0 %v4269
      %v4271 = vpop.f32.mrb[0].mxu0
      %v4272 = vadd.f32 %v3843, %v4271
      %v4273 = vpop.f32.mrb[0].mxu0
      %v4274 = vand.u32 %v2435, 4294901760
      %v4275 = vsub.f32 %v2435, %v4274
      %v4276 = vand.u32 %v4275, 4294901760
      %4277 = vmatprep.mubr.f32.mxu0 %v4276
      %v4278 = vand.u32 %v2434, 4294901760
      %v4279 = vsub.f32 %v2434, %v4278
      %v4280 = vand.u32 %v4279, 4294901760
      %4281 = vmatmul.mubr.f32.gmra.mrb[0].mxu0 %v4280
      %v4282 = vpop.f32.mrb[0].mxu0
      %v4283 = vadd.f32 %v3852, %v4282
      %v4284 = vpop.f32.mrb[0].mxu0
      %v4285 = vand.u32 %v2437, 4294901760
      %v4286 = vsub.f32 %v2437, %v4285
      %v4287 = vand.u32 %v4286, 4294901760
      %4288 = vmatprep.mubr.f32.mxu0 %v4287
      %v4289 = vand.u32 %v2436, 4294901760
      %v4290 = vsub.f32 %v2436, %v4289
      %v4291 = vand.u32 %v4290, 4294901760
      %4292 = vmatmul.mubr.f32.gmra.mrb[0].mxu0 %v4291
      %v4293 = vpop.f32.mrb[0].mxu0
      %v4294 = vadd.f32 %v3861, %v4293
      %v4295 = vpop.f32.mrb[0].mxu0
      %v4296 = vand.u32 %v2439, 4294901760
      %v4297 = vsub.f32 %v2439, %v4296
      %v4298 = vand.u32 %v4297, 4294901760
      %4299 = vmatprep.mubr.f32.mxu0 %v4298
      %v4300 = vand.u32 %v2438, 4294901760
      %v4301 = vsub.f32 %v2438, %v4300
      %v4302 = vand.u32 %v4301, 4294901760
      %4303 = vmatmul.mubr.f32.gmra.mrb[0].mxu0 %v4302
      %v4304 = vpop.f32.mrb[0].mxu0
      %v4305 = vadd.f32 %v3870, %v4304
      %v4306 = vpop.f32.mrb[0].mxu0
      %v4307 = vand.u32 %v2441, 4294901760
      %v4308 = vsub.f32 %v2441, %v4307
      %v4309 = vand.u32 %v4308, 4294901760
      %4310 = vmatprep.mubr.f32.mxu0 %v4309
      %v4311 = vand.u32 %v2440, 4294901760
      %v4312 = vsub.f32 %v2440, %v4311
      %v4313 = vand.u32 %v4312, 4294901760
      %4314 = vmatmul.mubr.f32.gmra.mrb[0].mxu0 %v4313
      %v4315 = vpop.f32.mrb[0].mxu0
      %v4316 = vadd.f32 %v3879, %v4315
      %v4317 = vpop.f32.mrb[0].mxu0
      %v4318 = vand.u32 %v2443, 4294901760
      %v4319 = vsub.f32 %v2443, %v4318
      %v4320 = vand.u32 %v4319, 4294901760
      %4321 = vmatprep.mubr.f32.mxu0 %v4320
      %v4322 = vand.u32 %v2442, 4294901760
      %v4323 = vsub.f32 %v2442, %v4322
      %v4324 = vand.u32 %v4323, 4294901760
      %4325 = vmatmul.mubr.f32.gmra.mrb[0].mxu0 %v4324
      %v4326 = vpop.f32.mrb[0].mxu0
      %v4327 = vadd.f32 %v3888, %v4326
      %v4328 = vpop.f32.mrb[0].mxu0
      %v4329 = vand.u32 %v2445, 4294901760
      %v4330 = vsub.f32 %v2445, %v4329
      %v4331 = vand.u32 %v4330, 4294901760
      %4332 = vmatprep.mubr.f32.mxu0 %v4331
      %v4333 = vand.u32 %v2444, 4294901760
      %v4334 = vsub.f32 %v2444, %v4333
      %v4335 = vand.u32 %v4334, 4294901760
      %4336 = vmatmul.mubr.f32.gmra.mrb[0].mxu0 %v4335
      %v4337 = vpop.f32.mrb[0].mxu0
      %v4338 = vadd.f32 %v3897, %v4337
      %v4339 = vpop.f32.mrb[0].mxu0
      %v4340 = vand.u32 %v2447, 4294901760
      %v4341 = vsub.f32 %v2447, %v4340
      %v4342 = vand.u32 %v4341, 4294901760
      %4343 = vmatprep.mubr.f32.mxu0 %v4342
      %v4344 = vand.u32 %v2446, 4294901760
      %v4345 = vsub.f32 %v2446, %v4344
      %v4346 = vand.u32 %v4345, 4294901760
      %4347 = vmatmul.mubr.f32.gmra.mrb[0].mxu0 %v4346
      %v4348 = vpop.f32.mrb[0].mxu0
      %v4349 = vadd.f32 %v3906, %v4348
      %v4350 = vpop.f32.mrb[0].mxu0
      %v4351 = vand.u32 %v2449, 4294901760
      %v4352 = vsub.f32 %v2449, %v4351
      %v4353 = vand.u32 %v4352, 4294901760
      %4354 = vmatprep.mubr.f32.mxu0 %v4353
      %v4355 = vand.u32 %v2448, 4294901760
      %v4356 = vsub.f32 %v2448, %v4355
      %v4357 = vand.u32 %v4356, 4294901760
      %4358 = vmatmul.mubr.f32.gmra.mrb[0].mxu0 %v4357
      %v4359 = vpop.f32.mrb[0].mxu0
      %v4360 = vadd.f32 %v3915, %v4359
      %v4361 = vpop.f32.mrb[0].mxu0
      %v4362 = vand.u32 %v2451, 4294901760
      %v4363 = vsub.f32 %v2451, %v4362
      %v4364 = vand.u32 %v4363, 4294901760
      %4365 = vmatprep.mubr.f32.mxu0 %v4364
      %v4366 = vand.u32 %v2450, 4294901760
      %v4367 = vsub.f32 %v2450, %v4366
      %v4368 = vand.u32 %v4367, 4294901760
      %4369 = vmatmul.mubr.f32.gmra.mrb[0].mxu0 %v4368
      %v4370 = vpop.f32.mrb[0].mxu0
      %v4371 = vadd.f32 %v3924, %v4370
      %v4372 = vpop.f32.mrb[0].mxu0
      %v4373 = vand.u32 %v2453, 4294901760
      %v4374 = vsub.f32 %v2453, %v4373
      %v4375 = vand.u32 %v4374, 4294901760
      %4376 = vmatprep.mubr.f32.mxu0 %v4375
      %v4377 = vand.u32 %v2452, 4294901760
      %v4378 = vsub.f32 %v2452, %v4377
      %v4379 = vand.u32 %v4378, 4294901760
      %4380 = vmatmul.mubr.f32.gmra.mrb[0].mxu0 %v4379
      %v4381 = vpop.f32.mrb[0].mxu0
      %v4382 = vadd.f32 %v3933, %v4381
      %v4383 = vpop.f32.mrb[0].mxu0
      %4384 = vdwg.mxu0
      %4385 = vmatprep.subr.mxu0 0.0
      %v4386 = vand.u32 %v2454, 4294901760
      %v4387 = vsub.f32 %v2454, %v4386
      %v4388 = vand.u32 %v4387, 4294901760
      %4389 = vmatpush1.msra.mxu0 %v4388
      %4390 = vmatprep.subr.mxu0 0.0
      %v4391 = vand.u32 %v2455, 4294901760
      %v4392 = vsub.f32 %v2455, %v4391
      %v4393 = vand.u32 %v4392, 4294901760
      %4394 = vmatpush1.msra.mxu0 %v4393
      %4395 = vmatprep.subr.mxu0 0.0
      %v4396 = vand.u32 %v2456, 4294901760
      %v4397 = vsub.f32 %v2456, %v4396
      %v4398 = vand.u32 %v4397, 4294901760
      %4399 = vmatpush1.msra.mxu0 %v4398
      %4400 = vmatprep.subr.mxu0 0.0
      %v4401 = vand.u32 %v2457, 4294901760
      %v4402 = vsub.f32 %v2457, %v4401
      %v4403 = vand.u32 %v4402, 4294901760
      %4404 = vmatpush1.msra.mxu0 %v4403
      %4405 = vmatprep.subr.mxu0 0.0
      %v4406 = vand.u32 %v2458, 4294901760
      %v4407 = vsub.f32 %v2458, %v4406
      %v4408 = vand.u32 %v4407, 4294901760
      %4409 = vmatpush1.msra.mxu0 %v4408
      %4410 = vmatprep.subr.mxu0 0.0
      %v4411 = vand.u32 %v2459, 4294901760
      %v4412 = vsub.f32 %v2459, %v4411
      %v4413 = vand.u32 %v4412, 4294901760
      %4414 = vmatpush1.msra.mxu0 %v4413
      %4415 = vmatprep.subr.mxu0 0.0
      %v4416 = vand.u32 %v2460, 4294901760
      %v4417 = vsub.f32 %v2460, %v4416
      %v4418 = vand.u32 %v4417, 4294901760
      %4419 = vmatpush1.msra.mxu0 %v4418
      %4420 = vmatprep.subr.mxu0 0.0
      %v4421 = vand.u32 %v2461, 4294901760
      %v4422 = vsub.f32 %v2461, %v4421
      %v4423 = vand.u32 %v4422, 4294901760
      %4424 = vmatpush1.msra.mxu0 %v4423
      %4425 = vmatprep.subr.mxu0 0.0
      %v4426 = vand.u32 %v2462, 4294901760
      %v4427 = vsub.f32 %v2462, %v4426
      %v4428 = vand.u32 %v4427, 4294901760
      %4429 = vmatpush1.msra.mxu0 %v4428
      %4430 = vmatprep.subr.mxu0 0.0
      %v4431 = vand.u32 %v2463, 4294901760
      %v4432 = vsub.f32 %v2463, %v4431
      %v4433 = vand.u32 %v4432, 4294901760
      %4434 = vmatpush1.msra.mxu0 %v4433
      %4435 = vmatprep.subr.mxu0 0.0
      %v4436 = vand.u32 %v2464, 4294901760
      %v4437 = vsub.f32 %v2464, %v4436
      %v4438 = vand.u32 %v4437, 4294901760
      %4439 = vmatpush1.msra.mxu0 %v4438
      %4440 = vmatprep.subr.mxu0 0.0
      %v4441 = vand.u32 %v2465, 4294901760
      %v4442 = vsub.f32 %v2465, %v4441
      %v4443 = vand.u32 %v4442, 4294901760
      %4444 = vmatpush1.msra.mxu0 %v4443
      %4445 = vmatprep.subr.mxu0 0.0
      %v4446 = vand.u32 %v2466, 4294901760
      %v4447 = vsub.f32 %v2466, %v4446
      %v4448 = vand.u32 %v4447, 4294901760
      %4449 = vmatpush1.msra.mxu0 %v4448
      %4450 = vmatprep.subr.mxu0 0.0
      %v4451 = vand.u32 %v2467, 4294901760
      %v4452 = vsub.f32 %v2467, %v4451
      %v4453 = vand.u32 %v4452, 4294901760
      %4454 = vmatpush1.msra.mxu0 %v4453
      %4455 = vmatprep.subr.mxu0 0.0
      %v4456 = vand.u32 %v2468, 4294901760
      %v4457 = vsub.f32 %v2468, %v4456
      %v4458 = vand.u32 %v4457, 4294901760
      %4459 = vmatpush1.msra.mxu0 %v4458
      %4460 = vmatprep.subr.mxu0 0.0
      %v4461 = vand.u32 %v2469, 4294901760
      %v4462 = vsub.f32 %v2469, %v4461
      %v4463 = vand.u32 %v4462, 4294901760
      %4464 = vmatpush1.msra.mxu0 %v4463
      %4465 = vmatprep.subr.mxu0 0.0
      %v4466 = vand.u32 %v2470, 4294901760
      %v4467 = vsub.f32 %v2470, %v4466
      %v4468 = vand.u32 %v4467, 4294901760
      %4469 = vmatpush1.msra.mxu0 %v4468
      %4470 = vmatprep.subr.mxu0 0.0
      %v4471 = vand.u32 %v2471, 4294901760
      %v4472 = vsub.f32 %v2471, %v4471
      %v4473 = vand.u32 %v4472, 4294901760
      %4474 = vmatpush1.msra.mxu0 %v4473
      %4475 = vmatprep.subr.mxu0 0.0
      %v4476 = vand.u32 %v2472, 4294901760
      %v4477 = vsub.f32 %v2472, %v4476
      %v4478 = vand.u32 %v4477, 4294901760
      %4479 = vmatpush1.msra.mxu0 %v4478
      %4480 = vmatprep.subr.mxu0 0.0
      %v4481 = vand.u32 %v2473, 4294901760
      %v4482 = vsub.f32 %v2473, %v4481
      %v4483 = vand.u32 %v4482, 4294901760
      %4484 = vmatpush1.msra.mxu0 %v4483
      %4485 = vmatprep.subr.mxu0 0.0
      %v4486 = vand.u32 %v2474, 4294901760
      %v4487 = vsub.f32 %v2474, %v4486
      %v4488 = vand.u32 %v4487, 4294901760
      %4489 = vmatpush1.msra.mxu0 %v4488
      %4490 = vmatprep.subr.mxu0 0.0
      %v4491 = vand.u32 %v2475, 4294901760
      %v4492 = vsub.f32 %v2475, %v4491
      %v4493 = vand.u32 %v4492, 4294901760
      %4494 = vmatpush1.msra.mxu0 %v4493
      %4495 = vmatprep.subr.mxu0 0.0
      %v4496 = vand.u32 %v2476, 4294901760
      %v4497 = vsub.f32 %v2476, %v4496
      %v4498 = vand.u32 %v4497, 4294901760
      %4499 = vmatpush1.msra.mxu0 %v4498
      %4500 = vmatprep.subr.mxu0 0.0
      %v4501 = vand.u32 %v2477, 4294901760
      %v4502 = vsub.f32 %v2477, %v4501
      %v4503 = vand.u32 %v4502, 4294901760
      %4504 = vmatpush1.msra.mxu0 %v4503
      %4505 = vmatprep.subr.mxu0 0.0
      %v4506 = vand.u32 %v2478, 4294901760
      %v4507 = vsub.f32 %v2478, %v4506
      %v4508 = vand.u32 %v4507, 4294901760
      %4509 = vmatpush1.msra.mxu0 %v4508
      %4510 = vmatprep.subr.mxu0 0.0
      %v4511 = vand.u32 %v2479, 4294901760
      %v4512 = vsub.f32 %v2479, %v4511
      %v4513 = vand.u32 %v4512, 4294901760
      %4514 = vmatpush1.msra.mxu0 %v4513
      %4515 = vmatprep.subr.mxu0 0.0
      %v4516 = vand.u32 %v2480, 4294901760
      %v4517 = vsub.f32 %v2480, %v4516
      %v4518 = vand.u32 %v4517, 4294901760
      %4519 = vmatpush1.msra.mxu0 %v4518
      %4520 = vmatprep.subr.mxu0 0.0
      %v4521 = vand.u32 %v2481, 4294901760
      %v4522 = vsub.f32 %v2481, %v4521
      %v4523 = vand.u32 %v4522, 4294901760
      %4524 = vmatpush1.msra.mxu0 %v4523
      %4525 = vmatprep.subr.mxu0 0.0
      %v4526 = vand.u32 %v2482, 4294901760
      %v4527 = vsub.f32 %v2482, %v4526
      %v4528 = vand.u32 %v4527, 4294901760
      %4529 = vmatpush1.msra.mxu0 %v4528
      %4530 = vmatprep.subr.mxu0 0.0
      %v4531 = vand.u32 %v2483, 4294901760
      %v4532 = vsub.f32 %v2483, %v4531
      %v4533 = vand.u32 %v4532, 4294901760
      %4534 = vmatpush1.msra.mxu0 %v4533
      %4535 = vmatprep.subr.mxu0 0.0
      %v4536 = vand.u32 %v2484, 4294901760
      %v4537 = vsub.f32 %v2484, %v4536
      %v4538 = vand.u32 %v4537, 4294901760
      %4539 = vmatpush1.msra.mxu0 %v4538
      %4540 = vmatprep.subr.mxu0 0.0
      %v4541 = vand.u32 %v2485, 4294901760
      %v4542 = vsub.f32 %v2485, %v4541
      %v4543 = vand.u32 %v4542, 4294901760
      %4544 = vmatpush1.msra.mxu0 %v4543
      %v4545 = vand.u32 %v2391, 4294901760
      %4546 = vmatprep.mubr.f32.mxu0 %v4545
      %v4547 = vand.u32 %v2390, 4294901760
      %4548 = vmatmul.mubr.f32.gmra.mrb[0].mxu0 %v4547
      %v4549 = vpop.f32.mrb[0].mxu0
      %v4550 = vadd.f32 %v4041, %v4549
      %v4551 = vpop.f32.mrb[0].mxu0
      %v4552 = vand.u32 %v2393, 4294901760
      %4553 = vmatprep.mubr.f32.mxu0 %v4552
      %v4554 = vand.u32 %v2392, 4294901760
      %4555 = vmatmul.mubr.f32.gmra.mrb[0].mxu0 %v4554
      %v4556 = vpop.f32.mrb[0].mxu0
      %v4557 = vadd.f32 %v4052, %v4556
      %v4558 = vpop.f32.mrb[0].mxu0
      %v4559 = vand.u32 %v2395, 4294901760
      %4560 = vmatprep.mubr.f32.mxu0 %v4559
      %v4561 = vand.u32 %v2394, 4294901760
      %4562 = vmatmul.mubr.f32.gmra.mrb[0].mxu0 %v4561
      %v4563 = vpop.f32.mrb[0].mxu0
      %v4564 = vadd.f32 %v4063, %v4563
      %v4565 = vpop.f32.mrb[0].mxu0
      %v4566 = vand.u32 %v2397, 4294901760
      %4567 = vmatprep.mubr.f32.mxu0 %v4566
      %v4568 = vand.u32 %v2396, 4294901760
      %4569 = vmatmul.mubr.f32.gmra.mrb[0].mxu0 %v4568
      %v4570 = vpop.f32.mrb[0].mxu0
      %v4571 = vadd.f32 %v4074, %v4570
      %v4572 = vpop.f32.mrb[0].mxu0
      %v4573 = vand.u32 %v2399, 4294901760
      %4574 = vmatprep.mubr.f32.mxu0 %v4573
      %v4575 = vand.u32 %v2398, 4294901760
      %4576 = vmatmul.mubr.f32.gmra.mrb[0].mxu0 %v4575
      %v4577 = vpop.f32.mrb[0].mxu0
      %v4578 = vadd.f32 %v4085, %v4577
      %v4579 = vpop.f32.mrb[0].mxu0
      %v4580 = vand.u32 %v2401, 4294901760
      %4581 = vmatprep.mubr.f32.mxu0 %v4580
      %v4582 = vand.u32 %v2400, 4294901760
      %4583 = vmatmul.mubr.f32.gmra.mrb[0].mxu0 %v4582
      %v4584 = vpop.f32.mrb[0].mxu0
      %v4585 = vadd.f32 %v4096, %v4584
      %v4586 = vpop.f32.mrb[0].mxu0
      %v4587 = vand.u32 %v2403, 4294901760
      %4588 = vmatprep.mubr.f32.mxu0 %v4587
      %v4589 = vand.u32 %v2402, 4294901760
      %4590 = vmatmul.mubr.f32.gmra.mrb[0].mxu0 %v4589
      %v4591 = vpop.f32.mrb[0].mxu0
      %v4592 = vadd.f32 %v4107, %v4591
      %v4593 = vpop.f32.mrb[0].mxu0
      %v4594 = vand.u32 %v2405, 4294901760
      %4595 = vmatprep.mubr.f32.mxu0 %v4594
      %v4596 = vand.u32 %v2404, 4294901760
      %4597 = vmatmul.mubr.f32.gmra.mrb[0].mxu0 %v4596
      %v4598 = vpop.f32.mrb[0].mxu0
      %v4599 = vadd.f32 %v4118, %v4598
      %v4600 = vpop.f32.mrb[0].mxu0
      %v4601 = vand.u32 %v2407, 4294901760
      %4602 = vmatprep.mubr.f32.mxu0 %v4601
      %v4603 = vand.u32 %v2406, 4294901760
      %4604 = vmatmul.mubr.f32.gmra.mrb[0].mxu0 %v4603
      %v4605 = vpop.f32.mrb[0].mxu0
      %v4606 = vadd.f32 %v4129, %v4605
      %v4607 = vpop.f32.mrb[0].mxu0
      %v4608 = vand.u32 %v2409, 4294901760
      %4609 = vmatprep.mubr.f32.mxu0 %v4608
      %v4610 = vand.u32 %v2408, 4294901760
      %4611 = vmatmul.mubr.f32.gmra.mrb[0].mxu0 %v4610
      %v4612 = vpop.f32.mrb[0].mxu0
      %v4613 = vadd.f32 %v4140, %v4612
      %v4614 = vpop.f32.mrb[0].mxu0
      %v4615 = vand.u32 %v2411, 4294901760
      %4616 = vmatprep.mubr.f32.mxu0 %v4615
      %v4617 = vand.u32 %v2410, 4294901760
      %4618 = vmatmul.mubr.f32.gmra.mrb[0].mxu0 %v4617
      %v4619 = vpop.f32.mrb[0].mxu0
      %v4620 = vadd.f32 %v4151, %v4619
      %v4621 = vpop.f32.mrb[0].mxu0
      %v4622 = vand.u32 %v2413, 4294901760
      %4623 = vmatprep.mubr.f32.mxu0 %v4622
      %v4624 = vand.u32 %v2412, 4294901760
      %4625 = vmatmul.mubr.f32.gmra.mrb[0].mxu0 %v4624
      %v4626 = vpop.f32.mrb[0].mxu0
      %v4627 = vadd.f32 %v4162, %v4626
      %v4628 = vpop.f32.mrb[0].mxu0
      %v4629 = vand.u32 %v2415, 4294901760
      %4630 = vmatprep.mubr.f32.mxu0 %v4629
      %v4631 = vand.u32 %v2414, 4294901760
      %4632 = vmatmul.mubr.f32.gmra.mrb[0].mxu0 %v4631
      %v4633 = vpop.f32.mrb[0].mxu0
      %v4634 = vadd.f32 %v4173, %v4633
      %v4635 = vpop.f32.mrb[0].mxu0
      %v4636 = vand.u32 %v2417, 4294901760
      %4637 = vmatprep.mubr.f32.mxu0 %v4636
      %v4638 = vand.u32 %v2416, 4294901760
      %4639 = vmatmul.mubr.f32.gmra.mrb[0].mxu0 %v4638
      %v4640 = vpop.f32.mrb[0].mxu0
      %v4641 = vadd.f32 %v4184, %v4640
      %v4642 = vpop.f32.mrb[0].mxu0
      %v4643 = vand.u32 %v2419, 4294901760
      %4644 = vmatprep.mubr.f32.mxu0 %v4643
      %v4645 = vand.u32 %v2418, 4294901760
      %4646 = vmatmul.mubr.f32.gmra.mrb[0].mxu0 %v4645
      %v4647 = vpop.f32.mrb[0].mxu0
      %v4648 = vadd.f32 %v4195, %v4647
      %v4649 = vpop.f32.mrb[0].mxu0
      %v4650 = vand.u32 %v2421, 4294901760
      %4651 = vmatprep.mubr.f32.mxu0 %v4650
      %v4652 = vand.u32 %v2420, 4294901760
      %4653 = vmatmul.mubr.f32.gmra.mrb[0].mxu0 %v4652
      %v4654 = vpop.f32.mrb[0].mxu0
      %v4655 = vadd.f32 %v4206, %v4654
      %v4656 = vpop.f32.mrb[0].mxu0
      %v4657 = vand.u32 %v2423, 4294901760
      %4658 = vmatprep.mubr.f32.mxu0 %v4657
      %v4659 = vand.u32 %v2422, 4294901760
      %4660 = vmatmul.mubr.f32.gmra.mrb[0].mxu0 %v4659
      %v4661 = vpop.f32.mrb[0].mxu0
      %v4662 = vadd.f32 %v4217, %v4661
      %v4663 = vpop.f32.mrb[0].mxu0
      %v4664 = vand.u32 %v2425, 4294901760
      %4665 = vmatprep.mubr.f32.mxu0 %v4664
      %v4666 = vand.u32 %v2424, 4294901760
      %4667 = vmatmul.mubr.f32.gmra.mrb[0].mxu0 %v4666
      %v4668 = vpop.f32.mrb[0].mxu0
      %v4669 = vadd.f32 %v4228, %v4668
      %v4670 = vpop.f32.mrb[0].mxu0
      %v4671 = vand.u32 %v2427, 4294901760
      %4672 = vmatprep.mubr.f32.mxu0 %v4671
      %v4673 = vand.u32 %v2426, 4294901760
      %4674 = vmatmul.mubr.f32.gmra.mrb[0].mxu0 %v4673
      %v4675 = vpop.f32.mrb[0].mxu0
      %v4676 = vadd.f32 %v4239, %v4675
      %v4677 = vpop.f32.mrb[0].mxu0
      %v4678 = vand.u32 %v2429, 4294901760
      %4679 = vmatprep.mubr.f32.mxu0 %v4678
      %v4680 = vand.u32 %v2428, 4294901760
      %4681 = vmatmul.mubr.f32.gmra.mrb[0].mxu0 %v4680
      %v4682 = vpop.f32.mrb[0].mxu0
      %v4683 = vadd.f32 %v4250, %v4682
      %v4684 = vpop.f32.mrb[0].mxu0
      %v4685 = vand.u32 %v2431, 4294901760
      %4686 = vmatprep.mubr.f32.mxu0 %v4685
      %v4687 = vand.u32 %v2430, 4294901760
      %4688 = vmatmul.mubr.f32.gmra.mrb[0].mxu0 %v4687
      %v4689 = vpop.f32.mrb[0].mxu0
      %v4690 = vadd.f32 %v4261, %v4689
      %v4691 = vpop.f32.mrb[0].mxu0
      %v4692 = vand.u32 %v2433, 4294901760
      %4693 = vmatprep.mubr.f32.mxu0 %v4692
      %v4694 = vand.u32 %v2432, 4294901760
      %4695 = vmatmul.mubr.f32.gmra.mrb[0].mxu0 %v4694
      %v4696 = vpop.f32.mrb[0].mxu0
      %v4697 = vadd.f32 %v4272, %v4696
      %v4698 = vpop.f32.mrb[0].mxu0
      %v4699 = vand.u32 %v2435, 4294901760
      %4700 = vmatprep.mubr.f32.mxu0 %v4699
      %v4701 = vand.u32 %v2434, 4294901760
      %4702 = vmatmul.mubr.f32.gmra.mrb[0].mxu0 %v4701
      %v4703 = vpop.f32.mrb[0].mxu0
      %v4704 = vadd.f32 %v4283, %v4703
      %v4705 = vpop.f32.mrb[0].mxu0
      %v4706 = vand.u32 %v2437, 4294901760
      %4707 = vmatprep.mubr.f32.mxu0 %v4706
      %v4708 = vand.u32 %v2436, 4294901760
      %4709 = vmatmul.mubr.f32.gmra.mrb[0].mxu0 %v4708
      %v4710 = vpop.f32.mrb[0].mxu0
      %v4711 = vadd.f32 %v4294, %v4710
      %v4712 = vpop.f32.mrb[0].mxu0
      %v4713 = vand.u32 %v2439, 4294901760
      %4714 = vmatprep.mubr.f32.mxu0 %v4713
      %v4715 = vand.u32 %v2438, 4294901760
      %4716 = vmatmul.mubr.f32.gmra.mrb[0].mxu0 %v4715
      %v4717 = vpop.f32.mrb[0].mxu0
      %v4718 = vadd.f32 %v4305, %v4717
      %v4719 = vpop.f32.mrb[0].mxu0
      %v4720 = vand.u32 %v2441, 4294901760
      %4721 = vmatprep.mubr.f32.mxu0 %v4720
      %v4722 = vand.u32 %v2440, 4294901760
      %4723 = vmatmul.mubr.f32.gmra.mrb[0].mxu0 %v4722
      %v4724 = vpop.f32.mrb[0].mxu0
      %v4725 = vadd.f32 %v4316, %v4724
      %v4726 = vpop.f32.mrb[0].mxu0
      %v4727 = vand.u32 %v2443, 4294901760
      %4728 = vmatprep.mubr.f32.mxu0 %v4727
      %v4729 = vand.u32 %v2442, 4294901760
      %4730 = vmatmul.mubr.f32.gmra.mrb[0].mxu0 %v4729
      %v4731 = vpop.f32.mrb[0].mxu0
      %v4732 = vadd.f32 %v4327, %v4731
      %v4733 = vpop.f32.mrb[0].mxu0
      %v4734 = vand.u32 %v2445, 4294901760
      %4735 = vmatprep.mubr.f32.mxu0 %v4734
      %v4736 = vand.u32 %v2444, 4294901760
      %4737 = vmatmul.mubr.f32.gmra.mrb[0].mxu0 %v4736
      %v4738 = vpop.f32.mrb[0].mxu0
      %v4739 = vadd.f32 %v4338, %v4738
      %v4740 = vpop.f32.mrb[0].mxu0
      %v4741 = vand.u32 %v2447, 4294901760
      %4742 = vmatprep.mubr.f32.mxu0 %v4741
      %v4743 = vand.u32 %v2446, 4294901760
      %4744 = vmatmul.mubr.f32.gmra.mrb[0].mxu0 %v4743
      %v4745 = vpop.f32.mrb[0].mxu0
      %v4746 = vadd.f32 %v4349, %v4745
      %v4747 = vpop.f32.mrb[0].mxu0
      %v4748 = vand.u32 %v2449, 4294901760
      %4749 = vmatprep.mubr.f32.mxu0 %v4748
      %v4750 = vand.u32 %v2448, 4294901760
      %4751 = vmatmul.mubr.f32.gmra.mrb[0].mxu0 %v4750
      %v4752 = vpop.f32.mrb[0].mxu0
      %v4753 = vadd.f32 %v4360, %v4752
      %v4754 = vpop.f32.mrb[0].mxu0
      %v4755 = vand.u32 %v2451, 4294901760
      %4756 = vmatprep.mubr.f32.mxu0 %v4755
      %v4757 = vand.u32 %v2450, 4294901760
      %4758 = vmatmul.mubr.f32.gmra.mrb[0].mxu0 %v4757
      %v4759 = vpop.f32.mrb[0].mxu0
      %v4760 = vadd.f32 %v4371, %v4759
      %v4761 = vpop.f32.mrb[0].mxu0
      %v4762 = vand.u32 %v2453, 4294901760
      %4763 = vmatprep.mubr.f32.mxu0 %v4762
      %v4764 = vand.u32 %v2452, 4294901760
      %4765 = vmatmul.mubr.f32.gmra.mrb[0].mxu0 %v4764
      %v4766 = vpop.f32.mrb[0].mxu0
      %v4767 = vadd.f32 %v4382, %v4766
      %v4768 = vpop.f32.mrb[0].mxu0
      %4769 = vdwg.mxu0
      %4770 = vmatprep.subr.mxu0 0.0
      %v4771 = vand.u32 %v2454, 4294901760
      %4772 = vmatpush1.msra.mxu0 %v4771
      %4773 = vmatprep.subr.mxu0 0.0
      %v4774 = vand.u32 %v2455, 4294901760
      %4775 = vmatpush1.msra.mxu0 %v4774
      %4776 = vmatprep.subr.mxu0 0.0
      %v4777 = vand.u32 %v2456, 4294901760
      %4778 = vmatpush1.msra.mxu0 %v4777
      %4779 = vmatprep.subr.mxu0 0.0
      %v4780 = vand.u32 %v2457, 4294901760
      %4781 = vmatpush1.msra.mxu0 %v4780
      %4782 = vmatprep.subr.mxu0 0.0
      %v4783 = vand.u32 %v2458, 4294901760
      %4784 = vmatpush1.msra.mxu0 %v4783
      %4785 = vmatprep.subr.mxu0 0.0
      %v4786 = vand.u32 %v2459, 4294901760
      %4787 = vmatpush1.msra.mxu0 %v4786
      %4788 = vmatprep.subr.mxu0 0.0
      %v4789 = vand.u32 %v2460, 4294901760
      %4790 = vmatpush1.msra.mxu0 %v4789
      %4791 = vmatprep.subr.mxu0 0.0
      %v4792 = vand.u32 %v2461, 4294901760
      %4793 = vmatpush1.msra.mxu0 %v4792
      %4794 = vmatprep.subr.mxu0 0.0
      %v4795 = vand.u32 %v2462, 4294901760
      %4796 = vmatpush1.msra.mxu0 %v4795
      %4797 = vmatprep.subr.mxu0 0.0
      %v4798 = vand.u32 %v2463, 4294901760
      %4799 = vmatpush1.msra.mxu0 %v4798
      %4800 = vmatprep.subr.mxu0 0.0
      %v4801 = vand.u32 %v2464, 4294901760
      %4802 = vmatpush1.msra.mxu0 %v4801
      %4803 = vmatprep.subr.mxu0 0.0
      %v4804 = vand.u32 %v2465, 4294901760
      %4805 = vmatpush1.msra.mxu0 %v4804
      %4806 = vmatprep.subr.mxu0 0.0
      %v4807 = vand.u32 %v2466, 4294901760
      %4808 = vmatpush1.msra.mxu0 %v4807
      %4809 = vmatprep.subr.mxu0 0.0
      %v4810 = vand.u32 %v2467, 4294901760
      %4811 = vmatpush1.msra.mxu0 %v4810
      %4812 = vmatprep.subr.mxu0 0.0
      %v4813 = vand.u32 %v2468, 4294901760
      %4814 = vmatpush1.msra.mxu0 %v4813
      %4815 = vmatprep.subr.mxu0 0.0
      %v4816 = vand.u32 %v2469, 4294901760
      %4817 = vmatpush1.msra.mxu0 %v4816
      %4818 = vmatprep.subr.mxu0 0.0
      %v4819 = vand.u32 %v2470, 4294901760
      %4820 = vmatpush1.msra.mxu0 %v4819
      %4821 = vmatprep.subr.mxu0 0.0
      %v4822 = vand.u32 %v2471, 4294901760
      %4823 = vmatpush1.msra.mxu0 %v4822
      %4824 = vmatprep.subr.mxu0 0.0
      %v4825 = vand.u32 %v2472, 4294901760
      %4826 = vmatpush1.msra.mxu0 %v4825
      %4827 = vmatprep.subr.mxu0 0.0
      %v4828 = vand.u32 %v2473, 4294901760
      %4829 = vmatpush1.msra.mxu0 %v4828
      %4830 = vmatprep.subr.mxu0 0.0
      %v4831 = vand.u32 %v2474, 4294901760
      %4832 = vmatpush1.msra.mxu0 %v4831
      %4833 = vmatprep.subr.mxu0 0.0
      %v4834 = vand.u32 %v2475, 4294901760
      %4835 = vmatpush1.msra.mxu0 %v4834
      %4836 = vmatprep.subr.mxu0 0.0
      %v4837 = vand.u32 %v2476, 4294901760
      %4838 = vmatpush1.msra.mxu0 %v4837
      %4839 = vmatprep.subr.mxu0 0.0
      %v4840 = vand.u32 %v2477, 4294901760
      %4841 = vmatpush1.msra.mxu0 %v4840
      %4842 = vmatprep.subr.mxu0 0.0
      %v4843 = vand.u32 %v2478, 4294901760
      %4844 = vmatpush1.msra.mxu0 %v4843
      %4845 = vmatprep.subr.mxu0 0.0
      %v4846 = vand.u32 %v2479, 4294901760
      %4847 = vmatpush1.msra.mxu0 %v4846
      %4848 = vmatprep.subr.mxu0 0.0
      %v4849 = vand.u32 %v2480, 4294901760
      %4850 = vmatpush1.msra.mxu0 %v4849
      %4851 = vmatprep.subr.mxu0 0.0
      %v4852 = vand.u32 %v2481, 4294901760
      %4853 = vmatpush1.msra.mxu0 %v4852
      %4854 = vmatprep.subr.mxu0 0.0
      %v4855 = vand.u32 %v2482, 4294901760
      %4856 = vmatpush1.msra.mxu0 %v4855
      %4857 = vmatprep.subr.mxu0 0.0
      %v4858 = vand.u32 %v2483, 4294901760
      %4859 = vmatpush1.msra.mxu0 %v4858
      %4860 = vmatprep.subr.mxu0 0.0
      %v4861 = vand.u32 %v2484, 4294901760
      %4862 = vmatpush1.msra.mxu0 %v4861
      %4863 = vmatprep.subr.mxu0 0.0
      %v4864 = vand.u32 %v2485, 4294901760
      %4865 = vmatpush1.msra.mxu0 %v4864
      %v4866 = vand.u32 %v2391, 4294901760
      %4867 = vmatprep.mubr.f32.mxu0 %v4866
      %v4868 = vand.u32 %v2390, 4294901760
      %4869 = vmatmul.mubr.f32.gmra.mrb[0].mxu0 %v4868
      %v4870 = vpop.f32.mrb[0].mxu0
      %v4871 = vadd.f32 %v4550, %v4870
      %v4872 = vpop.f32.mrb[0].mxu0
      %v4873 = vand.u32 %v2393, 4294901760
      %4874 = vmatprep.mubr.f32.mxu0 %v4873
      %v4875 = vand.u32 %v2392, 4294901760
      %4876 = vmatmul.mubr.f32.gmra.mrb[0].mxu0 %v4875
      %v4877 = vpop.f32.mrb[0].mxu0
      %v4878 = vadd.f32 %v4557, %v4877
      %v4879 = vpop.f32.mrb[0].mxu0
      %v4880 = vand.u32 %v2395, 4294901760
      %4881 = vmatprep.mubr.f32.mxu0 %v4880
      %v4882 = vand.u32 %v2394, 4294901760
      %4883 = vmatmul.mubr.f32.gmra.mrb[0].mxu0 %v4882
      %v4884 = vpop.f32.mrb[0].mxu0
      %v4885 = vadd.f32 %v4564, %v4884
      %v4886 = vpop.f32.mrb[0].mxu0
      %v4887 = vand.u32 %v2397, 4294901760
      %4888 = vmatprep.mubr.f32.mxu0 %v4887
      %v4889 = vand.u32 %v2396, 4294901760
      %4890 = vmatmul.mubr.f32.gmra.mrb[0].mxu0 %v4889
      %v4891 = vpop.f32.mrb[0].mxu0
      %v4892 = vadd.f32 %v4571, %v4891
      %v4893 = vpop.f32.mrb[0].mxu0
      %v4894 = vand.u32 %v2399, 4294901760
      %4895 = vmatprep.mubr.f32.mxu0 %v4894
      %v4896 = vand.u32 %v2398, 4294901760
      %4897 = vmatmul.mubr.f32.gmra.mrb[0].mxu0 %v4896
      %v4898 = vpop.f32.mrb[0].mxu0
      %v4899 = vadd.f32 %v4578, %v4898
      %v4900 = vpop.f32.mrb[0].mxu0
      %v4901 = vand.u32 %v2401, 4294901760
      %4902 = vmatprep.mubr.f32.mxu0 %v4901
      %v4903 = vand.u32 %v2400, 4294901760
      %4904 = vmatmul.mubr.f32.gmra.mrb[0].mxu0 %v4903
      %v4905 = vpop.f32.mrb[0].mxu0
      %v4906 = vadd.f32 %v4585, %v4905
      %v4907 = vpop.f32.mrb[0].mxu0
      %v4908 = vand.u32 %v2403, 4294901760
      %4909 = vmatprep.mubr.f32.mxu0 %v4908
      %v4910 = vand.u32 %v2402, 4294901760
      %4911 = vmatmul.mubr.f32.gmra.mrb[0].mxu0 %v4910
      %v4912 = vpop.f32.mrb[0].mxu0
      %v4913 = vadd.f32 %v4592, %v4912
      %v4914 = vpop.f32.mrb[0].mxu0
      %v4915 = vand.u32 %v2405, 4294901760
      %4916 = vmatprep.mubr.f32.mxu0 %v4915
      %v4917 = vand.u32 %v2404, 4294901760
      %4918 = vmatmul.mubr.f32.gmra.mrb[0].mxu0 %v4917
      %v4919 = vpop.f32.mrb[0].mxu0
      %v4920 = vadd.f32 %v4599, %v4919
      %v4921 = vpop.f32.mrb[0].mxu0
      %v4922 = vand.u32 %v2407, 4294901760
      %4923 = vmatprep.mubr.f32.mxu0 %v4922
      %v4924 = vand.u32 %v2406, 4294901760
      %4925 = vmatmul.mubr.f32.gmra.mrb[0].mxu0 %v4924
      %v4926 = vpop.f32.mrb[0].mxu0
      %v4927 = vadd.f32 %v4606, %v4926
      %v4928 = vpop.f32.mrb[0].mxu0
      %v4929 = vand.u32 %v2409, 4294901760
      %4930 = vmatprep.mubr.f32.mxu0 %v4929
      %v4931 = vand.u32 %v2408, 4294901760
      %4932 = vmatmul.mubr.f32.gmra.mrb[0].mxu0 %v4931
      %v4933 = vpop.f32.mrb[0].mxu0
      %v4934 = vadd.f32 %v4613, %v4933
      %v4935 = vpop.f32.mrb[0].mxu0
      %v4936 = vand.u32 %v2411, 4294901760
      %4937 = vmatprep.mubr.f32.mxu0 %v4936
      %v4938 = vand.u32 %v2410, 4294901760
      %4939 = vmatmul.mubr.f32.gmra.mrb[0].mxu0 %v4938
      %v4940 = vpop.f32.mrb[0].mxu0
      %v4941 = vadd.f32 %v4620, %v4940
      %v4942 = vpop.f32.mrb[0].mxu0
      %v4943 = vand.u32 %v2413, 4294901760
      %4944 = vmatprep.mubr.f32.mxu0 %v4943
      %v4945 = vand.u32 %v2412, 4294901760
      %4946 = vmatmul.mubr.f32.gmra.mrb[0].mxu0 %v4945
      %v4947 = vpop.f32.mrb[0].mxu0
      %v4948 = vadd.f32 %v4627, %v4947
      %v4949 = vpop.f32.mrb[0].mxu0
      %v4950 = vand.u32 %v2415, 4294901760
      %4951 = vmatprep.mubr.f32.mxu0 %v4950
      %v4952 = vand.u32 %v2414, 4294901760
      %4953 = vmatmul.mubr.f32.gmra.mrb[0].mxu0 %v4952
      %v4954 = vpop.f32.mrb[0].mxu0
      %v4955 = vadd.f32 %v4634, %v4954
      %v4956 = vpop.f32.mrb[0].mxu0
      %v4957 = vand.u32 %v2417, 4294901760
      %4958 = vmatprep.mubr.f32.mxu0 %v4957
      %v4959 = vand.u32 %v2416, 4294901760
      %4960 = vmatmul.mubr.f32.gmra.mrb[0].mxu0 %v4959
      %v4961 = vpop.f32.mrb[0].mxu0
      %v4962 = vadd.f32 %v4641, %v4961
      %v4963 = vpop.f32.mrb[0].mxu0
      %v4964 = vand.u32 %v2419, 4294901760
      %4965 = vmatprep.mubr.f32.mxu0 %v4964
      %v4966 = vand.u32 %v2418, 4294901760
      %4967 = vmatmul.mubr.f32.gmra.mrb[0].mxu0 %v4966
      %v4968 = vpop.f32.mrb[0].mxu0
      %v4969 = vadd.f32 %v4648, %v4968
      %v4970 = vpop.f32.mrb[0].mxu0
      %v4971 = vand.u32 %v2421, 4294901760
      %4972 = vmatprep.mubr.f32.mxu0 %v4971
      %v4973 = vand.u32 %v2420, 4294901760
      %4974 = vmatmul.mubr.f32.gmra.mrb[0].mxu0 %v4973
      %v4975 = vpop.f32.mrb[0].mxu0
      %v4976 = vadd.f32 %v4655, %v4975
      %v4977 = vpop.f32.mrb[0].mxu0
      %v4978 = vand.u32 %v2423, 4294901760
      %4979 = vmatprep.mubr.f32.mxu0 %v4978
      %v4980 = vand.u32 %v2422, 4294901760
      %4981 = vmatmul.mubr.f32.gmra.mrb[0].mxu0 %v4980
      %v4982 = vpop.f32.mrb[0].mxu0
      %v4983 = vadd.f32 %v4662, %v4982
      %v4984 = vpop.f32.mrb[0].mxu0
      %v4985 = vand.u32 %v2425, 4294901760
      %4986 = vmatprep.mubr.f32.mxu0 %v4985
      %v4987 = vand.u32 %v2424, 4294901760
      %4988 = vmatmul.mubr.f32.gmra.mrb[0].mxu0 %v4987
      %v4989 = vpop.f32.mrb[0].mxu0
      %v4990 = vadd.f32 %v4669, %v4989
      %v4991 = vpop.f32.mrb[0].mxu0
      %v4992 = vand.u32 %v2427, 4294901760
      %4993 = vmatprep.mubr.f32.mxu0 %v4992
      %v4994 = vand.u32 %v2426, 4294901760
      %4995 = vmatmul.mubr.f32.gmra.mrb[0].mxu0 %v4994
      %v4996 = vpop.f32.mrb[0].mxu0
      %v4997 = vadd.f32 %v4676, %v4996
      %v4998 = vpop.f32.mrb[0].mxu0
      %v4999 = vand.u32 %v2429, 4294901760
      %5000 = vmatprep.mubr.f32.mxu0 %v4999
      %v5001 = vand.u32 %v2428, 4294901760
      %5002 = vmatmul.mubr.f32.gmra.mrb[0].mxu0 %v5001
      %v5003 = vpop.f32.mrb[0].mxu0
      %v5004 = vadd.f32 %v4683, %v5003
      %v5005 = vpop.f32.mrb[0].mxu0
      %v5006 = vand.u32 %v2431, 4294901760
      %5007 = vmatprep.mubr.f32.mxu0 %v5006
      %v5008 = vand.u32 %v2430, 4294901760
      %5009 = vmatmul.mubr.f32.gmra.mrb[0].mxu0 %v5008
      %v5010 = vpop.f32.mrb[0].mxu0
      %v5011 = vadd.f32 %v4690, %v5010
      %v5012 = vpop.f32.mrb[0].mxu0
      %v5013 = vand.u32 %v2433, 4294901760
      %5014 = vmatprep.mubr.f32.mxu0 %v5013
      %v5015 = vand.u32 %v2432, 4294901760
      %5016 = vmatmul.mubr.f32.gmra.mrb[0].mxu0 %v5015
      %v5017 = vpop.f32.mrb[0].mxu0
      %v5018 = vadd.f32 %v4697, %v5017
      %v5019 = vpop.f32.mrb[0].mxu0
      %v5020 = vand.u32 %v2435, 4294901760
      %5021 = vmatprep.mubr.f32.mxu0 %v5020
      %v5022 = vand.u32 %v2434, 4294901760
      %5023 = vmatmul.mubr.f32.gmra.mrb[0].mxu0 %v5022
      %v5024 = vpop.f32.mrb[0].mxu0
      %v5025 = vadd.f32 %v4704, %v5024
      %v5026 = vpop.f32.mrb[0].mxu0
      %v5027 = vand.u32 %v2437, 4294901760
      %5028 = vmatprep.mubr.f32.mxu0 %v5027
      %v5029 = vand.u32 %v2436, 4294901760
      %5030 = vmatmul.mubr.f32.gmra.mrb[0].mxu0 %v5029
      %v5031 = vpop.f32.mrb[0].mxu0
      %v5032 = vadd.f32 %v4711, %v5031
      %v5033 = vpop.f32.mrb[0].mxu0
      %v5034 = vand.u32 %v2439, 4294901760
      %5035 = vmatprep.mubr.f32.mxu0 %v5034
      %v5036 = vand.u32 %v2438, 4294901760
      %5037 = vmatmul.mubr.f32.gmra.mrb[0].mxu0 %v5036
      %v5038 = vpop.f32.mrb[0].mxu0
      %v5039 = vadd.f32 %v4718, %v5038
      %v5040 = vpop.f32.mrb[0].mxu0
      %v5041 = vand.u32 %v2441, 4294901760
      %5042 = vmatprep.mubr.f32.mxu0 %v5041
      %v5043 = vand.u32 %v2440, 4294901760
      %5044 = vmatmul.mubr.f32.gmra.mrb[0].mxu0 %v5043
      %v5045 = vpop.f32.mrb[0].mxu0
      %v5046 = vadd.f32 %v4725, %v5045
      %v5047 = vpop.f32.mrb[0].mxu0
      %v5048 = vand.u32 %v2443, 4294901760
      %5049 = vmatprep.mubr.f32.mxu0 %v5048
      %v5050 = vand.u32 %v2442, 4294901760
      %5051 = vmatmul.mubr.f32.gmra.mrb[0].mxu0 %v5050
      %v5052 = vpop.f32.mrb[0].mxu0
      %v5053 = vadd.f32 %v4732, %v5052
      %v5054 = vpop.f32.mrb[0].mxu0
      %v5055 = vand.u32 %v2445, 4294901760
      %5056 = vmatprep.mubr.f32.mxu0 %v5055
      %v5057 = vand.u32 %v2444, 4294901760
      %5058 = vmatmul.mubr.f32.gmra.mrb[0].mxu0 %v5057
      %v5059 = vpop.f32.mrb[0].mxu0
      %v5060 = vadd.f32 %v4739, %v5059
      %v5061 = vpop.f32.mrb[0].mxu0
      %v5062 = vand.u32 %v2447, 4294901760
      %5063 = vmatprep.mubr.f32.mxu0 %v5062
      %v5064 = vand.u32 %v2446, 4294901760
      %5065 = vmatmul.mubr.f32.gmra.mrb[0].mxu0 %v5064
      %v5066 = vpop.f32.mrb[0].mxu0
      %v5067 = vadd.f32 %v4746, %v5066
      %v5068 = vpop.f32.mrb[0].mxu0
      %v5069 = vand.u32 %v2449, 4294901760
      %5070 = vmatprep.mubr.f32.mxu0 %v5069
      %v5071 = vand.u32 %v2448, 4294901760
      %5072 = vmatmul.mubr.f32.gmra.mrb[0].mxu0 %v5071
      %v5073 = vpop.f32.mrb[0].mxu0
      %v5074 = vadd.f32 %v4753, %v5073
      %v5075 = vpop.f32.mrb[0].mxu0
      %v5076 = vand.u32 %v2451, 4294901760
      %5077 = vmatprep.mubr.f32.mxu0 %v5076
      %v5078 = vand.u32 %v2450, 4294901760
      %5079 = vmatmul.mubr.f32.gmra.mrb[0].mxu0 %v5078
      %v5080 = vpop.f32.mrb[0].mxu0
      %v5081 = vadd.f32 %v4760, %v5080
      %v5082 = vpop.f32.mrb[0].mxu0
      %v5083 = vand.u32 %v2453, 4294901760
      %5084 = vmatprep.mubr.f32.mxu0 %v5083
      %v5085 = vand.u32 %v2452, 4294901760
      %5086 = vmatmul.mubr.f32.gmra.mrb[0].mxu0 %v5085
      %v5087 = vpop.f32.mrb[0].mxu0
      %v5088 = vadd.f32 %v4767, %v5087
      %v5089 = vpop.f32.mrb[0].mxu0
      %5090 = vdwg.mxu0
      %vm5091 = vcmask 15360
      %5092 = vst.msk [vmem:[%s226] sm:$0xff] %vm5091, %v4871
      %5093 = vst.msk [vmem:[%s226 + $0x8] sm:$0xff] %vm5091, %v4878
      %5094 = vst.msk [vmem:[%s226 + $0x10] sm:$0xff] %vm5091, %v4885
      %5095 = vst.msk [vmem:[%s226 + $0x18] sm:$0xff] %vm5091, %v4892
      %5096 = vst.msk [vmem:[%s226 + $0x20] sm:$0xff] %vm5091, %v4899
      %5097 = vst.msk [vmem:[%s226 + $0x28] sm:$0xff] %vm5091, %v4906
      %5098 = vst.msk [vmem:[%s226 + $0x30] sm:$0xff] %vm5091, %v4913
      %5099 = vst.msk [vmem:[%s226 + $0x38] sm:$0xff] %vm5091, %v4920
      %5100 = vst.msk [vmem:[%s226 + $0x40] sm:$0xff] %vm5091, %v4927
      %5101 = vst.msk [vmem:[%s226 + $0x48] sm:$0xff] %vm5091, %v4934
      %5102 = vst.msk [vmem:[%s226 + $0x50] sm:$0xff] %vm5091, %v4941
      %5103 = vst.msk [vmem:[%s226 + $0x58] sm:$0xff] %vm5091, %v4948
      %5104 = vst.msk [vmem:[%s226 + $0x60] sm:$0xff] %vm5091, %v4955
      %5105 = vst.msk [vmem:[%s226 + $0x68] sm:$0xff] %vm5091, %v4962
      %5106 = vst.msk [vmem:[%s226 + $0x70] sm:$0xff] %vm5091, %v4969
      %5107 = vst.msk [vmem:[%s226 + $0x78] sm:$0xff] %vm5091, %v4976
      %5108 = vst.msk [vmem:[%s226 + $0x80] sm:$0xff] %vm5091, %v4983
      %5109 = vst.msk [vmem:[%s226 + $0x88] sm:$0xff] %vm5091, %v4990
      %5110 = vst.msk [vmem:[%s226 + $0x90] sm:$0xff] %vm5091, %v4997
      %5111 = vst.msk [vmem:[%s226 + $0x98] sm:$0xff] %vm5091, %v5004
      %5112 = vst.msk [vmem:[%s226 + $0xa0] sm:$0xff] %vm5091, %v5011
      %5113 = vst.msk [vmem:[%s226 + $0xa8] sm:$0xff] %vm5091, %v5018
      %5114 = vst.msk [vmem:[%s226 + $0xb0] sm:$0xff] %vm5091, %v5025
      %5115 = vst.msk [vmem:[%s226 + $0xb8] sm:$0xff] %vm5091, %v5032
      %5116 = vst.msk [vmem:[%s226 + $0xc0] sm:$0xff] %vm5091, %v5039
      %5117 = vst.msk [vmem:[%s226 + $0xc8] sm:$0xff] %vm5091, %v5046
      %5118 = vst.msk [vmem:[%s226 + $0xd0] sm:$0xff] %vm5091, %v5053
      %5119 = vst.msk [vmem:[%s226 + $0xd8] sm:$0xff] %vm5091, %v5060
      %5120 = vst.msk [vmem:[%s226 + $0xe0] sm:$0xff] %vm5091, %v5067
      %5121 = vst.msk [vmem:[%s226 + $0xe8] sm:$0xff] %vm5091, %v5074
      %5122 = vst.msk [vmem:[%s226 + $0xf0] sm:$0xff] %vm5091, %v5081
      %5123 = vst.msk [vmem:[%s226 + $0xf8] sm:$0xff] %vm5091, %v5088
      %s5124 = smul.u32 32, %s16
      %p5125 = scmp.lt.s32.totalorder %s5124, 63
      %s5126 = scalar_select %p5125, %s5124, 63
      %s5127 = smul.addr %s5126, 8
      %s5128 = scalar_lea.vmem %s5, %s5127
      // Predicated region
      $region41: #{tpu_custom_call.1} parent=39 // pred_check
        %p5129 = pneg %p144
      $region42: #{tpu_custom_call.1} parent=39 // pred_check_branch
        %5131 = sbr.rel (%p5129) target = $region44
      $region43: #{tpu_custom_call.1} parent=39 // pred_region
        %s5132 = smul.u32 32, %s16
      $region44: #{tpu_custom_call.1} parent=39 // pred_fallthru
        _
    $region40: #{tpu_custom_call.1} parent=5 // pred_fallthru
      _
    %p5133 = scmp.le.s32.totalorder 2, %s11
    // Predicated region
    $region45: #{tpu_custom_call.1} parent=5 // pred_check
      %p5134 = pneg %p5133
    $region46: #{tpu_custom_call.1} parent=5 // pred_check_branch
      %5136 = sbr.rel (%p5134) target = $region48
    $region47: #{tpu_custom_call.1} parent=5 // pred_region
      %s5137 = ssub.s32 %s11, 2
      // Predicated region
      $region49: #{tpu_custom_call.1} parent=47 // pred_check
        %p5138 = pneg %p150
      $region50: #{tpu_custom_call.1} parent=47 // pred_check_branch
        %5140 = sbr.rel (%p5138) target = $region52
      $region51: #{tpu_custom_call.1} parent=47 // pred_region
        %s5141 = smul.u32 32, %s17
        %p5142 = scmp.lt.s32.totalorder %s5141, 63
        %s5143 = scalar_select %p5142, %s5141, 63
        %s5144 = smul.addr %s5143, 8
        %s5145 = scalar_lea.vmem %s5, %s5144
      $region52: #{tpu_custom_call.1} parent=47 // pred_fallthru
        _
    $region48: #{tpu_custom_call.1} parent=5 // pred_fallthru
      _
  $region6: #{tpu_custom_call.1} parent=0 // loop_footer
    %s15 = sadd.s32 1, %s11
  $region7: #{tpu_custom_call.1} parent=0 // loop_footer_branch
    %10 = sbr.rel target = $region3
  $region8: #{tpu_custom_call.1} parent=0 // loop_exit
    _

</llo_original>
